<compile_context>
chip_gen: v7x
topology: tpu7x:2x2x1
jax: 0.10.0
libtpu: 0.0.40
codegen_flags: <defaults>
</compile_context>

<pallas_src>
import functools

import numpy as np
import jax
import jax.numpy as jnp
from jax.experimental import pallas as pl
from jax.experimental.pallas import tpu as pltpu

BN_EPS = 1e-5


# ------------------------------ Pallas kernel ------------------------------

def _upsample_fused_kernel(x1_ref, x2_ref, mup_ref, b1_ref, b2_ref, vec_ref,
                           pfw1_ref, gfw2_ref, prow_ref, prowt_ref, o_ref,
                           *, ho, hid):
    """One batch block per grid step; activations in batch-flattened wide rows.

    x1_ref : (B*H,  W*Cin)   bf16   ConvTranspose2d input, wide layout
    x2_ref : (B*Ho, Wo*Ch)   bf16   skip connection, wide layout
    mup_ref: (W*Cin, 2*Wo*Ch) bf16  fused ConvTranspose2d(k2,s2) + pixel shuffle
    b1_ref : (3, 2*Wo*Ch, Wo*Co) bf16  banded conv1 weights (BN1 scale folded)
    b2_ref : (3, Wo*Co,  Wo*Co)  bf16  banded conv2 weights (BN2 scale folded)
    vec_ref: (5, Wo*Co) f32  packed row vectors:
             [up bias | BN1 shift | BN2 shift | fc2 bias (width-tiled) | fc1 bias]
    pfw1_ref: (Wo*Co, hid) f32   SE: width/channel mean pooling folded into fc1^T
    gfw2_ref: (hid, Wo*Co) f32   SE: fc2^T folded with channel->lane broadcast
    prow_ref: (B, B*Ho) f32      per-image row-sum matrix
    prowt_ref: (B*Ho, B) f32     per-image row broadcast matrix (prow^T)
    o_ref  : (B*Ho, Wo*Co) f32   lane-dense output
    """
    rows = o_ref.shape[0]              # B * Ho
    wo_ch = x2_ref.shape[-1]           # Wo * Ch

    # --- ConvTranspose2d(k=2, s=2): one bf16 matmul; kh interleave = reshape ---
    u = jnp.dot(x1_ref[...], mup_ref[...], preferred_element_type=jnp.float32)
    u = u.reshape(rows, wo_ch) + vec_ref[0:1, :wo_ch]            # f32 + up bias

    # --- channel concat [up(x1) | x2]; per-pixel interleave is baked into b1 ---
    xcat = jnp.concatenate([u, x2_ref[...].astype(jnp.float32)], axis=-1)

    # --- per-image row-boundary masks (batch folded into the row axis) ---
    row_idx = jax.lax.broadcasted_iota(jnp.int32, (rows, 1), 0)
    row_in_img = row_idx % ho
    not_top = row_in_img != 0          # row i-1 exists within the same image
    not_bot = row_in_img != ho - 1     # row i+1 exists within the same image

    def conv3x3(x, band_ref, shift):
        # Row taps via XLU roll + boundary mask; column taps and width zero
        # padding are baked into the banded weights.  MXU in bf16, f32 accum.
        xm1 = jnp.where(not_top, pltpu.roll(x, 1, 0), 0.0)           # row i-1
        xp1 = jnp.where(not_bot, pltpu.roll(x, rows - 1, 0), 0.0)    # row i+1
        acc = jnp.dot(xm1.astype(jnp.bfloat16), band_ref[0],
                      preferred_element_type=jnp.float32)
        acc += jnp.dot(x.astype(jnp.bfloat16), band_ref[1],
                       preferred_element_type=jnp.float32)
        acc += jnp.dot(xp1.astype(jnp.bfloat16), band_ref[2],
                       preferred_element_type=jnp.float32)
        return jnp.maximum(acc + shift, 0.0)                 # BN shift + ReLU

    y1 = conv3x3(xcat, b1_ref, vec_ref[1:2, :])              # (rows, Wo*Co)
    y2 = conv3x3(y1, b2_ref, vec_ref[2:3, :])                # (rows, Wo*Co)

    # --- SE block, per image, all f32: pool -> fc1 -> ReLU -> fc2 -> sigmoid ---
    pooled = jnp.dot(prow_ref[...], y2, preferred_element_type=jnp.float32)
    pooled = jnp.dot(pooled, pfw1_ref[...], preferred_element_type=jnp.float32)
    z = jnp.maximum(pooled + vec_ref[4:5, :hid], 0.0)        # (B, hid)
    gate = jax.nn.sigmoid(
        jnp.dot(z, gfw2_ref[...], preferred_element_type=jnp.float32)
        + vec_ref[3:4, :])                                   # (B, Wo*Co)
    gate_full = jnp.dot(prowt_ref[...], gate,
                        preferred_element_type=jnp.float32)  # (rows, Wo*Co)
    o_ref[...] = (y2 * gate_full).astype(o_ref.dtype)


# ---------------------- wrapper-side weight preparation ----------------------

def _band_weights(w_hwio, width):
    """3x3 conv (pad=1) along W as banded matrices for the wide-row layout."""
    _, _, C, Co = w_hwio.shape
    S = np.zeros((3, width, width), np.float32)
    for dw in range(3):
        for qp in range(width):
            q = qp + dw - 1
            if 0 <= q < width:
                S[dw, q, qp] = 1.0
    B = jnp.einsum('dqp,hdco->hqcpo', jnp.asarray(S), w_hwio)
    return B.reshape(3, width * C, width * Co)


def _upsample_matrix(up_w, W):
    """ConvTranspose2d(k=2, s=2) + pixel shuffle as one matrix."""
    Cin, Ch, _, _ = up_w.shape
    Wo = 2 * W
    T = np.zeros((W, 2, Wo), np.float32)
    for w in range(W):
        for kw in range(2):
            T[w, kw, 2 * w + kw] = 1.0
    M = jnp.einsum('wkq,iohk->wihqo', jnp.asarray(T), up_w)
    return M.reshape(W * Cin, 2 * Wo * Ch)


def prepare_upsample_params(p, H, W, batch_block):
    """Derive all kernel constants ONCE per parameter set (hoisted out of the
    per-call path; close the result over a jitted forward)."""
    Cin, Ch = p['up_w'].shape[0], p['up_w'].shape[1]
    Co = p['conv1_w'].shape[0]
    hid = p['fc1_w'].shape[0]
    Ho, Wo = 2 * H, 2 * W

    # fold conv bias + BatchNorm (eval): scale into weights, shift stays.
    def fold(w_oihw, b, g, be, m, v):
        scale = g / jnp.sqrt(v + BN_EPS)
        shift = be + (b - m) * scale
        return jnp.transpose(w_oihw, (2, 3, 1, 0)) * scale, shift

    w1s, sh1 = fold(p['conv1_w'], p['conv1_b'], p['bn1_g'], p['bn1_b'],
                    p['bn1_m'], p['bn1_v'])
    w2s, sh2 = fold(p['conv2_w'], p['conv2_b'], p['bn2_g'], p['bn2_b'],
                    p['bn2_m'], p['bn2_v'])

    # banded conv matrices in bf16 (conv1's input is [up(x1) | x2] side by side)
    b1 = jnp.concatenate([_band_weights(w1s[:, :, :Ch, :], Wo),
                          _band_weights(w1s[:, :, Ch:, :], Wo)],
                         axis=1).astype(jnp.bfloat16)
    b2 = _band_weights(w2s, Wo).astype(jnp.bfloat16)
    mup = _upsample_matrix(p['up_w'], W).astype(jnp.bfloat16)

    # packed f32 slab of all small per-lane row vectors (one DMA)
    lanes = Wo * Co
    vec = jnp.zeros((5, lanes), jnp.float32)
    vec = vec.at[0, :Wo * Ch].set(jnp.tile(p['up_b'], Wo))     # ConvT bias
    vec = vec.at[1, :].set(jnp.tile(sh1, Wo))                  # BN1 shift
    vec = vec.at[2, :].set(jnp.tile(sh2, Wo))                  # BN2 shift
    vec = vec.at[3, :].set(jnp.tile(p['fc2_b'], Wo))           # fc2 bias (tiled)
    vec = vec.at[4, :hid].set(p['fc1_b'])                      # fc1 bias

    # SE matrices with the width mean-pool / channel broadcast folded in
    eye = jnp.eye(Co, dtype=jnp.float32)
    ppool = jnp.tile(eye, (Wo, 1)) / float(Ho * Wo)            # (Wo*Co, Co)
    pbc = jnp.tile(eye, (1, Wo))                               # (Co, Wo*Co)
    pfw1 = ppool @ p['fc1_w'].T                                # (Wo*Co, hid)
    gfw2 = p['fc2_w'].T @ pbc                                  # (hid, Wo*Co)

    # per-image row pooling / broadcast (batch folded into the row axis)
    prow = jnp.repeat(jnp.eye(batch_block, dtype=jnp.float32), Ho, axis=1)
    prowt = prow.T

    return dict(mup=mup, b1=b1, b2=b2, vec=vec, pfw1=pfw1, gfw2=gfw2,
                prow=prow, prowt=prowt,
                dims=dict(H=H, W=W, Ho=Ho, Wo=Wo, Cin=Cin, Ch=Ch, Co=Co,
                          hid=hid, b_blk=batch_block))


# ------------------------------- forward glue -------------------------------

def upsample_forward(x1_nchw, x2_nchw, prep):
    """Mirrors UpSample.forward(x1, x2). Inputs/outputs NCHW like PyTorch."""
    d = prep['dims']
    H, W, Ho, Wo = d['H'], d['W'], d['Ho'], d['Wo']
    Cin, Ch, Co, hid, B = d['Cin'], d['Ch'], d['Co'], d['hid'], d['b_blk']
    N = x1_nchw.shape[0]
    assert N % B == 0, "batch must be a multiple of the batch block"
    # On v7x pick B so that N // B >= 2 (keeps both TensorCores busy).

    # wide-row layout, batch folded into the row (M) axis, bf16 MXU operands
    x1w = jnp.transpose(x1_nchw, (0, 2, 3, 1)).reshape(N * H, W * Cin)
    x2w = jnp.transpose(x2_nchw, (0, 2, 3, 1)).reshape(N * Ho, Wo * Ch)
    x1w = x1w.astype(jnp.bfloat16)
    x2w = x2w.astype(jnp.bfloat16)

    def const_spec(shape):
        # resident constants: single buffer, constant index_map
        nd = len(shape)
        return pl.BlockSpec(shape, lambda i, _nd=nd: (0,) * _nd,
                            pipeline_mode=pl.Buffered(1))

    kernel = functools.partial(_upsample_fused_kernel, ho=Ho, hid=hid)

    # NOTE: at large decoder widths, add a lane-tile grid axis over the band
    # matrices' N dimension so b1/b2 stay under v7x's 64 MiB VMEM.
    out_wide = pl.pallas_call(
        kernel,
        out_shape=jax.ShapeDtypeStruct((N * Ho, Wo * Co), jnp.float32),
        grid=(N // B,),
        in_specs=[
            pl.BlockSpec((B * H, W * Cin), lambda i: (i, 0)),    # x1 wide
            pl.BlockSpec((B * Ho, Wo * Ch), lambda i: (i, 0)),   # x2 wide
            const_spec(prep['mup'].shape),
            const_spec(prep['b1'].shape),
            const_spec(prep['b2'].shape),
            const_spec(prep['vec'].shape),
            const_spec(prep['pfw1'].shape),
            const_spec(prep['gfw2'].shape),
            const_spec(prep['prow'].shape),
            const_spec(prep['prowt'].shape),
        ],
        out_specs=pl.BlockSpec((B * Ho, Wo * Co), lambda i: (i, 0)),
        compiler_params=pltpu.CompilerParams(
            dimension_semantics=("parallel",),
            vmem_limit_bytes=32 * 1024 * 1024),
    )(x1w, x2w, prep['mup'], prep['b1'], prep['b2'], prep['vec'],
      prep['pfw1'], prep['gfw2'], prep['prow'], prep['prowt'])

    out = out_wide.reshape(N, Ho, Wo, Co)
    return jnp.transpose(out, (0, 3, 1, 2))                     # back to NCHW


# ---------------------------- pure-JAX reference ----------------------------

def ref_forward(x1_nchw, x2_nchw, p):
    x1 = jnp.transpose(x1_nchw, (0, 2, 3, 1))
    x2 = jnp.transpose(x2_nchw, (0, 2, 3, 1))
    N, H, W, Cin = x1.shape

    y = jnp.einsum('nhwi,iokl->nhkwlo', x1, p['up_w'])
    y = y.reshape(N, 2 * H, 2 * W, p['up_w'].shape[1]) + p['up_b'].reshape(1, 1, 1, -1)
    xcat = jnp.concatenate([y, x2], axis=-1)

    def conv_bn_relu(x, w, b, g, be, m, v):
        wt = jnp.transpose(w, (2, 3, 1, 0))
        o = jax.lax.conv_general_dilated(x, wt, (1, 1), 'SAME',
                                         dimension_numbers=('NHWC', 'HWIO', 'NHWC'))
        o = o + b.reshape(1, 1, 1, -1)
        o = (o - m) / jnp.sqrt(v + BN_EPS) * g + be
        return jnp.maximum(o, 0.0)

    h1 = conv_bn_relu(xcat, p['conv1_w'], p['conv1_b'],
                      p['bn1_g'], p['bn1_b'], p['bn1_m'], p['bn1_v'])
    h2 = conv_bn_relu(h1, p['conv2_w'], p['conv2_b'],
                      p['bn2_g'], p['bn2_b'], p['bn2_m'], p['bn2_v'])
    pooled = jnp.mean(h2, axis=(1, 2))
    z = jnp.maximum(pooled @ p['fc1_w'].T + p['fc1_b'], 0.0)
    s = jax.nn.sigmoid(z @ p['fc2_w'].T + p['fc2_b'])
    out = h2 * s[:, None, None, :]
    return jnp.transpose(out, (0, 3, 1, 2))


# ---------------------------------- main ----------------------------------

if __name__ == "__main__":
    # x1: (8,16,8,8) -> up to (8,8,16,16); x2: (8,8,16,16); out: (8,16,16,16)
    N, Cin, Co, H, W = 8, 16, 16, 8, 8
    B_BLK = 4          # 4 images per step => M = 64 rows; grid of 2 steps
    ks = jax.random.split(jax.random.PRNGKey(0), 20)
    p = {
        'up_w':    0.1 * jax.random.normal(ks[0], (Cin, Cin // 2, 2, 2), jnp.float32),
        'up_b':    0.1 * jax.random.normal(ks[1], (Cin // 2,), jnp.float32),
        'conv1_w': 0.1 * jax.random.normal(ks[2], (Co, Cin, 3, 3), jnp.float32),
        'conv1_b': 0.1 * jax.random.normal(ks[3], (Co,), jnp.float32),
        'bn1_g':   1.0 + 0.1 * jax.random.normal(ks[4], (Co,), jnp.float32),
        'bn1_b':   0.1 * jax.random.normal(ks[5], (Co,), jnp.float32),
        'bn1_m':   0.1 * jax.random.normal(ks[6], (Co,), jnp.float32),
        'bn1_v':   1.0 + 0.1 * jax.random.uniform(ks[7], (Co,), jnp.float32),
        'conv2_w': 0.1 * jax.random.normal(ks[8], (Co, Co, 3, 3), jnp.float32),
        'conv2_b': 0.1 * jax.random.normal(ks[9], (Co,), jnp.float32),
        'bn2_g':   1.0 + 0.1 * jax.random.normal(ks[10], (Co,), jnp.float32),
        'bn2_b':   0.1 * jax.random.normal(ks[11], (Co,), jnp.float32),
        'bn2_m':   0.1 * jax.random.normal(ks[12], (Co,), jnp.float32),
        'bn2_v':   1.0 + 0.1 * jax.random.uniform(ks[13], (Co,), jnp.float32),
        'fc1_w':   0.1 * jax.random.normal(ks[14], (Co // 8, Co), jnp.float32),
        'fc1_b':   0.1 * jax.random.normal(ks[15], (Co // 8,), jnp.float32),
        'fc2_w':   0.1 * jax.random.normal(ks[16], (Co, Co // 8), jnp.float32),
        'fc2_b':   0.1 * jax.random.normal(ks[17], (Co,), jnp.float32),
    }
    x1 = jax.random.normal(ks[18], (N, Cin, H, W), jnp.float32)
    x2 = jax.random.normal(ks[19], (N, Cin // 2, 2 * H, 2 * W), jnp.float32)

    prep = prepare_upsample_params(p, H, W, B_BLK)   # hoisted weight prep (once)
    fwd = jax.jit(lambda a, b: upsample_forward(a, b, prep))

    out = jax.block_until_ready(fwd(x1, x2))
    ref = jax.block_until_ready(ref_forward(x1, x2, p))
    assert out.shape == (N, Co, 2 * H, 2 * W), out.shape
    err = float(jnp.max(jnp.abs(out - ref)))
    # bf16 MXU operands (f32 accumulation) => relaxed tolerance vs f32 reference
    assert jnp.allclose(out, ref, rtol=5e-2, atol=5e-2), err
    print("KERNEL_OK")
</pallas_src>

<mosaic_0001>
module attributes {stable_mosaic.version = 11 : i64} {
  func.func @_upsample_fused_kernel(%arg0: i32, %arg1: memref<32x128xbf16, #tpu.memory_space<vmem>>, %arg2: memref<64x128xbf16, #tpu.memory_space<vmem>>, %arg3: memref<128x256xbf16, #tpu.memory_space<vmem>>, %arg4: memref<3x256x256xbf16, #tpu.memory_space<vmem>>, %arg5: memref<3x256x256xbf16, #tpu.memory_space<vmem>>, %arg6: memref<5x256xf32, #tpu.memory_space<vmem>>, %arg7: memref<256x2xf32, #tpu.memory_space<vmem>>, %arg8: memref<2x256xf32, #tpu.memory_space<vmem>>, %arg9: memref<4x64xf32, #tpu.memory_space<vmem>>, %arg10: memref<64x4xf32, #tpu.memory_space<vmem>>, %arg11: memref<64x256xf32, #tpu.memory_space<vmem>>) attributes {dimension_semantics = [#tpu.dimension_semantics<parallel>], iteration_bounds = array<i64: 2>, scalar_prefetch = 0 : i64, scratch_operands = 0 : i64, tpu.core_type = #tpu.core_type<tc>, window_params = [{transform_indices = @transform_0, window_bounds = array<i64: 32, 128>}, {transform_indices = @transform_1, window_bounds = array<i64: 64, 128>}, {pipeline_mode = #tpu.pipeline_mode<synchronous>, transform_indices = @transform_2, window_bounds = array<i64: 128, 256>}, {pipeline_mode = #tpu.pipeline_mode<synchronous>, transform_indices = @transform_3, window_bounds = array<i64: 3, 256, 256>}, {pipeline_mode = #tpu.pipeline_mode<synchronous>, transform_indices = @transform_4, window_bounds = array<i64: 3, 256, 256>}, {pipeline_mode = #tpu.pipeline_mode<synchronous>, transform_indices = @transform_5, window_bounds = array<i64: 5, 256>}, {pipeline_mode = #tpu.pipeline_mode<synchronous>, transform_indices = @transform_6, window_bounds = array<i64: 256, 2>}, {pipeline_mode = #tpu.pipeline_mode<synchronous>, transform_indices = @transform_7, window_bounds = array<i64: 2, 256>}, {pipeline_mode = #tpu.pipeline_mode<synchronous>, transform_indices = @transform_8, window_bounds = array<i64: 4, 64>}, {pipeline_mode = #tpu.pipeline_mode<synchronous>, transform_indices = @transform_9, window_bounds = array<i64: 64, 4>}, {transform_indices = @transform_10, window_bounds = array<i64: 64, 256>}]} {
    %c0 = arith.constant 0 : index
    %c0_0 = arith.constant 0 : index
    %0 = vector.load %arg1[%c0, %c0_0] : memref<32x128xbf16, #tpu.memory_space<vmem>>, vector<32x128xbf16>
    %c0_1 = arith.constant 0 : index
    %c0_2 = arith.constant 0 : index
    %1 = vector.load %arg3[%c0_1, %c0_2] : memref<128x256xbf16, #tpu.memory_space<vmem>>, vector<128x256xbf16>
    %cst = arith.constant dense<0.000000e+00> : vector<32x256xf32>
    %2 = tpu.matmul %0, %1, %cst {dimension_numbers = #tpu.dot_dimension_numbers<[1], [0], [0], [1], [0, 0, 1, 1], [], []>} : vector<32x128xbf16>, vector<128x256xbf16>, vector<32x256xf32> -> vector<32x256xf32>
    %3 = vector.shape_cast %2 : vector<32x256xf32> to vector<64x128xf32>
    %c0_3 = arith.constant 0 : index
    %c0_4 = arith.constant 0 : index
    %4 = vector.load %arg6[%c0_3, %c0_4] : memref<5x256xf32, #tpu.memory_space<vmem>>, vector<1x128xf32>
    %5 = vector.broadcast %4 : vector<1x128xf32> to vector<64x128xf32>
    %6 = arith.addf %3, %5 : vector<64x128xf32>
    %c0_5 = arith.constant 0 : index
    %c0_6 = arith.constant 0 : index
    %7 = vector.load %arg2[%c0_5, %c0_6] : memref<64x128xbf16, #tpu.memory_space<vmem>>, vector<64x128xbf16>
    %8 = arith.extf %7 : vector<64x128xbf16> to vector<64x128xf32>
    %9 = tpu.concatenate %6, %8 in 1 : vector<64x128xf32>, vector<64x128xf32> -> vector<64x256xf32>
    %10 = tpu.iota {dimensions = array<i32: 0>} : vector<64x1xi32>
    %c16_i32 = arith.constant 16 : i32
    %c0_i32 = arith.constant 0 : i32
    %11 = arith.cmpi eq, %c16_i32, %c0_i32 : i32
    %c1_i32 = arith.constant 1 : i32
    %12 = arith.select %11, %c1_i32, %c16_i32 : i32
    %13 = vector.broadcast %12 : i32 to vector<64x1xi32>
    %14 = arith.remsi %10, %13 : vector<64x1xi32>
    %c0_i32_7 = arith.constant 0 : i32
    %15 = vector.broadcast %c0_i32_7 : i32 to vector<64x1xi32>
    %16 = arith.cmpi ne, %14, %15 : vector<64x1xi32>
    %c0_i32_8 = arith.constant 0 : i32
    %17 = vector.broadcast %c0_i32_8 : i32 to vector<64x1xi32>
    %18 = arith.cmpi slt, %14, %17 : vector<64x1xi32>
    %c0_i32_9 = arith.constant 0 : i32
    %19 = arith.cmpi slt, %12, %c0_i32_9 : i32
    %20 = vector.broadcast %19 : i1 to vector<64x1xi1>
    %21 = vector.broadcast %20 : vector<64x1xi1> to vector<64x1xi1>
    %22 = arith.xori %18, %21 : vector<64x1xi1>
    %23 = arith.andi %22, %16 : vector<64x1xi1>
    %24 = vector.broadcast %12 : i32 to vector<64x1xi32>
    %25 = arith.addi %14, %24 : vector<64x1xi32>
    %26 = arith.select %23, %25, %14 : vector<64x1xi1>, vector<64x1xi32>
    %c0_i32_10 = arith.constant 0 : i32
    %27 = vector.broadcast %c0_i32_10 : i32 to vector<64x1xi32>
    %28 = arith.cmpi ne, %26, %27 : vector<64x1xi32>
    %c15_i32 = arith.constant 15 : i32
    %29 = vector.broadcast %c15_i32 : i32 to vector<64x1xi32>
    %30 = arith.cmpi ne, %26, %29 : vector<64x1xi32>
    %c1 = arith.constant 1 : index
    %c0_11 = arith.constant 0 : index
    %31 = vector.load %arg6[%c1, %c0_11] : memref<5x256xf32, #tpu.memory_space<vmem>>, vector<1x256xf32>
    %c1_i32_12 = arith.constant 1 : i32
    %32 = tpu.dynamic_rotate %9 by %c1_i32_12 dim 0 : vector<64x256xf32>, i32 -> vector<64x256xf32>
    %cst_13 = arith.constant 0.000000e+00 : f32
    %33 = vector.shape_cast %28 : vector<64x1xi1> to vector<64x1xi1>
    %34 = vector.broadcast %33 : vector<64x1xi1> to vector<64x256xi1>
    %35 = vector.broadcast %cst_13 : f32 to vector<64x256xf32>
    %36 = arith.select %34, %32, %35 : vector<64x256xi1>, vector<64x256xf32>
    %c63_i32 = arith.constant 63 : i32
    %37 = tpu.dynamic_rotate %9 by %c63_i32 dim 0 : vector<64x256xf32>, i32 -> vector<64x256xf32>
    %cst_14 = arith.constant 0.000000e+00 : f32
    %38 = vector.shape_cast %30 : vector<64x1xi1> to vector<64x1xi1>
    %39 = vector.broadcast %38 : vector<64x1xi1> to vector<64x256xi1>
    %40 = vector.broadcast %cst_14 : f32 to vector<64x256xf32>
    %41 = arith.select %39, %37, %40 : vector<64x256xi1>, vector<64x256xf32>
    %42 = arith.truncf %36 : vector<64x256xf32> to vector<64x256xbf16>
    %c0_15 = arith.constant 0 : index
    %c0_16 = arith.constant 0 : index
    %c0_17 = arith.constant 0 : index
    %43 = vector.load %arg4[%c0_15, %c0_16, %c0_17] : memref<3x256x256xbf16, #tpu.memory_space<vmem>>, vector<1x256x256xbf16>
    %44 = vector.shape_cast %43 : vector<1x256x256xbf16> to vector<256x256xbf16>
    %cst_18 = arith.constant dense<0.000000e+00> : vector<64x256xf32>
    %45 = tpu.matmul %42, %44, %cst_18 {dimension_numbers = #tpu.dot_dimension_numbers<[1], [0], [0], [1], [0, 0, 1, 1], [], []>} : vector<64x256xbf16>, vector<256x256xbf16>, vector<64x256xf32> -> vector<64x256xf32>
    %46 = arith.truncf %9 : vector<64x256xf32> to vector<64x256xbf16>
    %c1_19 = arith.constant 1 : index
    %c0_20 = arith.constant 0 : index
    %c0_21 = arith.constant 0 : index
    %47 = vector.load %arg4[%c1_19, %c0_20, %c0_21] : memref<3x256x256xbf16, #tpu.memory_space<vmem>>, vector<1x256x256xbf16>
    %48 = vector.shape_cast %47 : vector<1x256x256xbf16> to vector<256x256xbf16>
    %cst_22 = arith.constant dense<0.000000e+00> : vector<64x256xf32>
    %49 = tpu.matmul %46, %48, %cst_22 {dimension_numbers = #tpu.dot_dimension_numbers<[1], [0], [0], [1], [0, 0, 1, 1], [], []>} : vector<64x256xbf16>, vector<256x256xbf16>, vector<64x256xf32> -> vector<64x256xf32>
    %50 = arith.addf %45, %49 : vector<64x256xf32>
    %51 = arith.truncf %41 : vector<64x256xf32> to vector<64x256xbf16>
    %c2 = arith.constant 2 : index
    %c0_23 = arith.constant 0 : index
    %c0_24 = arith.constant 0 : index
    %52 = vector.load %arg4[%c2, %c0_23, %c0_24] : memref<3x256x256xbf16, #tpu.memory_space<vmem>>, vector<1x256x256xbf16>
    %53 = vector.shape_cast %52 : vector<1x256x256xbf16> to vector<256x256xbf16>
    %cst_25 = arith.constant dense<0.000000e+00> : vector<64x256xf32>
    %54 = tpu.matmul %51, %53, %cst_25 {dimension_numbers = #tpu.dot_dimension_numbers<[1], [0], [0], [1], [0, 0, 1, 1], [], []>} : vector<64x256xbf16>, vector<256x256xbf16>, vector<64x256xf32> -> vector<64x256xf32>
    %55 = arith.addf %50, %54 : vector<64x256xf32>
    %56 = vector.broadcast %31 : vector<1x256xf32> to vector<64x256xf32>
    %57 = arith.addf %55, %56 : vector<64x256xf32>
    %cst_26 = arith.constant 0.000000e+00 : f32
    %58 = vector.broadcast %cst_26 : f32 to vector<64x256xf32>
    %59 = arith.maximumf %57, %58 : vector<64x256xf32>
    %c2_27 = arith.constant 2 : index
    %c0_28 = arith.constant 0 : index
    %60 = vector.load %arg6[%c2_27, %c0_28] : memref<5x256xf32, #tpu.memory_space<vmem>>, vector<1x256xf32>
    %c1_i32_29 = arith.constant 1 : i32
    %61 = tpu.dynamic_rotate %59 by %c1_i32_29 dim 0 : vector<64x256xf32>, i32 -> vector<64x256xf32>
    %cst_30 = arith.constant 0.000000e+00 : f32
    %62 = vector.shape_cast %28 : vector<64x1xi1> to vector<64x1xi1>
    %63 = vector.broadcast %62 : vector<64x1xi1> to vector<64x256xi1>
    %64 = vector.broadcast %cst_30 : f32 to vector<64x256xf32>
    %65 = arith.select %63, %61, %64 : vector<64x256xi1>, vector<64x256xf32>
    %c63_i32_31 = arith.constant 63 : i32
    %66 = tpu.dynamic_rotate %59 by %c63_i32_31 dim 0 : vector<64x256xf32>, i32 -> vector<64x256xf32>
    %cst_32 = arith.constant 0.000000e+00 : f32
    %67 = vector.shape_cast %30 : vector<64x1xi1> to vector<64x1xi1>
    %68 = vector.broadcast %67 : vector<64x1xi1> to vector<64x256xi1>
    %69 = vector.broadcast %cst_32 : f32 to vector<64x256xf32>
    %70 = arith.select %68, %66, %69 : vector<64x256xi1>, vector<64x256xf32>
    %71 = arith.truncf %65 : vector<64x256xf32> to vector<64x256xbf16>
    %c0_33 = arith.constant 0 : index
    %c0_34 = arith.constant 0 : index
    %c0_35 = arith.constant 0 : index
    %72 = vector.load %arg5[%c0_33, %c0_34, %c0_35] : memref<3x256x256xbf16, #tpu.memory_space<vmem>>, vector<1x256x256xbf16>
    %73 = vector.shape_cast %72 : vector<1x256x256xbf16> to vector<256x256xbf16>
    %cst_36 = arith.constant dense<0.000000e+00> : vector<64x256xf32>
    %74 = tpu.matmul %71, %73, %cst_36 {dimension_numbers = #tpu.dot_dimension_numbers<[1], [0], [0], [1], [0, 0, 1, 1], [], []>} : vector<64x256xbf16>, vector<256x256xbf16>, vector<64x256xf32> -> vector<64x256xf32>
    %75 = arith.truncf %59 : vector<64x256xf32> to vector<64x256xbf16>
    %c1_37 = arith.constant 1 : index
    %c0_38 = arith.constant 0 : index
    %c0_39 = arith.constant 0 : index
    %76 = vector.load %arg5[%c1_37, %c0_38, %c0_39] : memref<3x256x256xbf16, #tpu.memory_space<vmem>>, vector<1x256x256xbf16>
    %77 = vector.shape_cast %76 : vector<1x256x256xbf16> to vector<256x256xbf16>
    %cst_40 = arith.constant dense<0.000000e+00> : vector<64x256xf32>
    %78 = tpu.matmul %75, %77, %cst_40 {dimension_numbers = #tpu.dot_dimension_numbers<[1], [0], [0], [1], [0, 0, 1, 1], [], []>} : vector<64x256xbf16>, vector<256x256xbf16>, vector<64x256xf32> -> vector<64x256xf32>
    %79 = arith.addf %74, %78 : vector<64x256xf32>
    %80 = arith.truncf %70 : vector<64x256xf32> to vector<64x256xbf16>
    %c2_41 = arith.constant 2 : index
    %c0_42 = arith.constant 0 : index
    %c0_43 = arith.constant 0 : index
    %81 = vector.load %arg5[%c2_41, %c0_42, %c0_43] : memref<3x256x256xbf16, #tpu.memory_space<vmem>>, vector<1x256x256xbf16>
    %82 = vector.shape_cast %81 : vector<1x256x256xbf16> to vector<256x256xbf16>
    %cst_44 = arith.constant dense<0.000000e+00> : vector<64x256xf32>
    %83 = tpu.matmul %80, %82, %cst_44 {dimension_numbers = #tpu.dot_dimension_numbers<[1], [0], [0], [1], [0, 0, 1, 1], [], []>} : vector<64x256xbf16>, vector<256x256xbf16>, vector<64x256xf32> -> vector<64x256xf32>
    %84 = arith.addf %79, %83 : vector<64x256xf32>
    %85 = vector.broadcast %60 : vector<1x256xf32> to vector<64x256xf32>
    %86 = arith.addf %84, %85 : vector<64x256xf32>
    %cst_45 = arith.constant 0.000000e+00 : f32
    %87 = vector.broadcast %cst_45 : f32 to vector<64x256xf32>
    %88 = arith.maximumf %86, %87 : vector<64x256xf32>
    %c0_46 = arith.constant 0 : index
    %c0_47 = arith.constant 0 : index
    %89 = vector.load %arg9[%c0_46, %c0_47] : memref<4x64xf32, #tpu.memory_space<vmem>>, vector<4x64xf32>
    %cst_48 = arith.constant dense<0.000000e+00> : vector<4x256xf32>
    %90 = tpu.matmul %89, %88, %cst_48 {dimension_numbers = #tpu.dot_dimension_numbers<[1], [0], [0], [1], [0, 0, 1, 1], [], []>} : vector<4x64xf32>, vector<64x256xf32>, vector<4x256xf32> -> vector<4x256xf32>
    %c0_49 = arith.constant 0 : index
    %c0_50 = arith.constant 0 : index
    %91 = vector.load %arg7[%c0_49, %c0_50] : memref<256x2xf32, #tpu.memory_space<vmem>>, vector<256x2xf32>
    %cst_51 = arith.constant dense<0.000000e+00> : vector<4x2xf32>
    %92 = tpu.matmul %90, %91, %cst_51 {dimension_numbers = #tpu.dot_dimension_numbers<[1], [0], [0], [1], [0, 0, 1, 1], [], []>} : vector<4x256xf32>, vector<256x2xf32>, vector<4x2xf32> -> vector<4x2xf32>
    %c4 = arith.constant 4 : index
    %c0_52 = arith.constant 0 : index
    %93 = vector.load %arg6[%c4, %c0_52] : memref<5x256xf32, #tpu.memory_space<vmem>>, vector<1x2xf32>
    %94 = vector.broadcast %93 : vector<1x2xf32> to vector<4x2xf32>
    %95 = arith.addf %92, %94 : vector<4x2xf32>
    %cst_53 = arith.constant 0.000000e+00 : f32
    %96 = vector.broadcast %cst_53 : f32 to vector<4x2xf32>
    %97 = arith.maximumf %95, %96 : vector<4x2xf32>
    %c0_54 = arith.constant 0 : index
    %c0_55 = arith.constant 0 : index
    %98 = vector.load %arg8[%c0_54, %c0_55] : memref<2x256xf32, #tpu.memory_space<vmem>>, vector<2x256xf32>
    %cst_56 = arith.constant dense<0.000000e+00> : vector<4x256xf32>
    %99 = tpu.matmul %97, %98, %cst_56 {dimension_numbers = #tpu.dot_dimension_numbers<[1], [0], [0], [1], [0, 0, 1, 1], [], []>} : vector<4x2xf32>, vector<2x256xf32>, vector<4x256xf32> -> vector<4x256xf32>
    %c3 = arith.constant 3 : index
    %c0_57 = arith.constant 0 : index
    %100 = vector.load %arg6[%c3, %c0_57] : memref<5x256xf32, #tpu.memory_space<vmem>>, vector<1x256xf32>
    %101 = vector.broadcast %100 : vector<1x256xf32> to vector<4x256xf32>
    %102 = arith.addf %99, %101 : vector<4x256xf32>
    %103 = arith.negf %102 : vector<4x256xf32>
    %104 = math.exp %103 : vector<4x256xf32>
    %cst_58 = arith.constant 1.000000e+00 : f32
    %105 = vector.broadcast %cst_58 : f32 to vector<4x256xf32>
    %106 = arith.addf %105, %104 : vector<4x256xf32>
    %107 = arith.divf %105, %106 : vector<4x256xf32>
    %c0_59 = arith.constant 0 : index
    %c0_60 = arith.constant 0 : index
    %108 = vector.load %arg10[%c0_59, %c0_60] : memref<64x4xf32, #tpu.memory_space<vmem>>, vector<64x4xf32>
    %cst_61 = arith.constant dense<0.000000e+00> : vector<64x256xf32>
    %109 = tpu.matmul %108, %107, %cst_61 {dimension_numbers = #tpu.dot_dimension_numbers<[1], [0], [0], [1], [0, 0, 1, 1], [], []>} : vector<64x4xf32>, vector<4x256xf32>, vector<64x256xf32> -> vector<64x256xf32>
    %110 = arith.mulf %88, %109 : vector<64x256xf32>
    %c0_62 = arith.constant 0 : index
    %c0_63 = arith.constant 0 : index
    %111 = vector.load %arg11[%c0_62, %c0_63] : memref<64x256xf32, #tpu.memory_space<vmem>>, vector<64x256xf32>
    tpu.vector_store %arg11[%c0_62, %c0_63], %110 {strides = array<i32>} : memref<64x256xf32, #tpu.memory_space<vmem>>, vector<64x256xf32>,
    return
  }
  func.func @transform_0(%arg0: i32) -> (i32, i32) {
    %c0_i32 = arith.constant 0 : i32
    %c0_i32_0 = arith.constant 0 : i32
    return %arg0, %c0_i32 : i32, i32
  }
  func.func @transform_1(%arg0: i32) -> (i32, i32) {
    %c0_i32 = arith.constant 0 : i32
    %c0_i32_0 = arith.constant 0 : i32
    return %arg0, %c0_i32 : i32, i32
  }
  func.func @transform_2(%arg0: i32) -> (i32, i32) {
    %c0_i32 = arith.constant 0 : i32
    %c0_i32_0 = arith.constant 0 : i32
    %c0_i32_1 = arith.constant 0 : i32
    return %c0_i32, %c0_i32_0 : i32, i32
  }
  func.func @transform_3(%arg0: i32) -> (i32, i32, i32) {
    %c0_i32 = arith.constant 0 : i32
    %c0_i32_0 = arith.constant 0 : i32
    %c0_i32_1 = arith.constant 0 : i32
    %c0_i32_2 = arith.constant 0 : i32
    return %c0_i32, %c0_i32_0, %c0_i32_1 : i32, i32, i32
  }
  func.func @transform_4(%arg0: i32) -> (i32, i32, i32) {
    %c0_i32 = arith.constant 0 : i32
    %c0_i32_0 = arith.constant 0 : i32
    %c0_i32_1 = arith.constant 0 : i32
    %c0_i32_2 = arith.constant 0 : i32
    return %c0_i32, %c0_i32_0, %c0_i32_1 : i32, i32, i32
  }
  func.func @transform_5(%arg0: i32) -> (i32, i32) {
    %c0_i32 = arith.constant 0 : i32
    %c0_i32_0 = arith.constant 0 : i32
    %c0_i32_1 = arith.constant 0 : i32
    return %c0_i32, %c0_i32_0 : i32, i32
  }
  func.func @transform_6(%arg0: i32) -> (i32, i32) {
    %c0_i32 = arith.constant 0 : i32
    %c0_i32_0 = arith.constant 0 : i32
    %c0_i32_1 = arith.constant 0 : i32
    return %c0_i32, %c0_i32_0 : i32, i32
  }
  func.func @transform_7(%arg0: i32) -> (i32, i32) {
    %c0_i32 = arith.constant 0 : i32
    %c0_i32_0 = arith.constant 0 : i32
    %c0_i32_1 = arith.constant 0 : i32
    return %c0_i32, %c0_i32_0 : i32, i32
  }
  func.func @transform_8(%arg0: i32) -> (i32, i32) {
    %c0_i32 = arith.constant 0 : i32
    %c0_i32_0 = arith.constant 0 : i32
    %c0_i32_1 = arith.constant 0 : i32
    return %c0_i32, %c0_i32_0 : i32, i32
  }
  func.func @transform_9(%arg0: i32) -> (i32, i32) {
    %c0_i32 = arith.constant 0 : i32
    %c0_i32_0 = arith.constant 0 : i32
    %c0_i32_1 = arith.constant 0 : i32
    return %c0_i32, %c0_i32_0 : i32, i32
  }
  func.func @transform_10(%arg0: i32) -> (i32, i32) {
    %c0_i32 = arith.constant 0 : i32
    %c0_i32_0 = arith.constant 0 : i32
    return %arg0, %c0_i32 : i32, i32
  }
}

</mosaic_0001>

<llo_original>
// kernel: _lambda_.1
$region0: #{_lambda_.1}
  #allocation0 [shape = 'u32[]', space=smem, size = 0x4, offset = 0x4, fixed_abs, tag = 'smem constant byte address 0x4 - core index']
  #allocation1 [shape = 'u32[144,128]{1,0:T(1,128)}', space=vmem, size = 0x12000, scoped, tag = 'internal scratch']
  %s0 = inlined_call_operand.vmem [shape: bf16[64,128], index: 0, kind: input, shape index: {}]
  %s1 = inlined_call_operand.vmem [shape: bf16[128,128], index: 1, kind: input, shape index: {}]
  %s2 = inlined_call_operand.vmem [shape: bf16[128,256], index: 2, kind: input, shape index: {}]
  %s3 = inlined_call_operand.vmem [shape: bf16[3,256,256], index: 3, kind: input, shape index: {}]
  %s4 = inlined_call_operand.vmem [shape: bf16[3,256,256], index: 4, kind: input, shape index: {}]
  %s5 = inlined_call_operand.vmem [shape: f32[5,256], index: 5, kind: input, shape index: {}]
  %s6 = inlined_call_operand.vmem [shape: f32[256,2], index: 6, kind: input, shape index: {}]
  %s7 = inlined_call_operand.vmem [shape: f32[2,256], index: 7, kind: input, shape index: {}]
  %s8 = inlined_call_operand.vmem [shape: f32[4,64], index: 8, kind: input, shape index: {}]
  %s9 = inlined_call_operand.vmem [shape: f32[64,4], index: 9, kind: input, shape index: {}]
  %s10 = inlined_call_operand.vmem [shape: f32[128,256], index: 10, kind: output, shape index: {}]
  %s11 = sld [smem:[#allocation0]]
  $region73: #{_lambda_.1} parent=0
    _
  %s13 = ssub.s32 1, %s11
  %s14 = scalar_select 0, %s13, %s11
  loop: start=0, step=1, limit=4
  $region2: #{_lambda_.1} parent=0 // loop_pre_header
    _
  $region3: #{_lambda_.1} parent=0 // loop_header
    %s16 = sphi 0, %s20
    %p17 = scmp.ge.s32.totalorder %s16, 4
    %s26 = sphi 0, %s28
    %s29 = sphi 0, %s26
    %s30 = sphi 0, %s29
    %s46 = sphi 0, %s30
    %s52 = sphi 0, %s54
    %s55 = sphi 0, %s52
    %s56 = sphi 0, %s55
    %s72 = sphi 0, %s56
    %s76 = sphi 0, %s76
    %s78 = sphi 0, %s76
    %s79 = sphi 0, %s78
    %s93 = sphi 0, %s79
    %s97 = sphi 0, %s97
    %s99 = sphi 0, %s97
    %s100 = sphi 0, %s99
    %s114 = sphi 0, %s100
    %s118 = sphi 0, %s118
    %s120 = sphi 0, %s118
    %s121 = sphi 0, %s120
    %s135 = sphi 0, %s121
    %s139 = sphi 0, %s139
    %s141 = sphi 0, %s139
    %s142 = sphi 0, %s141
    %s156 = sphi 0, %s142
    %s160 = sphi 0, %s160
    %s162 = sphi 0, %s160
    %s163 = sphi 0, %s162
    %s177 = sphi 0, %s163
    %s181 = sphi 0, %s181
    %s183 = sphi 0, %s181
    %s184 = sphi 0, %s183
    %s198 = sphi 0, %s184
    %s202 = sphi 0, %s202
    %s204 = sphi 0, %s202
    %s205 = sphi 0, %s204
    %s219 = sphi 0, %s205
    %s223 = sphi 0, %s223
    %s225 = sphi 0, %s223
    %s226 = sphi 0, %s225
    %s240 = sphi 0, %s226
    %s246 = sphi 0, %s248
    %s249 = sphi 0, %s246
    %s250 = sphi 0, %s249
    %s266 = sphi 0, %s250
  $region4: #{_lambda_.1} parent=0 // loop_header_branch
    %19 = sbr.rel (%p17) target = $region8
  $region5: #{_lambda_.1} parent=0 // loop_body
    %s21 = ssub.s32 %s16, 1
    %s22 = ssub.s32 %s16, 2
    %s23 = sadd.s32 %s16, 1
    %s24 = ssub.s32 %s16, %s23
    %p25 = scmp.eq.s32.totalorder %s24, 0
    %s27 = sadd.s32 %s26, 1
    %s28 = scalar_select %p25, %s26, %s27
    %p31 = pneg %p25
    %p32 = scmp.eq.s32.totalorder %s16, 1
    %p33 = por %p31, %p32
    %p34 = scmp.ne.s32.totalorder %s26, %s29
    %p35 = scmp.eq.s32.totalorder %s16, 0
    %p36 = por %p34, %p35
    %p37 = scmp.ne.s32.totalorder %s26, %s29
    %p38 = scmp.eq.s32.totalorder %s21, 1
    %p39 = por %p37, %p38
    %p40 = scmp.ne.s32.totalorder %s29, %s30
    %p41 = scmp.eq.s32.totalorder %s21, 0
    %p42 = por %p40, %p41
    %p43 = scmp.ne.s32.totalorder %s29, %s30
    %p44 = scmp.eq.s32.totalorder %s22, 1
    %p45 = por %p43, %p44
    %p47 = scmp.ne.s32.totalorder %s30, %s46
    %p48 = scmp.eq.s32.totalorder %s22, 0
    %p49 = por %p47, %p48
    %s50 = ssub.s32 %s16, %s23
    %p51 = scmp.eq.s32.totalorder %s50, 0
    %s53 = sadd.s32 %s52, 1
    %s54 = scalar_select %p51, %s52, %s53
    %p57 = pneg %p51
    %p58 = scmp.eq.s32.totalorder %s16, 1
    %p59 = por %p57, %p58
    %p60 = scmp.ne.s32.totalorder %s52, %s55
    %p61 = scmp.eq.s32.totalorder %s16, 0
    %p62 = por %p60, %p61
    %p63 = scmp.ne.s32.totalorder %s52, %s55
    %p64 = scmp.eq.s32.totalorder %s21, 1
    %p65 = por %p63, %p64
    %p66 = scmp.ne.s32.totalorder %s55, %s56
    %p67 = scmp.eq.s32.totalorder %s21, 0
    %p68 = por %p66, %p67
    %p69 = scmp.ne.s32.totalorder %s55, %s56
    %p70 = scmp.eq.s32.totalorder %s22, 1
    %p71 = por %p69, %p70
    %p73 = scmp.ne.s32.totalorder %s56, %s72
    %p74 = scmp.eq.s32.totalorder %s22, 0
    %p75 = por %p73, %p74
    %s77 = sadd.s32 %s76, 1
    %p80 = scmp.eq.s32.totalorder %s16, 1
    %p81 = scmp.ne.s32.totalorder %s76, %s78
    %p82 = scmp.eq.s32.totalorder %s16, 0
    %p83 = por %p81, %p82
    %p84 = scmp.ne.s32.totalorder %s76, %s78
    %p85 = scmp.eq.s32.totalorder %s21, 1
    %p86 = por %p84, %p85
    %p87 = scmp.ne.s32.totalorder %s78, %s79
    %p88 = scmp.eq.s32.totalorder %s21, 0
    %p89 = por %p87, %p88
    %p90 = scmp.ne.s32.totalorder %s78, %s79
    %p91 = scmp.eq.s32.totalorder %s22, 1
    %p92 = por %p90, %p91
    %p94 = scmp.ne.s32.totalorder %s79, %s93
    %p95 = scmp.eq.s32.totalorder %s22, 0
    %p96 = por %p94, %p95
    %s98 = sadd.s32 %s97, 1
    %p101 = scmp.eq.s32.totalorder %s16, 1
    %p102 = scmp.ne.s32.totalorder %s97, %s99
    %p103 = scmp.eq.s32.totalorder %s16, 0
    %p104 = por %p102, %p103
    %p105 = scmp.ne.s32.totalorder %s97, %s99
    %p106 = scmp.eq.s32.totalorder %s21, 1
    %p107 = por %p105, %p106
    %p108 = scmp.ne.s32.totalorder %s99, %s100
    %p109 = scmp.eq.s32.totalorder %s21, 0
    %p110 = por %p108, %p109
    %p111 = scmp.ne.s32.totalorder %s99, %s100
    %p112 = scmp.eq.s32.totalorder %s22, 1
    %p113 = por %p111, %p112
    %p115 = scmp.ne.s32.totalorder %s100, %s114
    %p116 = scmp.eq.s32.totalorder %s22, 0
    %p117 = por %p115, %p116
    %s119 = sadd.s32 %s118, 1
    %p122 = scmp.eq.s32.totalorder %s16, 1
    %p123 = scmp.ne.s32.totalorder %s118, %s120
    %p124 = scmp.eq.s32.totalorder %s16, 0
    %p125 = por %p123, %p124
    %p126 = scmp.ne.s32.totalorder %s118, %s120
    %p127 = scmp.eq.s32.totalorder %s21, 1
    %p128 = por %p126, %p127
    %p129 = scmp.ne.s32.totalorder %s120, %s121
    %p130 = scmp.eq.s32.totalorder %s21, 0
    %p131 = por %p129, %p130
    %p132 = scmp.ne.s32.totalorder %s120, %s121
    %p133 = scmp.eq.s32.totalorder %s22, 1
    %p134 = por %p132, %p133
    %p136 = scmp.ne.s32.totalorder %s121, %s135
    %p137 = scmp.eq.s32.totalorder %s22, 0
    %p138 = por %p136, %p137
    %s140 = sadd.s32 %s139, 1
    %p143 = scmp.eq.s32.totalorder %s16, 1
    %p144 = scmp.ne.s32.totalorder %s139, %s141
    %p145 = scmp.eq.s32.totalorder %s16, 0
    %p146 = por %p144, %p145
    %p147 = scmp.ne.s32.totalorder %s139, %s141
    %p148 = scmp.eq.s32.totalorder %s21, 1
    %p149 = por %p147, %p148
    %p150 = scmp.ne.s32.totalorder %s141, %s142
    %p151 = scmp.eq.s32.totalorder %s21, 0
    %p152 = por %p150, %p151
    %p153 = scmp.ne.s32.totalorder %s141, %s142
    %p154 = scmp.eq.s32.totalorder %s22, 1
    %p155 = por %p153, %p154
    %p157 = scmp.ne.s32.totalorder %s142, %s156
    %p158 = scmp.eq.s32.totalorder %s22, 0
    %p159 = por %p157, %p158
    %s161 = sadd.s32 %s160, 1
    %p164 = scmp.eq.s32.totalorder %s16, 1
    %p165 = scmp.ne.s32.totalorder %s160, %s162
    %p166 = scmp.eq.s32.totalorder %s16, 0
    %p167 = por %p165, %p166
    %p168 = scmp.ne.s32.totalorder %s160, %s162
    %p169 = scmp.eq.s32.totalorder %s21, 1
    %p170 = por %p168, %p169
    %p171 = scmp.ne.s32.totalorder %s162, %s163
    %p172 = scmp.eq.s32.totalorder %s21, 0
    %p173 = por %p171, %p172
    %p174 = scmp.ne.s32.totalorder %s162, %s163
    %p175 = scmp.eq.s32.totalorder %s22, 1
    %p176 = por %p174, %p175
    %p178 = scmp.ne.s32.totalorder %s163, %s177
    %p179 = scmp.eq.s32.totalorder %s22, 0
    %p180 = por %p178, %p179
    %s182 = sadd.s32 %s181, 1
    %p185 = scmp.eq.s32.totalorder %s16, 1
    %p186 = scmp.ne.s32.totalorder %s181, %s183
    %p187 = scmp.eq.s32.totalorder %s16, 0
    %p188 = por %p186, %p187
    %p189 = scmp.ne.s32.totalorder %s181, %s183
    %p190 = scmp.eq.s32.totalorder %s21, 1
    %p191 = por %p189, %p190
    %p192 = scmp.ne.s32.totalorder %s183, %s184
    %p193 = scmp.eq.s32.totalorder %s21, 0
    %p194 = por %p192, %p193
    %p195 = scmp.ne.s32.totalorder %s183, %s184
    %p196 = scmp.eq.s32.totalorder %s22, 1
    %p197 = por %p195, %p196
    %p199 = scmp.ne.s32.totalorder %s184, %s198
    %p200 = scmp.eq.s32.totalorder %s22, 0
    %p201 = por %p199, %p200
    %s203 = sadd.s32 %s202, 1
    %p206 = scmp.eq.s32.totalorder %s16, 1
    %p207 = scmp.ne.s32.totalorder %s202, %s204
    %p208 = scmp.eq.s32.totalorder %s16, 0
    %p209 = por %p207, %p208
    %p210 = scmp.ne.s32.totalorder %s202, %s204
    %p211 = scmp.eq.s32.totalorder %s21, 1
    %p212 = por %p210, %p211
    %p213 = scmp.ne.s32.totalorder %s204, %s205
    %p214 = scmp.eq.s32.totalorder %s21, 0
    %p215 = por %p213, %p214
    %p216 = scmp.ne.s32.totalorder %s204, %s205
    %p217 = scmp.eq.s32.totalorder %s22, 1
    %p218 = por %p216, %p217
    %p220 = scmp.ne.s32.totalorder %s205, %s219
    %p221 = scmp.eq.s32.totalorder %s22, 0
    %p222 = por %p220, %p221
    %s224 = sadd.s32 %s223, 1
    %p227 = scmp.eq.s32.totalorder %s16, 1
    %p228 = scmp.ne.s32.totalorder %s223, %s225
    %p229 = scmp.eq.s32.totalorder %s16, 0
    %p230 = por %p228, %p229
    %p231 = scmp.ne.s32.totalorder %s223, %s225
    %p232 = scmp.eq.s32.totalorder %s21, 1
    %p233 = por %p231, %p232
    %p234 = scmp.ne.s32.totalorder %s225, %s226
    %p235 = scmp.eq.s32.totalorder %s21, 0
    %p236 = por %p234, %p235
    %p237 = scmp.ne.s32.totalorder %s225, %s226
    %p238 = scmp.eq.s32.totalorder %s22, 1
    %p239 = por %p237, %p238
    %p241 = scmp.ne.s32.totalorder %s226, %s240
    %p242 = scmp.eq.s32.totalorder %s22, 0
    %p243 = por %p241, %p242
    %s244 = ssub.s32 %s16, %s23
    %p245 = scmp.eq.s32.totalorder %s244, 0
    %s247 = sadd.s32 %s246, 1
    %s248 = scalar_select %p245, %s246, %s247
    %p251 = pneg %p245
    %p252 = scmp.eq.s32.totalorder %s16, 1
    %p253 = por %p251, %p252
    %p254 = scmp.ne.s32.totalorder %s246, %s249
    %p255 = scmp.eq.s32.totalorder %s16, 0
    %p256 = por %p254, %p255
    %p257 = scmp.ne.s32.totalorder %s246, %s249
    %p258 = scmp.eq.s32.totalorder %s21, 1
    %p259 = por %p257, %p258
    %p260 = scmp.ne.s32.totalorder %s249, %s250
    %p261 = scmp.eq.s32.totalorder %s21, 0
    %p262 = por %p260, %p261
    %p263 = scmp.ne.s32.totalorder %s249, %s250
    %p264 = scmp.eq.s32.totalorder %s22, 1
    %p265 = por %p263, %p264
    %p267 = scmp.ne.s32.totalorder %s250, %s266
    %p268 = scmp.eq.s32.totalorder %s22, 0
    %p269 = por %p267, %p268
    %p270 = scmp.le.s32.totalorder 1, %s16
    %p271 = scmp.lt.s32.totalorder %s16, 3
    %p272 = pnand %p270, %p271
    %p273 = pneg %p272
    // Predicated region
    $region9: #{_lambda_.1} parent=5 // pred_check
      _
    $region10: #{_lambda_.1} parent=5 // pred_check_branch
      %275 = sbr.rel (%p272) target = $region12
    $region11: #{_lambda_.1} parent=5 // pred_region
      %s276 = ssub.s32 %s16, 1
      // Predicated region
      $region13: #{_lambda_.1} parent=11 // pred_check
        %p277 = pneg %p89
      $region14: #{_lambda_.1} parent=11 // pred_check_branch
        %279 = sbr.rel (%p277) target = $region16
      $region15: #{_lambda_.1} parent=11 // pred_region
        _
      $region16: #{_lambda_.1} parent=11 // pred_fallthru
        _
      // Predicated region
      $region17: #{_lambda_.1} parent=11 // pred_check
        %p280 = pneg %p110
      $region18: #{_lambda_.1} parent=11 // pred_check_branch
        %282 = sbr.rel (%p280) target = $region20
      $region19: #{_lambda_.1} parent=11 // pred_region
        _
      $region20: #{_lambda_.1} parent=11 // pred_fallthru
        _
      // Predicated region
      $region21: #{_lambda_.1} parent=11 // pred_check
        %p283 = pneg %p131
      $region22: #{_lambda_.1} parent=11 // pred_check_branch
        %285 = sbr.rel (%p283) target = $region24
      $region23: #{_lambda_.1} parent=11 // pred_region
        _
      $region24: #{_lambda_.1} parent=11 // pred_fallthru
        _
      // Predicated region
      $region25: #{_lambda_.1} parent=11 // pred_check
        %p286 = pneg %p152
      $region26: #{_lambda_.1} parent=11 // pred_check_branch
        %288 = sbr.rel (%p286) target = $region28
      $region27: #{_lambda_.1} parent=11 // pred_region
        _
      $region28: #{_lambda_.1} parent=11 // pred_fallthru
        _
      // Predicated region
      $region29: #{_lambda_.1} parent=11 // pred_check
        %p289 = pneg %p173
      $region30: #{_lambda_.1} parent=11 // pred_check_branch
        %291 = sbr.rel (%p289) target = $region32
      $region31: #{_lambda_.1} parent=11 // pred_region
        _
      $region32: #{_lambda_.1} parent=11 // pred_fallthru
        _
      // Predicated region
      $region33: #{_lambda_.1} parent=11 // pred_check
        %p292 = pneg %p194
      $region34: #{_lambda_.1} parent=11 // pred_check_branch
        %294 = sbr.rel (%p292) target = $region36
      $region35: #{_lambda_.1} parent=11 // pred_region
        _
      $region36: #{_lambda_.1} parent=11 // pred_fallthru
        _
      // Predicated region
      $region37: #{_lambda_.1} parent=11 // pred_check
        %p295 = pneg %p215
      $region38: #{_lambda_.1} parent=11 // pred_check_branch
        %297 = sbr.rel (%p295) target = $region40
      $region39: #{_lambda_.1} parent=11 // pred_region
        _
      $region40: #{_lambda_.1} parent=11 // pred_fallthru
        _
      // Predicated region
      $region41: #{_lambda_.1} parent=11 // pred_check
        %p298 = pneg %p236
      $region42: #{_lambda_.1} parent=11 // pred_check_branch
        %300 = sbr.rel (%p298) target = $region44
      $region43: #{_lambda_.1} parent=11 // pred_region
        _
      $region44: #{_lambda_.1} parent=11 // pred_fallthru
        _
    $region12: #{_lambda_.1} parent=5 // pred_fallthru
      _
    %p301 = scmp.lt.s32.totalorder %s16, 2
    // Predicated region
    $region45: #{_lambda_.1} parent=5 // pred_check
      %p302 = pneg %p301
    $region46: #{_lambda_.1} parent=5 // pred_check_branch
      %304 = sbr.rel (%p302) target = $region48
    $region47: #{_lambda_.1} parent=5 // pred_region
      // Predicated region
      $region49: #{_lambda_.1} parent=47 // pred_check
        %p305 = pneg %p36
      $region50: #{_lambda_.1} parent=47 // pred_check_branch
        %307 = sbr.rel (%p305) target = $region52
      $region51: #{_lambda_.1} parent=47 // pred_region
        %s308 = smul.u32 4, %s16
        %p309 = scmp.lt.s32.totalorder %s308, 7
        %s310 = scalar_select %p309, %s308, 7
        %s311 = smul.addr %s310, 4
        %s312 = scalar_lea.vmem %s0, %s311
        %s313 = smul.u32 4, %s16
      $region52: #{_lambda_.1} parent=47 // pred_fallthru
        _
      // Predicated region
      $region53: #{_lambda_.1} parent=47 // pred_check
        %p314 = pneg %p62
      $region54: #{_lambda_.1} parent=47 // pred_check_branch
        %316 = sbr.rel (%p314) target = $region56
      $region55: #{_lambda_.1} parent=47 // pred_region
        %s317 = smul.u32 8, %s16
        %p318 = scmp.lt.s32.totalorder %s317, 15
        %s319 = scalar_select %p318, %s317, 15
        %s320 = smul.addr %s319, 4
        %s321 = scalar_lea.vmem %s1, %s320
        %s322 = smul.u32 8, %s16
      $region56: #{_lambda_.1} parent=47 // pred_fallthru
        _
    $region48: #{_lambda_.1} parent=5 // pred_fallthru
      _
    %p323 = scmp.le.s32.totalorder 1, %s16
    %p324 = scmp.lt.s32.totalorder %s16, 3
    %p325 = pnand %p323, %p324
    %p326 = pneg %p325
    // Predicated region
    $region57: #{_lambda_.1} parent=5 // pred_check
      _
    $region58: #{_lambda_.1} parent=5 // pred_check_branch
      %328 = sbr.rel (%p325) target = $region60
    $region59: #{_lambda_.1} parent=5 // pred_region
      %s329 = ssub.s32 %s16, 1
      %s330 = smul.u32 4, %s21
      %p331 = scmp.lt.s32.totalorder %s330, 7
      %s332 = scalar_select %p331, %s330, 7
      %s333 = smul.addr %s332, 4
      %s334 = scalar_lea.vmem %s0, %s333
      %p335 = pneg %p42
      %p336 = pneg %p39
      %s337 = smul.u32 8, %s21
      %p338 = scmp.lt.s32.totalorder %s337, 15
      %s339 = scalar_select %p338, %s337, 15
      %s340 = smul.addr %s339, 4
      %s341 = scalar_lea.vmem %s1, %s340
      %p342 = pneg %p68
      %p343 = pneg %p65
      %p344 = pneg %p89
      %p345 = pneg %p86
      %p346 = pneg %p110
      %p347 = pneg %p107
      %p348 = pneg %p131
      %p349 = pneg %p128
      %p350 = pneg %p152
      %p351 = pneg %p149
      %p352 = pneg %p173
      %p353 = pneg %p170
      %p354 = pneg %p194
      %p355 = pneg %p191
      %p356 = pneg %p215
      %p357 = pneg %p212
      %p358 = pneg %p236
      %p359 = pneg %p233
      %p360 = pneg %p262
      %p361 = pneg %p259
      %s362 = smul.u32 8, %s21
      %p363 = scmp.lt.s32.totalorder %s362, 15
      %s364 = scalar_select %p363, %s362, 15
      %s365 = smul.addr %s364, 2
      %s366 = smul.addr %s365, 8
      %s367 = scalar_lea.vmem %s10, %s366
      %s368 = smul.u32 4, %s21
      %p369 = scmp.lt.s32.totalorder %s368, 7
      %s370 = scalar_select %p369, %s368, 7
      %s371 = smul.addr %s370, 4
      %s372 = scalar_lea.vmem %s0, %s371
      %s373 = smul.u32 4, %s21
      %s374 = smul.u32 8, %s21
      %p375 = scmp.lt.s32.totalorder %s374, 15
      %s376 = scalar_select %p375, %s374, 15
      %s377 = smul.addr %s376, 4
      %s378 = scalar_lea.vmem %s1, %s377
      %s379 = smul.u32 8, %s21
      %s380 = smul.u32 8, %s21
      %p381 = scmp.lt.s32.totalorder %s380, 15
      %s382 = scalar_select %p381, %s380, 15
      %s383 = smul.addr %s382, 2
      %s384 = smul.addr %s383, 8
      %s385 = scalar_lea.vmem %s10, %s384
      %s386 = smul.u32 8, %s21
      %v388 = vld [vmem:[%s372] sm:$0xf]
      %v389 = vld [vmem:[%s372 + $0x4] sm:$0xf]
      %v390 = vld [vmem:[%s372 + $0x8] sm:$0xf]
      %v391 = vld [vmem:[%s372 + $0xc] sm:$0xf]
      %v392 = vld [vmem:[%s2] sm:$0xff]
      %v393 = vld [vmem:[%s2 + $0x8] sm:$0xff]
      %v394 = vld [vmem:[%s2 + $0x10] sm:$0xff]
      %v395 = vld [vmem:[%s2 + $0x18] sm:$0xff]
      %v396 = vld [vmem:[%s2 + $0x20] sm:$0xff]
      %v397 = vld [vmem:[%s2 + $0x28] sm:$0xff]
      %v398 = vld [vmem:[%s2 + $0x30] sm:$0xff]
      %v399 = vld [vmem:[%s2 + $0x38] sm:$0xff]
      %v400 = vld [vmem:[%s2 + $0x40] sm:$0xff]
      %v401 = vld [vmem:[%s2 + $0x48] sm:$0xff]
      %v402 = vld [vmem:[%s2 + $0x50] sm:$0xff]
      %v403 = vld [vmem:[%s2 + $0x58] sm:$0xff]
      %v404 = vld [vmem:[%s2 + $0x60] sm:$0xff]
      %v405 = vld [vmem:[%s2 + $0x68] sm:$0xff]
      %v406 = vld [vmem:[%s2 + $0x70] sm:$0xff]
      %v407 = vld [vmem:[%s2 + $0x78] sm:$0xff]
      %v412 = vunpack.c.l.b16 %v388
      %v413 = vunpack.c.l.b16 %v389
      %v414 = vunpack.c.l.b16 %v390
      %v415 = vunpack.c.l.b16 %v391
      %v416 = vpack.c.b16 %v413, %v412
      %v417 = vpack.c.b16 %v415, %v414
      %v436 = vunpack.c.l.b16 %v392
      %v437 = vunpack.c.h.b16 %v392
      %v438 = vunpack.c.l.b16 %v393
      %v439 = vunpack.c.h.b16 %v393
      %v440 = vunpack.c.l.b16 %v394
      %v441 = vunpack.c.h.b16 %v394
      %v442 = vunpack.c.l.b16 %v395
      %v443 = vunpack.c.h.b16 %v395
      %v444 = vunpack.c.l.b16 %v396
      %v445 = vunpack.c.h.b16 %v396
      %v446 = vunpack.c.l.b16 %v397
      %v447 = vunpack.c.h.b16 %v397
      %v448 = vunpack.c.l.b16 %v398
      %v449 = vunpack.c.h.b16 %v398
      %v450 = vunpack.c.l.b16 %v399
      %v451 = vunpack.c.h.b16 %v399
      %v452 = vunpack.c.l.b16 %v400
      %v453 = vunpack.c.h.b16 %v400
      %v454 = vunpack.c.l.b16 %v401
      %v455 = vunpack.c.h.b16 %v401
      %v456 = vunpack.c.l.b16 %v402
      %v457 = vunpack.c.h.b16 %v402
      %v458 = vunpack.c.l.b16 %v403
      %v459 = vunpack.c.h.b16 %v403
      %v460 = vunpack.c.l.b16 %v404
      %v461 = vunpack.c.h.b16 %v404
      %v462 = vunpack.c.l.b16 %v405
      %v463 = vunpack.c.h.b16 %v405
      %v464 = vunpack.c.l.b16 %v406
      %v465 = vunpack.c.h.b16 %v406
      %v466 = vunpack.c.l.b16 %v407
      %v467 = vunpack.c.h.b16 %v407
      %v468 = vpack.c.b16 %v438, %v436
      %v469 = vpack.c.b16 %v439, %v437
      %v470 = vpack.c.b16 %v442, %v440
      %v471 = vpack.c.b16 %v443, %v441
      %v472 = vpack.c.b16 %v446, %v444
      %v473 = vpack.c.b16 %v447, %v445
      %v474 = vpack.c.b16 %v450, %v448
      %v475 = vpack.c.b16 %v451, %v449
      %v476 = vpack.c.b16 %v454, %v452
      %v477 = vpack.c.b16 %v455, %v453
      %v478 = vpack.c.b16 %v458, %v456
      %v479 = vpack.c.b16 %v459, %v457
      %v480 = vpack.c.b16 %v462, %v460
      %v481 = vpack.c.b16 %v463, %v461
      %v482 = vpack.c.b16 %v466, %v464
      %v483 = vpack.c.b16 %v467, %v465
      %500 = vmatprep.subr.bf16.mxu0 %v469
      %501 = vmatpush1.bf16.msra.mxu0 %v468
      %502 = vmatprep.subr.bf16.mxu0 %v471
      %503 = vmatpush1.bf16.msra.mxu0 %v470
      %504 = vmatprep.subr.bf16.mxu0 %v473
      %505 = vmatpush1.bf16.msra.mxu0 %v472
      %506 = vmatprep.subr.bf16.mxu0 %v475
      %507 = vmatpush1.bf16.msra.mxu0 %v474
      %508 = vmatprep.subr.bf16.mxu0 %v477
      %509 = vmatpush1.bf16.msra.mxu0 %v476
      %510 = vmatprep.subr.bf16.mxu0 %v479
      %511 = vmatpush1.bf16.msra.mxu0 %v478
      %512 = vmatprep.subr.bf16.mxu0 %v481
      %513 = vmatpush1.bf16.msra.mxu0 %v480
      %514 = vmatprep.subr.bf16.mxu0 %v483
      %515 = vmatpush1.bf16.msra.mxu0 %v482
      %516 = vmatprep.subr.bf16.mxu0 0
      %517 = vmatpush1.bf16.msra.mxu0 0
      %518 = vmatprep.subr.bf16.mxu0 0
      %519 = vmatpush1.bf16.msra.mxu0 0
      %520 = vmatprep.subr.bf16.mxu0 0
      %521 = vmatpush1.bf16.msra.mxu0 0
      %522 = vmatprep.subr.bf16.mxu0 0
      %523 = vmatpush1.bf16.msra.mxu0 0
      %524 = vmatprep.subr.bf16.mxu0 0
      %525 = vmatpush1.bf16.msra.mxu0 0
      %526 = vmatprep.subr.bf16.mxu0 0
      %527 = vmatpush1.bf16.msra.mxu0 0
      %528 = vmatprep.subr.bf16.mxu0 0
      %529 = vmatpush1.bf16.msra.mxu0 0
      %530 = vmatprep.subr.bf16.mxu0 0
      %531 = vmatpush1.bf16.msra.mxu0 0
      %532 = vmatprep.mubr.bf16.mxu0 0
      %533 = vmatmul.mubr.bf16.gmra.mrb[0].mxu0 %v416
      %v534 = vpop.f32.mrb[0].mxu0
      %v535 = vadd.f32 0.0, %v534
      %v536 = vpop.f32.mrb[0].mxu0
      %v537 = vadd.f32 0.0, %v536
      %v538 = vpop.f32.mrb[0].mxu0
      %v539 = vadd.f32 0.0, %v538
      %v540 = vpop.f32.mrb[0].mxu0
      %v541 = vadd.f32 0.0, %v540
      %542 = vmatprep.mubr.bf16.mxu0 0
      %543 = vmatmul.mubr.bf16.gmra.mrb[0].mxu0 %v417
      %v544 = vpop.f32.mrb[0].mxu0
      %v545 = vadd.f32 0.0, %v544
      %v546 = vpop.f32.mrb[0].mxu0
      %v547 = vadd.f32 0.0, %v546
      %v548 = vpop.f32.mrb[0].mxu0
      %v549 = vadd.f32 0.0, %v548
      %v550 = vpop.f32.mrb[0].mxu0
      %v551 = vadd.f32 0.0, %v550
      %552 = vdwg.mxu0
      %v561 = vcombine.low %v535, %v537
      %v562 = vcombine.high %v535, %v537
      %v563 = vcombine.low %v539, %v541
      %v564 = vcombine.high %v539, %v541
      %v565 = vcombine.low %v545, %v547
      %v566 = vcombine.high %v545, %v547
      %v567 = vcombine.low %v549, %v551
      %v568 = vcombine.high %v549, %v551
      %v578 = vunpack.c.l.s4 1935823168
      %v579 = vunpack.c.0.s8 %v578
      %v580 = vlaneseq
      %v581 = vshrl.u32 %v580, 7
      %v582 = vsub.s32 %v579, %v581
      %v583 = vrot.slane %v561, %v582
      %v585 = vunpack.c.l.s4 1935823168
      %v586 = vunpack.c.0.s8 %v585
      %v587 = vlaneseq
      %v588 = vshrl.u32 %v587, 7
      %v589 = vsub.s32 %v586, %v588
      %v590 = vrot.slane %v562, %v589
      %v592 = vunpack.c.l.s4 1935823168
      %v593 = vunpack.c.0.s8 %v592
      %v594 = vlaneseq
      %v595 = vshrl.u32 %v594, 7
      %v596 = vsub.s32 %v593, %v595
      %v597 = vrot.slane %v563, %v596
      %v599 = vunpack.c.l.s4 1935823168
      %v600 = vunpack.c.0.s8 %v599
      %v601 = vlaneseq
      %v602 = vshrl.u32 %v601, 7
      %v603 = vsub.s32 %v600, %v602
      %v604 = vrot.slane %v564, %v603
      %v606 = vunpack.c.l.s4 1935823168
      %v607 = vunpack.c.0.s8 %v606
      %v608 = vlaneseq
      %v609 = vshrl.u32 %v608, 7
      %v610 = vsub.s32 %v607, %v609
      %v611 = vrot.slane %v565, %v610
      %v613 = vunpack.c.l.s4 1935823168
      %v614 = vunpack.c.0.s8 %v613
      %v615 = vlaneseq
      %v616 = vshrl.u32 %v615, 7
      %v617 = vsub.s32 %v614, %v616
      %v618 = vrot.slane %v566, %v617
      %v620 = vunpack.c.l.s4 1935823168
      %v621 = vunpack.c.0.s8 %v620
      %v622 = vlaneseq
      %v623 = vshrl.u32 %v622, 7
      %v624 = vsub.s32 %v621, %v623
      %v625 = vrot.slane %v567, %v624
      %v627 = vunpack.c.l.s4 1935823168
      %v628 = vunpack.c.0.s8 %v627
      %v629 = vlaneseq
      %v630 = vshrl.u32 %v629, 7
      %v631 = vsub.s32 %v628, %v630
      %v632 = vrot.slane %v568, %v631
      %v633 = vld [vmem:[%s5] ss:$0 sm:$0xff]
      %v634 = vadd.f32 %v583, %v633
      %v635 = vadd.f32 %v590, %v633
      %v636 = vadd.f32 %v597, %v633
      %v637 = vadd.f32 %v604, %v633
      %v638 = vadd.f32 %v611, %v633
      %v639 = vadd.f32 %v618, %v633
      %v640 = vadd.f32 %v625, %v633
      %v641 = vadd.f32 %v632, %v633
      %v642 = vld [vmem:[%s378] sm:$0xf]
      %v643 = vld [vmem:[%s378 + $0x4] sm:$0xf]
      %v644 = vld [vmem:[%s378 + $0x8] sm:$0xf]
      %v645 = vld [vmem:[%s378 + $0xc] sm:$0xf]
      %v646 = vld [vmem:[%s378 + $0x10] sm:$0xf]
      %v647 = vld [vmem:[%s378 + $0x14] sm:$0xf]
      %v648 = vld [vmem:[%s378 + $0x18] sm:$0xf]
      %v649 = vld [vmem:[%s378 + $0x1c] sm:$0xf]
      %v650 = vunpack.c.l.bf16 %v642
      %v651 = vunpack.c.l.bf16 %v643
      %v652 = vunpack.c.l.bf16 %v644
      %v653 = vunpack.c.l.bf16 %v645
      %v654 = vunpack.c.l.bf16 %v646
      %v655 = vunpack.c.l.bf16 %v647
      %v656 = vunpack.c.l.bf16 %v648
      %v657 = vunpack.c.l.bf16 %v649
      %v658 = vlaneseq
      %v659 = vshrl.u32 %v658, 7
      %v660 = vadd.s32 %v659, 8
      %v661 = vadd.s32 %v659, 16
      %v662 = vadd.s32 %v659, 24
      %v663 = vadd.s32 %v659, 32
      %v664 = vadd.s32 %v659, 40
      %v665 = vadd.s32 %v659, 48
      %v666 = vadd.s32 %v659, 56
      %vm667 = vcmp.lt.s32.totalorder %v659, 0
      %v668 = vsub.s32 0, %v659
      %v669 = vsel %vm667, %v668, %v659
      %v670 = vshrl.u32 %v669, 4
      %v671 = vand.u32 %v669, 15
      %v672 = vsub.s32 0, %v671
      %v673 = vsel %vm667, %v672, %v671
      %vm674 = vcmp.lt.s32.totalorder %v660, 0
      %v675 = vsub.s32 0, %v660
      %v676 = vsel %vm674, %v675, %v660
      %v677 = vshrl.u32 %v676, 4
      %v678 = vand.u32 %v676, 15
      %v679 = vsub.s32 0, %v678
      %v680 = vsel %vm674, %v679, %v678
      %vm681 = vcmp.lt.s32.totalorder %v661, 0
      %v682 = vsub.s32 0, %v661
      %v683 = vsel %vm681, %v682, %v661
      %v684 = vshrl.u32 %v683, 4
      %v685 = vand.u32 %v683, 15
      %v686 = vsub.s32 0, %v685
      %v687 = vsel %vm681, %v686, %v685
      %vm688 = vcmp.lt.s32.totalorder %v662, 0
      %v689 = vsub.s32 0, %v662
      %v690 = vsel %vm688, %v689, %v662
      %v691 = vshrl.u32 %v690, 4
      %v692 = vand.u32 %v690, 15
      %v693 = vsub.s32 0, %v692
      %v694 = vsel %vm688, %v693, %v692
      %vm695 = vcmp.lt.s32.totalorder %v663, 0
      %v696 = vsub.s32 0, %v663
      %v697 = vsel %vm695, %v696, %v663
      %v698 = vshrl.u32 %v697, 4
      %v699 = vand.u32 %v697, 15
      %v700 = vsub.s32 0, %v699
      %v701 = vsel %vm695, %v700, %v699
      %vm702 = vcmp.lt.s32.totalorder %v664, 0
      %v703 = vsub.s32 0, %v664
      %v704 = vsel %vm702, %v703, %v664
      %v705 = vshrl.u32 %v704, 4
      %v706 = vand.u32 %v704, 15
      %v707 = vsub.s32 0, %v706
      %v708 = vsel %vm702, %v707, %v706
      %vm709 = vcmp.lt.s32.totalorder %v665, 0
      %v710 = vsub.s32 0, %v665
      %v711 = vsel %vm709, %v710, %v665
      %v712 = vshrl.u32 %v711, 4
      %v713 = vand.u32 %v711, 15
      %v714 = vsub.s32 0, %v713
      %v715 = vsel %vm709, %v714, %v713
      %vm716 = vcmp.lt.s32.totalorder %v666, 0
      %v717 = vsub.s32 0, %v666
      %v718 = vsel %vm716, %v717, %v666
      %v719 = vshrl.u32 %v718, 4
      %v720 = vand.u32 %v718, 15
      %v721 = vsub.s32 0, %v720
      %v722 = vsel %vm716, %v721, %v720
      %vm723 = vcmp.ne.s32.totalorder %v673, 0
      %vm724 = vcmp.ne.s32.totalorder %v680, 0
      %vm725 = vcmp.ne.s32.totalorder %v687, 0
      %vm726 = vcmp.ne.s32.totalorder %v694, 0
      %vm727 = vcmp.ne.s32.totalorder %v701, 0
      %vm728 = vcmp.ne.s32.totalorder %v708, 0
      %vm729 = vcmp.ne.s32.totalorder %v715, 0
      %vm730 = vcmp.ne.s32.totalorder %v722, 0
      %vm731 = vcmp.lt.s32.totalorder %v673, 0
      %vm732 = vcmp.lt.s32.totalorder %v680, 0
      %vm733 = vcmp.lt.s32.totalorder %v687, 0
      %vm734 = vcmp.lt.s32.totalorder %v694, 0
      %vm735 = vcmp.lt.s32.totalorder %v701, 0
      %vm736 = vcmp.lt.s32.totalorder %v708, 0
      %vm737 = vcmp.lt.s32.totalorder %v715, 0
      %vm738 = vcmp.lt.s32.totalorder %v722, 0
      %vm739 = vmand %vm731, %vm723
      %vm740 = vmand %vm732, %vm724
      %vm741 = vmand %vm733, %vm725
      %vm742 = vmand %vm734, %vm726
      %vm743 = vmand %vm735, %vm727
      %vm744 = vmand %vm736, %vm728
      %vm745 = vmand %vm737, %vm729
      %vm746 = vmand %vm738, %vm730
      %v747 = vadd.s32 %v673, 16
      %v748 = vadd.s32 %v680, 16
      %v749 = vadd.s32 %v687, 16
      %v750 = vadd.s32 %v694, 16
      %v751 = vadd.s32 %v701, 16
      %v752 = vadd.s32 %v708, 16
      %v753 = vadd.s32 %v715, 16
      %v754 = vadd.s32 %v722, 16
      %v755 = vsel %vm739, %v747, %v673
      %v756 = vsel %vm740, %v748, %v680
      %v757 = vsel %vm741, %v749, %v687
      %v758 = vsel %vm742, %v750, %v694
      %v759 = vsel %vm743, %v751, %v701
      %v760 = vsel %vm744, %v752, %v708
      %v761 = vsel %vm745, %v753, %v715
      %v762 = vsel %vm746, %v754, %v722
      %vm763 = vcmp.ne.s32.totalorder %v755, 0
      %vm764 = vcmp.ne.s32.totalorder %v756, 0
      %vm765 = vcmp.ne.s32.totalorder %v757, 0
      %vm766 = vcmp.ne.s32.totalorder %v758, 0
      %vm767 = vcmp.ne.s32.totalorder %v759, 0
      %vm768 = vcmp.ne.s32.totalorder %v760, 0
      %vm769 = vcmp.ne.s32.totalorder %v761, 0
      %vm770 = vcmp.ne.s32.totalorder %v762, 0
      %vm771 = vcmp.ne.s32.totalorder %v755, 15
      %vm772 = vcmp.ne.s32.totalorder %v756, 15
      %vm773 = vcmp.ne.s32.totalorder %v757, 15
      %vm774 = vcmp.ne.s32.totalorder %v758, 15
      %vm775 = vcmp.ne.s32.totalorder %v759, 15
      %vm776 = vcmp.ne.s32.totalorder %v760, 15
      %vm777 = vcmp.ne.s32.totalorder %v761, 15
      %vm778 = vcmp.ne.s32.totalorder %v762, 15
      %s779 = scalar_lea.vmem %s5, 1
      %v780 = vld [vmem:[%s779] ss:$8 sm:$0x3]
      %v781 = vrot.slane %v634, 7
      %v782 = vrot.slane %v650, 7
      %v783 = vrot.slane %v635, 7
      %v784 = vrot.slane %v651, 7
      %v785 = vrot.slane %v636, 7
      %v786 = vrot.slane %v652, 7
      %v787 = vrot.slane %v637, 7
      %v788 = vrot.slane %v653, 7
      %v789 = vrot.slane %v638, 7
      %v790 = vrot.slane %v654, 7
      %v791 = vrot.slane %v639, 7
      %v792 = vrot.slane %v655, 7
      %v793 = vrot.slane %v640, 7
      %v794 = vrot.slane %v656, 7
      %v795 = vrot.slane %v641, 7
      %v796 = vrot.slane %v657, 7
      %vm797 = vcmp.lt.s32.totalorder %v659, 1
      %v798 = vsel %vm797, %v793, %v795
      %v799 = vsel %vm797, %v794, %v796
      %v800 = vsel %vm797, %v791, %v793
      %v801 = vsel %vm797, %v792, %v794
      %v802 = vsel %vm797, %v789, %v791
      %v803 = vsel %vm797, %v790, %v792
      %v804 = vsel %vm797, %v787, %v789
      %v805 = vsel %vm797, %v788, %v790
      %v806 = vsel %vm797, %v785, %v787
      %v807 = vsel %vm797, %v786, %v788
      %v808 = vsel %vm797, %v783, %v785
      %v809 = vsel %vm797, %v784, %v786
      %v810 = vsel %vm797, %v781, %v783
      %v811 = vsel %vm797, %v782, %v784
      %v812 = vsel %vm797, %v795, %v781
      %v813 = vsel %vm797, %v796, %v782
      %v814 = vsel %vm763, 1, 0
      %v815 = vsel %vm764, 1, 0
      %v816 = vsel %vm765, 1, 0
      %v817 = vsel %vm766, 1, 0
      %v818 = vsel %vm767, 1, 0
      %v819 = vsel %vm768, 1, 0
      %v820 = vsel %vm769, 1, 0
      %v821 = vsel %vm770, 1, 0
      %vm822 = vcmp.eq.s32.totalorder %v814, 1
      %vm823 = vcmp.eq.s32.totalorder %v815, 1
      %vm824 = vcmp.eq.s32.totalorder %v816, 1
      %vm825 = vcmp.eq.s32.totalorder %v817, 1
      %vm826 = vcmp.eq.s32.totalorder %v818, 1
      %vm827 = vcmp.eq.s32.totalorder %v819, 1
      %vm828 = vcmp.eq.s32.totalorder %v820, 1
      %vm829 = vcmp.eq.s32.totalorder %v821, 1
      %v830 = vsel %vm822, %v812, 0.0
      %v831 = vsel %vm822, %v813, 0.0
      %v832 = vsel %vm823, %v810, 0.0
      %v833 = vsel %vm823, %v811, 0.0
      %v834 = vsel %vm824, %v808, 0.0
      %v835 = vsel %vm824, %v809, 0.0
      %v836 = vsel %vm825, %v806, 0.0
      %v837 = vsel %vm825, %v807, 0.0
      %v838 = vsel %vm826, %v804, 0.0
      %v839 = vsel %vm826, %v805, 0.0
      %v840 = vsel %vm827, %v802, 0.0
      %v841 = vsel %vm827, %v803, 0.0
      %v842 = vsel %vm828, %v800, 0.0
      %v843 = vsel %vm828, %v801, 0.0
      %v844 = vsel %vm829, %v798, 0.0
      %v845 = vsel %vm829, %v799, 0.0
      %v846 = vrot.slane %v634, 1
      %v847 = vrot.slane %v650, 1
      %v848 = vrot.slane %v635, 1
      %v849 = vrot.slane %v651, 1
      %v850 = vrot.slane %v636, 1
      %v851 = vrot.slane %v652, 1
      %v852 = vrot.slane %v637, 1
      %v853 = vrot.slane %v653, 1
      %v854 = vrot.slane %v638, 1
      %v855 = vrot.slane %v654, 1
      %v856 = vrot.slane %v639, 1
      %v857 = vrot.slane %v655, 1
      %v858 = vrot.slane %v640, 1
      %v859 = vrot.slane %v656, 1
      %v860 = vrot.slane %v641, 1
      %v861 = vrot.slane %v657, 1
      %vm862 = vcmp.lt.s32.totalorder %v659, 7
      %v863 = vsel %vm862, %v858, %v860
      %v864 = vsel %vm862, %v859, %v861
      %v865 = vsel %vm862, %v856, %v858
      %v866 = vsel %vm862, %v857, %v859
      %v867 = vsel %vm862, %v854, %v856
      %v868 = vsel %vm862, %v855, %v857
      %v869 = vsel %vm862, %v852, %v854
      %v870 = vsel %vm862, %v853, %v855
      %v871 = vsel %vm862, %v850, %v852
      %v872 = vsel %vm862, %v851, %v853
      %v873 = vsel %vm862, %v848, %v850
      %v874 = vsel %vm862, %v849, %v851
      %v875 = vsel %vm862, %v846, %v848
      %v876 = vsel %vm862, %v847, %v849
      %v877 = vsel %vm862, %v860, %v846
      %v878 = vsel %vm862, %v861, %v847
      %v879 = vsel %vm771, 1, 0
      %v880 = vsel %vm772, 1, 0
      %v881 = vsel %vm773, 1, 0
      %v882 = vsel %vm774, 1, 0
      %v883 = vsel %vm775, 1, 0
      %v884 = vsel %vm776, 1, 0
      %v885 = vsel %vm777, 1, 0
      %v886 = vsel %vm778, 1, 0
      %vm887 = vcmp.eq.s32.totalorder %v879, 1
      %vm888 = vcmp.eq.s32.totalorder %v880, 1
      %vm889 = vcmp.eq.s32.totalorder %v881, 1
      %vm890 = vcmp.eq.s32.totalorder %v882, 1
      %vm891 = vcmp.eq.s32.totalorder %v883, 1
      %vm892 = vcmp.eq.s32.totalorder %v884, 1
      %vm893 = vcmp.eq.s32.totalorder %v885, 1
      %vm894 = vcmp.eq.s32.totalorder %v886, 1
      %v895 = vsel %vm887, %v875, 0.0
      %v896 = vsel %vm887, %v876, 0.0
      %v897 = vsel %vm888, %v873, 0.0
      %v898 = vsel %vm888, %v874, 0.0
      %v899 = vsel %vm889, %v871, 0.0
      %v900 = vsel %vm889, %v872, 0.0
      %v901 = vsel %vm890, %v869, 0.0
      %v902 = vsel %vm890, %v870, 0.0
      %v903 = vsel %vm891, %v867, 0.0
      %v904 = vsel %vm891, %v868, 0.0
      %v905 = vsel %vm892, %v865, 0.0
      %v906 = vsel %vm892, %v866, 0.0
      %v907 = vsel %vm893, %v863, 0.0
      %v908 = vsel %vm893, %v864, 0.0
      %v909 = vsel %vm894, %v877, 0.0
      %v910 = vsel %vm894, %v878, 0.0
      %v911 = vpack.c.bf16 %v832, %v830
      %v912 = vpack.c.bf16 %v833, %v831
      %v913 = vpack.c.bf16 %v836, %v834
      %v914 = vpack.c.bf16 %v837, %v835
      %v915 = vpack.c.bf16 %v840, %v838
      %v916 = vpack.c.bf16 %v841, %v839
      %v917 = vpack.c.bf16 %v844, %v842
      %v918 = vpack.c.bf16 %v845, %v843
      %v919 = vld [vmem:[%s3] sm:$0xff]
      %v920 = vld [vmem:[%s3 + $0x8] sm:$0xff]
      %v921 = vld [vmem:[%s3 + $0x10] sm:$0xff]
      %v922 = vld [vmem:[%s3 + $0x18] sm:$0xff]
      %v923 = vld [vmem:[%s3 + $0x20] sm:$0xff]
      %v924 = vld [vmem:[%s3 + $0x28] sm:$0xff]
      %v925 = vld [vmem:[%s3 + $0x30] sm:$0xff]
      %v926 = vld [vmem:[%s3 + $0x38] sm:$0xff]
      %v927 = vld [vmem:[%s3 + $0x40] sm:$0xff]
      %v928 = vld [vmem:[%s3 + $0x48] sm:$0xff]
      %v929 = vld [vmem:[%s3 + $0x50] sm:$0xff]
      %v930 = vld [vmem:[%s3 + $0x58] sm:$0xff]
      %v931 = vld [vmem:[%s3 + $0x60] sm:$0xff]
      %v932 = vld [vmem:[%s3 + $0x68] sm:$0xff]
      %v933 = vld [vmem:[%s3 + $0x70] sm:$0xff]
      %v934 = vld [vmem:[%s3 + $0x78] sm:$0xff]
      %v935 = vld [vmem:[%s3 + $0x80] sm:$0xff]
      %v936 = vld [vmem:[%s3 + $0x88] sm:$0xff]
      %v937 = vld [vmem:[%s3 + $0x90] sm:$0xff]
      %v938 = vld [vmem:[%s3 + $0x98] sm:$0xff]
      %v939 = vld [vmem:[%s3 + $0xa0] sm:$0xff]
      %v940 = vld [vmem:[%s3 + $0xa8] sm:$0xff]
      %v941 = vld [vmem:[%s3 + $0xb0] sm:$0xff]
      %v942 = vld [vmem:[%s3 + $0xb8] sm:$0xff]
      %v943 = vld [vmem:[%s3 + $0xc0] sm:$0xff]
      %v944 = vld [vmem:[%s3 + $0xc8] sm:$0xff]
      %v945 = vld [vmem:[%s3 + $0xd0] sm:$0xff]
      %v946 = vld [vmem:[%s3 + $0xd8] sm:$0xff]
      %v947 = vld [vmem:[%s3 + $0xe0] sm:$0xff]
      %v948 = vld [vmem:[%s3 + $0xe8] sm:$0xff]
      %v949 = vld [vmem:[%s3 + $0xf0] sm:$0xff]
      %v950 = vld [vmem:[%s3 + $0xf8] sm:$0xff]
      %v951 = vpack.c.bf16 %v635, %v634
      %v952 = vpack.c.bf16 %v651, %v650
      %v953 = vpack.c.bf16 %v637, %v636
      %v954 = vpack.c.bf16 %v653, %v652
      %v955 = vpack.c.bf16 %v639, %v638
      %v956 = vpack.c.bf16 %v655, %v654
      %v957 = vpack.c.bf16 %v641, %v640
      %v958 = vpack.c.bf16 %v657, %v656
      %s959 = scalar_lea.vmem %s3, 256
      %v960 = vld [vmem:[%s959] sm:$0xff]
      %v961 = vld [vmem:[%s959 + $0x8] sm:$0xff]
      %v962 = vld [vmem:[%s959 + $0x10] sm:$0xff]
      %v963 = vld [vmem:[%s959 + $0x18] sm:$0xff]
      %v964 = vld [vmem:[%s959 + $0x20] sm:$0xff]
      %v965 = vld [vmem:[%s959 + $0x28] sm:$0xff]
      %v966 = vld [vmem:[%s959 + $0x30] sm:$0xff]
      %v967 = vld [vmem:[%s959 + $0x38] sm:$0xff]
      %v968 = vld [vmem:[%s959 + $0x40] sm:$0xff]
      %v969 = vld [vmem:[%s959 + $0x48] sm:$0xff]
      %v970 = vld [vmem:[%s959 + $0x50] sm:$0xff]
      %v971 = vld [vmem:[%s959 + $0x58] sm:$0xff]
      %v972 = vld [vmem:[%s959 + $0x60] sm:$0xff]
      %v973 = vld [vmem:[%s959 + $0x68] sm:$0xff]
      %v974 = vld [vmem:[%s959 + $0x70] sm:$0xff]
      %v975 = vld [vmem:[%s959 + $0x78] sm:$0xff]
      %v976 = vld [vmem:[%s959 + $0x80] sm:$0xff]
      %v977 = vld [vmem:[%s959 + $0x88] sm:$0xff]
      %v978 = vld [vmem:[%s959 + $0x90] sm:$0xff]
      %v979 = vld [vmem:[%s959 + $0x98] sm:$0xff]
      %v980 = vld [vmem:[%s959 + $0xa0] sm:$0xff]
      %v981 = vld [vmem:[%s959 + $0xa8] sm:$0xff]
      %v982 = vld [vmem:[%s959 + $0xb0] sm:$0xff]
      %v983 = vld [vmem:[%s959 + $0xb8] sm:$0xff]
      %v984 = vld [vmem:[%s959 + $0xc0] sm:$0xff]
      %v985 = vld [vmem:[%s959 + $0xc8] sm:$0xff]
      %v986 = vld [vmem:[%s959 + $0xd0] sm:$0xff]
      %v987 = vld [vmem:[%s959 + $0xd8] sm:$0xff]
      %v988 = vld [vmem:[%s959 + $0xe0] sm:$0xff]
      %v989 = vld [vmem:[%s959 + $0xe8] sm:$0xff]
      %v990 = vld [vmem:[%s959 + $0xf0] sm:$0xff]
      %v991 = vld [vmem:[%s959 + $0xf8] sm:$0xff]
      %v1024 = vunpack.c.l.b16 %v960
      %v1025 = vunpack.c.h.b16 %v960
      %v1026 = vunpack.c.l.b16 %v961
      %v1027 = vunpack.c.h.b16 %v961
      %v1028 = vunpack.c.l.b16 %v962
      %v1029 = vunpack.c.h.b16 %v962
      %v1030 = vunpack.c.l.b16 %v963
      %v1031 = vunpack.c.h.b16 %v963
      %v1032 = vunpack.c.l.b16 %v964
      %v1033 = vunpack.c.h.b16 %v964
      %v1034 = vunpack.c.l.b16 %v965
      %v1035 = vunpack.c.h.b16 %v965
      %v1036 = vunpack.c.l.b16 %v966
      %v1037 = vunpack.c.h.b16 %v966
      %v1038 = vunpack.c.l.b16 %v967
      %v1039 = vunpack.c.h.b16 %v967
      %v1040 = vunpack.c.l.b16 %v968
      %v1041 = vunpack.c.h.b16 %v968
      %v1042 = vunpack.c.l.b16 %v969
      %v1043 = vunpack.c.h.b16 %v969
      %v1044 = vunpack.c.l.b16 %v970
      %v1045 = vunpack.c.h.b16 %v970
      %v1046 = vunpack.c.l.b16 %v971
      %v1047 = vunpack.c.h.b16 %v971
      %v1048 = vunpack.c.l.b16 %v972
      %v1049 = vunpack.c.h.b16 %v972
      %v1050 = vunpack.c.l.b16 %v973
      %v1051 = vunpack.c.h.b16 %v973
      %v1052 = vunpack.c.l.b16 %v974
      %v1053 = vunpack.c.h.b16 %v974
      %v1054 = vunpack.c.l.b16 %v975
      %v1055 = vunpack.c.h.b16 %v975
      %v1056 = vunpack.c.l.b16 %v976
      %v1057 = vunpack.c.h.b16 %v976
      %v1058 = vunpack.c.l.b16 %v977
      %v1059 = vunpack.c.h.b16 %v977
      %v1060 = vunpack.c.l.b16 %v978
      %v1061 = vunpack.c.h.b16 %v978
      %v1062 = vunpack.c.l.b16 %v979
      %v1063 = vunpack.c.h.b16 %v979
      %v1064 = vunpack.c.l.b16 %v980
      %v1065 = vunpack.c.h.b16 %v980
      %v1066 = vunpack.c.l.b16 %v981
      %v1067 = vunpack.c.h.b16 %v981
      %v1068 = vunpack.c.l.b16 %v982
      %v1069 = vunpack.c.h.b16 %v982
      %v1070 = vunpack.c.l.b16 %v983
      %v1071 = vunpack.c.h.b16 %v983
      %v1072 = vunpack.c.l.b16 %v984
      %v1073 = vunpack.c.h.b16 %v984
      %v1074 = vunpack.c.l.b16 %v985
      %v1075 = vunpack.c.h.b16 %v985
      %v1076 = vunpack.c.l.b16 %v986
      %v1077 = vunpack.c.h.b16 %v986
      %v1078 = vunpack.c.l.b16 %v987
      %v1079 = vunpack.c.h.b16 %v987
      %v1080 = vunpack.c.l.b16 %v988
      %v1081 = vunpack.c.h.b16 %v988
      %v1082 = vunpack.c.l.b16 %v989
      %v1083 = vunpack.c.h.b16 %v989
      %v1084 = vunpack.c.l.b16 %v990
      %v1085 = vunpack.c.h.b16 %v990
      %v1086 = vunpack.c.l.b16 %v991
      %v1087 = vunpack.c.h.b16 %v991
      %v1088 = vpack.c.b16 %v1026, %v1024
      %v1089 = vpack.c.b16 %v1027, %v1025
      %v1090 = vpack.c.b16 %v1030, %v1028
      %v1091 = vpack.c.b16 %v1031, %v1029
      %v1092 = vpack.c.b16 %v1034, %v1032
      %v1093 = vpack.c.b16 %v1035, %v1033
      %v1094 = vpack.c.b16 %v1038, %v1036
      %v1095 = vpack.c.b16 %v1039, %v1037
      %v1096 = vpack.c.b16 %v1042, %v1040
      %v1097 = vpack.c.b16 %v1043, %v1041
      %v1098 = vpack.c.b16 %v1046, %v1044
      %v1099 = vpack.c.b16 %v1047, %v1045
      %v1100 = vpack.c.b16 %v1050, %v1048
      %v1101 = vpack.c.b16 %v1051, %v1049
      %v1102 = vpack.c.b16 %v1054, %v1052
      %v1103 = vpack.c.b16 %v1055, %v1053
      %v1104 = vpack.c.b16 %v1058, %v1056
      %v1105 = vpack.c.b16 %v1059, %v1057
      %v1106 = vpack.c.b16 %v1062, %v1060
      %v1107 = vpack.c.b16 %v1063, %v1061
      %v1108 = vpack.c.b16 %v1066, %v1064
      %v1109 = vpack.c.b16 %v1067, %v1065
      %v1110 = vpack.c.b16 %v1070, %v1068
      %v1111 = vpack.c.b16 %v1071, %v1069
      %v1112 = vpack.c.b16 %v1074, %v1072
      %v1113 = vpack.c.b16 %v1075, %v1073
      %v1114 = vpack.c.b16 %v1078, %v1076
      %v1115 = vpack.c.b16 %v1079, %v1077
      %v1116 = vpack.c.b16 %v1082, %v1080
      %v1117 = vpack.c.b16 %v1083, %v1081
      %v1118 = vpack.c.b16 %v1086, %v1084
      %v1119 = vpack.c.b16 %v1087, %v1085
      %1152 = vmatprep.subr.bf16.mxu0 %v1089
      %1153 = vmatpush1.bf16.msra.mxu0 %v1088
      %1154 = vmatprep.subr.bf16.mxu0 %v1091
      %1155 = vmatpush1.bf16.msra.mxu0 %v1090
      %1156 = vmatprep.subr.bf16.mxu0 %v1093
      %1157 = vmatpush1.bf16.msra.mxu0 %v1092
      %1158 = vmatprep.subr.bf16.mxu0 %v1095
      %1159 = vmatpush1.bf16.msra.mxu0 %v1094
      %1160 = vmatprep.subr.bf16.mxu0 %v1097
      %1161 = vmatpush1.bf16.msra.mxu0 %v1096
      %1162 = vmatprep.subr.bf16.mxu0 %v1099
      %1163 = vmatpush1.bf16.msra.mxu0 %v1098
      %1164 = vmatprep.subr.bf16.mxu0 %v1101
      %1165 = vmatpush1.bf16.msra.mxu0 %v1100
      %1166 = vmatprep.subr.bf16.mxu0 %v1103
      %1167 = vmatpush1.bf16.msra.mxu0 %v1102
      %1168 = vmatprep.subr.bf16.mxu0 %v1105
      %1169 = vmatpush1.bf16.msra.mxu0 %v1104
      %1170 = vmatprep.subr.bf16.mxu0 %v1107
      %1171 = vmatpush1.bf16.msra.mxu0 %v1106
      %1172 = vmatprep.subr.bf16.mxu0 %v1109
      %1173 = vmatpush1.bf16.msra.mxu0 %v1108
      %1174 = vmatprep.subr.bf16.mxu0 %v1111
      %1175 = vmatpush1.bf16.msra.mxu0 %v1110
      %1176 = vmatprep.subr.bf16.mxu0 %v1113
      %1177 = vmatpush1.bf16.msra.mxu0 %v1112
      %1178 = vmatprep.subr.bf16.mxu0 %v1115
      %1179 = vmatpush1.bf16.msra.mxu0 %v1114
      %1180 = vmatprep.subr.bf16.mxu0 %v1117
      %1181 = vmatpush1.bf16.msra.mxu0 %v1116
      %1182 = vmatprep.subr.bf16.mxu0 %v1119
      %1183 = vmatpush1.bf16.msra.mxu0 %v1118
      %1184 = vmatprep.mubr.bf16.mxu0 %v952
      %1185 = vmatmul.mubr.bf16.gmra.mrb[0].mxu0 %v951
      %v1186 = vpop.f32.mrb[0].mxu0
      %v1187 = vadd.f32 0.0, %v1186
      %v1188 = vpop.f32.mrb[0].mxu0
      %v1189 = vadd.f32 0.0, %v1188
      %v1190 = vpop.f32.mrb[0].mxu0
      %v1191 = vadd.f32 0.0, %v1190
      %v1192 = vpop.f32.mrb[0].mxu0
      %v1193 = vadd.f32 0.0, %v1192
      %1194 = vmatprep.mubr.bf16.mxu0 %v954
      %1195 = vmatmul.mubr.bf16.gmra.mrb[0].mxu0 %v953
      %v1196 = vpop.f32.mrb[0].mxu0
      %v1197 = vadd.f32 0.0, %v1196
      %v1198 = vpop.f32.mrb[0].mxu0
      %v1199 = vadd.f32 0.0, %v1198
      %v1200 = vpop.f32.mrb[0].mxu0
      %v1201 = vadd.f32 0.0, %v1200
      %v1202 = vpop.f32.mrb[0].mxu0
      %v1203 = vadd.f32 0.0, %v1202
      %1204 = vmatprep.mubr.bf16.mxu0 %v956
      %1205 = vmatmul.mubr.bf16.gmra.mrb[0].mxu0 %v955
      %v1206 = vpop.f32.mrb[0].mxu0
      %v1207 = vadd.f32 0.0, %v1206
      %v1208 = vpop.f32.mrb[0].mxu0
      %v1209 = vadd.f32 0.0, %v1208
      %v1210 = vpop.f32.mrb[0].mxu0
      %v1211 = vadd.f32 0.0, %v1210
      %v1212 = vpop.f32.mrb[0].mxu0
      %v1213 = vadd.f32 0.0, %v1212
      %1214 = vmatprep.mubr.bf16.mxu0 %v958
      %1215 = vmatmul.mubr.bf16.gmra.mrb[0].mxu0 %v957
      %v1216 = vpop.f32.mrb[0].mxu0
      %v1217 = vadd.f32 0.0, %v1216
      %v1218 = vpop.f32.mrb[0].mxu0
      %v1219 = vadd.f32 0.0, %v1218
      %v1220 = vpop.f32.mrb[0].mxu0
      %v1221 = vadd.f32 0.0, %v1220
      %v1222 = vpop.f32.mrb[0].mxu0
      %v1223 = vadd.f32 0.0, %v1222
      %1224 = vdwg.mxu0
      %v1257 = vunpack.c.l.b16 %v919
      %v1258 = vunpack.c.h.b16 %v919
      %v1259 = vunpack.c.l.b16 %v920
      %v1260 = vunpack.c.h.b16 %v920
      %v1261 = vunpack.c.l.b16 %v921
      %v1262 = vunpack.c.h.b16 %v921
      %v1263 = vunpack.c.l.b16 %v922
      %v1264 = vunpack.c.h.b16 %v922
      %v1265 = vunpack.c.l.b16 %v923
      %v1266 = vunpack.c.h.b16 %v923
      %v1267 = vunpack.c.l.b16 %v924
      %v1268 = vunpack.c.h.b16 %v924
      %v1269 = vunpack.c.l.b16 %v925
      %v1270 = vunpack.c.h.b16 %v925
      %v1271 = vunpack.c.l.b16 %v926
      %v1272 = vunpack.c.h.b16 %v926
      %v1273 = vunpack.c.l.b16 %v927
      %v1274 = vunpack.c.h.b16 %v927
      %v1275 = vunpack.c.l.b16 %v928
      %v1276 = vunpack.c.h.b16 %v928
      %v1277 = vunpack.c.l.b16 %v929
      %v1278 = vunpack.c.h.b16 %v929
      %v1279 = vunpack.c.l.b16 %v930
      %v1280 = vunpack.c.h.b16 %v930
      %v1281 = vunpack.c.l.b16 %v931
      %v1282 = vunpack.c.h.b16 %v931
      %v1283 = vunpack.c.l.b16 %v932
      %v1284 = vunpack.c.h.b16 %v932
      %v1285 = vunpack.c.l.b16 %v933
      %v1286 = vunpack.c.h.b16 %v933
      %v1287 = vunpack.c.l.b16 %v934
      %v1288 = vunpack.c.h.b16 %v934
      %v1289 = vunpack.c.l.b16 %v935
      %v1290 = vunpack.c.h.b16 %v935
      %v1291 = vunpack.c.l.b16 %v936
      %v1292 = vunpack.c.h.b16 %v936
      %v1293 = vunpack.c.l.b16 %v937
      %v1294 = vunpack.c.h.b16 %v937
      %v1295 = vunpack.c.l.b16 %v938
      %v1296 = vunpack.c.h.b16 %v938
      %v1297 = vunpack.c.l.b16 %v939
      %v1298 = vunpack.c.h.b16 %v939
      %v1299 = vunpack.c.l.b16 %v940
      %v1300 = vunpack.c.h.b16 %v940
      %v1301 = vunpack.c.l.b16 %v941
      %v1302 = vunpack.c.h.b16 %v941
      %v1303 = vunpack.c.l.b16 %v942
      %v1304 = vunpack.c.h.b16 %v942
      %v1305 = vunpack.c.l.b16 %v943
      %v1306 = vunpack.c.h.b16 %v943
      %v1307 = vunpack.c.l.b16 %v944
      %v1308 = vunpack.c.h.b16 %v944
      %v1309 = vunpack.c.l.b16 %v945
      %v1310 = vunpack.c.h.b16 %v945
      %v1311 = vunpack.c.l.b16 %v946
      %v1312 = vunpack.c.h.b16 %v946
      %v1313 = vunpack.c.l.b16 %v947
      %v1314 = vunpack.c.h.b16 %v947
      %v1315 = vunpack.c.l.b16 %v948
      %v1316 = vunpack.c.h.b16 %v948
      %v1317 = vunpack.c.l.b16 %v949
      %v1318 = vunpack.c.h.b16 %v949
      %v1319 = vunpack.c.l.b16 %v950
      %v1320 = vunpack.c.h.b16 %v950
      %v1321 = vpack.c.b16 %v1259, %v1257
      %v1322 = vpack.c.b16 %v1260, %v1258
      %v1323 = vpack.c.b16 %v1263, %v1261
      %v1324 = vpack.c.b16 %v1264, %v1262
      %v1325 = vpack.c.b16 %v1267, %v1265
      %v1326 = vpack.c.b16 %v1268, %v1266
      %v1327 = vpack.c.b16 %v1271, %v1269
      %v1328 = vpack.c.b16 %v1272, %v1270
      %v1329 = vpack.c.b16 %v1275, %v1273
      %v1330 = vpack.c.b16 %v1276, %v1274
      %v1331 = vpack.c.b16 %v1279, %v1277
      %v1332 = vpack.c.b16 %v1280, %v1278
      %v1333 = vpack.c.b16 %v1283, %v1281
      %v1334 = vpack.c.b16 %v1284, %v1282
      %v1335 = vpack.c.b16 %v1287, %v1285
      %v1336 = vpack.c.b16 %v1288, %v1286
      %v1337 = vpack.c.b16 %v1291, %v1289
      %v1338 = vpack.c.b16 %v1292, %v1290
      %v1339 = vpack.c.b16 %v1295, %v1293
      %v1340 = vpack.c.b16 %v1296, %v1294
      %v1341 = vpack.c.b16 %v1299, %v1297
      %v1342 = vpack.c.b16 %v1300, %v1298
      %v1343 = vpack.c.b16 %v1303, %v1301
      %v1344 = vpack.c.b16 %v1304, %v1302
      %v1345 = vpack.c.b16 %v1307, %v1305
      %v1346 = vpack.c.b16 %v1308, %v1306
      %v1347 = vpack.c.b16 %v1311, %v1309
      %v1348 = vpack.c.b16 %v1312, %v1310
      %v1349 = vpack.c.b16 %v1315, %v1313
      %v1350 = vpack.c.b16 %v1316, %v1314
      %v1351 = vpack.c.b16 %v1319, %v1317
      %v1352 = vpack.c.b16 %v1320, %v1318
      %1385 = vmatprep.subr.bf16.mxu0 %v1322
      %1386 = vmatpush1.bf16.msra.mxu0 %v1321
      %1387 = vmatprep.subr.bf16.mxu0 %v1324
      %1388 = vmatpush1.bf16.msra.mxu0 %v1323
      %1389 = vmatprep.subr.bf16.mxu0 %v1326
      %1390 = vmatpush1.bf16.msra.mxu0 %v1325
      %1391 = vmatprep.subr.bf16.mxu0 %v1328
      %1392 = vmatpush1.bf16.msra.mxu0 %v1327
      %1393 = vmatprep.subr.bf16.mxu0 %v1330
      %1394 = vmatpush1.bf16.msra.mxu0 %v1329
      %1395 = vmatprep.subr.bf16.mxu0 %v1332
      %1396 = vmatpush1.bf16.msra.mxu0 %v1331
      %1397 = vmatprep.subr.bf16.mxu0 %v1334
      %1398 = vmatpush1.bf16.msra.mxu0 %v1333
      %1399 = vmatprep.subr.bf16.mxu0 %v1336
      %1400 = vmatpush1.bf16.msra.mxu0 %v1335
      %1401 = vmatprep.subr.bf16.mxu0 %v1338
      %1402 = vmatpush1.bf16.msra.mxu0 %v1337
      %1403 = vmatprep.subr.bf16.mxu0 %v1340
      %1404 = vmatpush1.bf16.msra.mxu0 %v1339
      %1405 = vmatprep.subr.bf16.mxu0 %v1342
      %1406 = vmatpush1.bf16.msra.mxu0 %v1341
      %1407 = vmatprep.subr.bf16.mxu0 %v1344
      %1408 = vmatpush1.bf16.msra.mxu0 %v1343
      %1409 = vmatprep.subr.bf16.mxu0 %v1346
      %1410 = vmatpush1.bf16.msra.mxu0 %v1345
      %1411 = vmatprep.subr.bf16.mxu0 %v1348
      %1412 = vmatpush1.bf16.msra.mxu0 %v1347
      %1413 = vmatprep.subr.bf16.mxu0 %v1350
      %1414 = vmatpush1.bf16.msra.mxu0 %v1349
      %1415 = vmatprep.subr.bf16.mxu0 %v1352
      %1416 = vmatpush1.bf16.msra.mxu0 %v1351
      %1417 = vmatprep.mubr.bf16.mxu0 %v912
      %1418 = vmatmul.mubr.bf16.gmra.mrb[0].mxu0 %v911
      %v1419 = vpop.f32.mrb[0].mxu0
      %v1420 = vadd.f32 %v1187, %v1419
      %v1421 = vpop.f32.mrb[0].mxu0
      %v1422 = vadd.f32 %v1189, %v1421
      %v1423 = vpop.f32.mrb[0].mxu0
      %v1424 = vadd.f32 %v1191, %v1423
      %v1425 = vpop.f32.mrb[0].mxu0
      %v1426 = vadd.f32 %v1193, %v1425
      %1427 = vmatprep.mubr.bf16.mxu0 %v914
      %1428 = vmatmul.mubr.bf16.gmra.mrb[0].mxu0 %v913
      %v1429 = vpop.f32.mrb[0].mxu0
      %v1430 = vadd.f32 %v1197, %v1429
      %v1431 = vpop.f32.mrb[0].mxu0
      %v1432 = vadd.f32 %v1199, %v1431
      %v1433 = vpop.f32.mrb[0].mxu0
      %v1434 = vadd.f32 %v1201, %v1433
      %v1435 = vpop.f32.mrb[0].mxu0
      %v1436 = vadd.f32 %v1203, %v1435
      %1437 = vmatprep.mubr.bf16.mxu0 %v916
      %1438 = vmatmul.mubr.bf16.gmra.mrb[0].mxu0 %v915
      %v1439 = vpop.f32.mrb[0].mxu0
      %v1440 = vadd.f32 %v1207, %v1439
      %v1441 = vpop.f32.mrb[0].mxu0
      %v1442 = vadd.f32 %v1209, %v1441
      %v1443 = vpop.f32.mrb[0].mxu0
      %v1444 = vadd.f32 %v1211, %v1443
      %v1445 = vpop.f32.mrb[0].mxu0
      %v1446 = vadd.f32 %v1213, %v1445
      %1447 = vmatprep.mubr.bf16.mxu0 %v918
      %1448 = vmatmul.mubr.bf16.gmra.mrb[0].mxu0 %v917
      %v1449 = vpop.f32.mrb[0].mxu0
      %v1450 = vadd.f32 %v1217, %v1449
      %v1451 = vpop.f32.mrb[0].mxu0
      %v1452 = vadd.f32 %v1219, %v1451
      %v1453 = vpop.f32.mrb[0].mxu0
      %v1454 = vadd.f32 %v1221, %v1453
      %v1455 = vpop.f32.mrb[0].mxu0
      %v1456 = vadd.f32 %v1223, %v1455
      %1457 = vdwg.mxu0
      %v1458 = vpack.c.bf16 %v897, %v895
      %v1459 = vpack.c.bf16 %v898, %v896
      %v1460 = vpack.c.bf16 %v901, %v899
      %v1461 = vpack.c.bf16 %v902, %v900
      %v1462 = vpack.c.bf16 %v905, %v903
      %v1463 = vpack.c.bf16 %v906, %v904
      %v1464 = vpack.c.bf16 %v909, %v907
      %v1465 = vpack.c.bf16 %v910, %v908
      %s1466 = scalar_lea.vmem %s3, 512
      %v1467 = vld [vmem:[%s1466] sm:$0xff]
      %v1468 = vld [vmem:[%s1466 + $0x8] sm:$0xff]
      %v1469 = vld [vmem:[%s1466 + $0x10] sm:$0xff]
      %v1470 = vld [vmem:[%s1466 + $0x18] sm:$0xff]
      %v1471 = vld [vmem:[%s1466 + $0x20] sm:$0xff]
      %v1472 = vld [vmem:[%s1466 + $0x28] sm:$0xff]
      %v1473 = vld [vmem:[%s1466 + $0x30] sm:$0xff]
      %v1474 = vld [vmem:[%s1466 + $0x38] sm:$0xff]
      %v1475 = vld [vmem:[%s1466 + $0x40] sm:$0xff]
      %v1476 = vld [vmem:[%s1466 + $0x48] sm:$0xff]
      %v1477 = vld [vmem:[%s1466 + $0x50] sm:$0xff]
      %v1478 = vld [vmem:[%s1466 + $0x58] sm:$0xff]
      %v1479 = vld [vmem:[%s1466 + $0x60] sm:$0xff]
      %v1480 = vld [vmem:[%s1466 + $0x68] sm:$0xff]
      %v1481 = vld [vmem:[%s1466 + $0x70] sm:$0xff]
      %v1482 = vld [vmem:[%s1466 + $0x78] sm:$0xff]
      %v1483 = vld [vmem:[%s1466 + $0x80] sm:$0xff]
      %v1484 = vld [vmem:[%s1466 + $0x88] sm:$0xff]
      %v1485 = vld [vmem:[%s1466 + $0x90] sm:$0xff]
      %v1486 = vld [vmem:[%s1466 + $0x98] sm:$0xff]
      %v1487 = vld [vmem:[%s1466 + $0xa0] sm:$0xff]
      %v1488 = vld [vmem:[%s1466 + $0xa8] sm:$0xff]
      %v1489 = vld [vmem:[%s1466 + $0xb0] sm:$0xff]
      %v1490 = vld [vmem:[%s1466 + $0xb8] sm:$0xff]
      %v1491 = vld [vmem:[%s1466 + $0xc0] sm:$0xff]
      %v1492 = vld [vmem:[%s1466 + $0xc8] sm:$0xff]
      %v1493 = vld [vmem:[%s1466 + $0xd0] sm:$0xff]
      %v1494 = vld [vmem:[%s1466 + $0xd8] sm:$0xff]
      %v1495 = vld [vmem:[%s1466 + $0xe0] sm:$0xff]
      %v1496 = vld [vmem:[%s1466 + $0xe8] sm:$0xff]
      %v1497 = vld [vmem:[%s1466 + $0xf0] sm:$0xff]
      %v1498 = vld [vmem:[%s1466 + $0xf8] sm:$0xff]
      %v1531 = vunpack.c.l.b16 %v1467
      %v1532 = vunpack.c.h.b16 %v1467
      %v1533 = vunpack.c.l.b16 %v1468
      %v1534 = vunpack.c.h.b16 %v1468
      %v1535 = vunpack.c.l.b16 %v1469
      %v1536 = vunpack.c.h.b16 %v1469
      %v1537 = vunpack.c.l.b16 %v1470
      %v1538 = vunpack.c.h.b16 %v1470
      %v1539 = vunpack.c.l.b16 %v1471
      %v1540 = vunpack.c.h.b16 %v1471
      %v1541 = vunpack.c.l.b16 %v1472
      %v1542 = vunpack.c.h.b16 %v1472
      %v1543 = vunpack.c.l.b16 %v1473
      %v1544 = vunpack.c.h.b16 %v1473
      %v1545 = vunpack.c.l.b16 %v1474
      %v1546 = vunpack.c.h.b16 %v1474
      %v1547 = vunpack.c.l.b16 %v1475
      %v1548 = vunpack.c.h.b16 %v1475
      %v1549 = vunpack.c.l.b16 %v1476
      %v1550 = vunpack.c.h.b16 %v1476
      %v1551 = vunpack.c.l.b16 %v1477
      %v1552 = vunpack.c.h.b16 %v1477
      %v1553 = vunpack.c.l.b16 %v1478
      %v1554 = vunpack.c.h.b16 %v1478
      %v1555 = vunpack.c.l.b16 %v1479
      %v1556 = vunpack.c.h.b16 %v1479
      %v1557 = vunpack.c.l.b16 %v1480
      %v1558 = vunpack.c.h.b16 %v1480
      %v1559 = vunpack.c.l.b16 %v1481
      %v1560 = vunpack.c.h.b16 %v1481
      %v1561 = vunpack.c.l.b16 %v1482
      %v1562 = vunpack.c.h.b16 %v1482
      %v1563 = vunpack.c.l.b16 %v1483
      %v1564 = vunpack.c.h.b16 %v1483
      %v1565 = vunpack.c.l.b16 %v1484
      %v1566 = vunpack.c.h.b16 %v1484
      %v1567 = vunpack.c.l.b16 %v1485
      %v1568 = vunpack.c.h.b16 %v1485
      %v1569 = vunpack.c.l.b16 %v1486
      %v1570 = vunpack.c.h.b16 %v1486
      %v1571 = vunpack.c.l.b16 %v1487
      %v1572 = vunpack.c.h.b16 %v1487
      %v1573 = vunpack.c.l.b16 %v1488
      %v1574 = vunpack.c.h.b16 %v1488
      %v1575 = vunpack.c.l.b16 %v1489
      %v1576 = vunpack.c.h.b16 %v1489
      %v1577 = vunpack.c.l.b16 %v1490
      %v1578 = vunpack.c.h.b16 %v1490
      %v1579 = vunpack.c.l.b16 %v1491
      %v1580 = vunpack.c.h.b16 %v1491
      %v1581 = vunpack.c.l.b16 %v1492
      %v1582 = vunpack.c.h.b16 %v1492
      %v1583 = vunpack.c.l.b16 %v1493
      %v1584 = vunpack.c.h.b16 %v1493
      %v1585 = vunpack.c.l.b16 %v1494
      %v1586 = vunpack.c.h.b16 %v1494
      %v1587 = vunpack.c.l.b16 %v1495
      %v1588 = vunpack.c.h.b16 %v1495
      %v1589 = vunpack.c.l.b16 %v1496
      %v1590 = vunpack.c.h.b16 %v1496
      %v1591 = vunpack.c.l.b16 %v1497
      %v1592 = vunpack.c.h.b16 %v1497
      %v1593 = vunpack.c.l.b16 %v1498
      %v1594 = vunpack.c.h.b16 %v1498
      %v1595 = vpack.c.b16 %v1533, %v1531
      %v1596 = vpack.c.b16 %v1534, %v1532
      %v1597 = vpack.c.b16 %v1537, %v1535
      %v1598 = vpack.c.b16 %v1538, %v1536
      %v1599 = vpack.c.b16 %v1541, %v1539
      %v1600 = vpack.c.b16 %v1542, %v1540
      %v1601 = vpack.c.b16 %v1545, %v1543
      %v1602 = vpack.c.b16 %v1546, %v1544
      %v1603 = vpack.c.b16 %v1549, %v1547
      %v1604 = vpack.c.b16 %v1550, %v1548
      %v1605 = vpack.c.b16 %v1553, %v1551
      %v1606 = vpack.c.b16 %v1554, %v1552
      %v1607 = vpack.c.b16 %v1557, %v1555
      %v1608 = vpack.c.b16 %v1558, %v1556
      %v1609 = vpack.c.b16 %v1561, %v1559
      %v1610 = vpack.c.b16 %v1562, %v1560
      %v1611 = vpack.c.b16 %v1565, %v1563
      %v1612 = vpack.c.b16 %v1566, %v1564
      %v1613 = vpack.c.b16 %v1569, %v1567
      %v1614 = vpack.c.b16 %v1570, %v1568
      %v1615 = vpack.c.b16 %v1573, %v1571
      %v1616 = vpack.c.b16 %v1574, %v1572
      %v1617 = vpack.c.b16 %v1577, %v1575
      %v1618 = vpack.c.b16 %v1578, %v1576
      %v1619 = vpack.c.b16 %v1581, %v1579
      %v1620 = vpack.c.b16 %v1582, %v1580
      %v1621 = vpack.c.b16 %v1585, %v1583
      %v1622 = vpack.c.b16 %v1586, %v1584
      %v1623 = vpack.c.b16 %v1589, %v1587
      %v1624 = vpack.c.b16 %v1590, %v1588
      %v1625 = vpack.c.b16 %v1593, %v1591
      %v1626 = vpack.c.b16 %v1594, %v1592
      %1659 = vmatprep.subr.bf16.mxu0 %v1596
      %1660 = vmatpush1.bf16.msra.mxu0 %v1595
      %1661 = vmatprep.subr.bf16.mxu0 %v1598
      %1662 = vmatpush1.bf16.msra.mxu0 %v1597
      %1663 = vmatprep.subr.bf16.mxu0 %v1600
      %1664 = vmatpush1.bf16.msra.mxu0 %v1599
      %1665 = vmatprep.subr.bf16.mxu0 %v1602
      %1666 = vmatpush1.bf16.msra.mxu0 %v1601
      %1667 = vmatprep.subr.bf16.mxu0 %v1604
      %1668 = vmatpush1.bf16.msra.mxu0 %v1603
      %1669 = vmatprep.subr.bf16.mxu0 %v1606
      %1670 = vmatpush1.bf16.msra.mxu0 %v1605
      %1671 = vmatprep.subr.bf16.mxu0 %v1608
      %1672 = vmatpush1.bf16.msra.mxu0 %v1607
      %1673 = vmatprep.subr.bf16.mxu0 %v1610
      %1674 = vmatpush1.bf16.msra.mxu0 %v1609
      %1675 = vmatprep.subr.bf16.mxu0 %v1612
      %1676 = vmatpush1.bf16.msra.mxu0 %v1611
      %1677 = vmatprep.subr.bf16.mxu0 %v1614
      %1678 = vmatpush1.bf16.msra.mxu0 %v1613
      %1679 = vmatprep.subr.bf16.mxu0 %v1616
      %1680 = vmatpush1.bf16.msra.mxu0 %v1615
      %1681 = vmatprep.subr.bf16.mxu0 %v1618
      %1682 = vmatpush1.bf16.msra.mxu0 %v1617
      %1683 = vmatprep.subr.bf16.mxu0 %v1620
      %1684 = vmatpush1.bf16.msra.mxu0 %v1619
      %1685 = vmatprep.subr.bf16.mxu0 %v1622
      %1686 = vmatpush1.bf16.msra.mxu0 %v1621
      %1687 = vmatprep.subr.bf16.mxu0 %v1624
      %1688 = vmatpush1.bf16.msra.mxu0 %v1623
      %1689 = vmatprep.subr.bf16.mxu0 %v1626
      %1690 = vmatpush1.bf16.msra.mxu0 %v1625
      %1691 = vmatprep.mubr.bf16.mxu0 %v1459
      %1692 = vmatmul.mubr.bf16.gmra.mrb[0].mxu0 %v1458
      %v1693 = vpop.f32.mrb[0].mxu0
      %v1694 = vadd.f32 0.0, %v1693
      %v1695 = vpop.f32.mrb[0].mxu0
      %v1696 = vadd.f32 0.0, %v1695
      %v1697 = vpop.f32.mrb[0].mxu0
      %v1698 = vadd.f32 0.0, %v1697
      %v1699 = vpop.f32.mrb[0].mxu0
      %v1700 = vadd.f32 0.0, %v1699
      %1701 = vmatprep.mubr.bf16.mxu0 %v1461
      %1702 = vmatmul.mubr.bf16.gmra.mrb[0].mxu0 %v1460
      %v1703 = vpop.f32.mrb[0].mxu0
      %v1704 = vadd.f32 0.0, %v1703
      %v1705 = vpop.f32.mrb[0].mxu0
      %v1706 = vadd.f32 0.0, %v1705
      %v1707 = vpop.f32.mrb[0].mxu0
      %v1708 = vadd.f32 0.0, %v1707
      %v1709 = vpop.f32.mrb[0].mxu0
      %v1710 = vadd.f32 0.0, %v1709
      %1711 = vmatprep.mubr.bf16.mxu0 %v1463
      %1712 = vmatmul.mubr.bf16.gmra.mrb[0].mxu0 %v1462
      %v1713 = vpop.f32.mrb[0].mxu0
      %v1714 = vadd.f32 0.0, %v1713
      %v1715 = vpop.f32.mrb[0].mxu0
      %v1716 = vadd.f32 0.0, %v1715
      %v1717 = vpop.f32.mrb[0].mxu0
      %v1718 = vadd.f32 0.0, %v1717
      %v1719 = vpop.f32.mrb[0].mxu0
      %v1720 = vadd.f32 0.0, %v1719
      %1721 = vmatprep.mubr.bf16.mxu0 %v1465
      %1722 = vmatmul.mubr.bf16.gmra.mrb[0].mxu0 %v1464
      %v1723 = vpop.f32.mrb[0].mxu0
      %v1724 = vadd.f32 0.0, %v1723
      %v1725 = vpop.f32.mrb[0].mxu0
      %v1726 = vadd.f32 0.0, %v1725
      %v1727 = vpop.f32.mrb[0].mxu0
      %v1728 = vadd.f32 0.0, %v1727
      %v1729 = vpop.f32.mrb[0].mxu0
      %v1730 = vadd.f32 0.0, %v1729
      %1731 = vdwg.mxu0
      %v1732 = vadd.f32 %v1420, %v1694
      %v1733 = vadd.f32 %v1422, %v1696
      %v1734 = vadd.f32 %v1424, %v1698
      %v1735 = vadd.f32 %v1426, %v1700
      %v1736 = vadd.f32 %v1430, %v1704
      %v1737 = vadd.f32 %v1432, %v1706
      %v1738 = vadd.f32 %v1434, %v1708
      %v1739 = vadd.f32 %v1436, %v1710
      %v1740 = vadd.f32 %v1440, %v1714
      %v1741 = vadd.f32 %v1442, %v1716
      %v1742 = vadd.f32 %v1444, %v1718
      %v1743 = vadd.f32 %v1446, %v1720
      %v1744 = vadd.f32 %v1450, %v1724
      %v1745 = vadd.f32 %v1452, %v1726
      %v1746 = vadd.f32 %v1454, %v1728
      %v1747 = vadd.f32 %v1456, %v1730
      %v1749 = vlaneseq
      %v1750 = vshrl.u32 %v1749, 7
      %v1751 = vsub.s32 0, %v1750
      %v1752 = vrot.slane %v780, %v1751
      %v1753 = vlaneseq
      %v1754 = vshrl.u32 %v1753, 7
      %v1755 = vsub.s32 1, %v1754
      %v1756 = vrot.slane %v780, %v1755
      %v1759 = vadd.f32 %v1732, %v1752
      %v1760 = vadd.f32 %v1733, %v1756
      %v1761 = vadd.f32 %v1734, %v1752
      %v1762 = vadd.f32 %v1735, %v1756
      %v1763 = vadd.f32 %v1736, %v1752
      %v1764 = vadd.f32 %v1737, %v1756
      %v1765 = vadd.f32 %v1738, %v1752
      %v1766 = vadd.f32 %v1739, %v1756
      %v1767 = vadd.f32 %v1740, %v1752
      %v1768 = vadd.f32 %v1741, %v1756
      %v1769 = vadd.f32 %v1742, %v1752
      %v1770 = vadd.f32 %v1743, %v1756
      %v1771 = vadd.f32 %v1744, %v1752
      %v1772 = vadd.f32 %v1745, %v1756
      %v1773 = vadd.f32 %v1746, %v1752
      %v1774 = vadd.f32 %v1747, %v1756
      %v1775 = vmax.f32 %v1759, 0.0
      %v1776 = vmax.f32 %v1760, 0.0
      %v1777 = vmax.f32 %v1761, 0.0
      %v1778 = vmax.f32 %v1762, 0.0
      %v1779 = vmax.f32 %v1763, 0.0
      %v1780 = vmax.f32 %v1764, 0.0
      %v1781 = vmax.f32 %v1765, 0.0
      %v1782 = vmax.f32 %v1766, 0.0
      %v1783 = vmax.f32 %v1767, 0.0
      %v1784 = vmax.f32 %v1768, 0.0
      %v1785 = vmax.f32 %v1769, 0.0
      %v1786 = vmax.f32 %v1770, 0.0
      %v1787 = vmax.f32 %v1771, 0.0
      %v1788 = vmax.f32 %v1772, 0.0
      %v1789 = vmax.f32 %v1773, 0.0
      %v1790 = vmax.f32 %v1774, 0.0
      %s1791 = scalar_lea.vmem %s5, 2
      %v1792 = vld [vmem:[%s1791] ss:$8 sm:$0x3]
      %v1793 = vrot.slane %v1775, 7
      %v1794 = vrot.slane %v1776, 7
      %v1795 = vrot.slane %v1777, 7
      %v1796 = vrot.slane %v1778, 7
      %v1797 = vrot.slane %v1779, 7
      %v1798 = vrot.slane %v1780, 7
      %v1799 = vrot.slane %v1781, 7
      %v1800 = vrot.slane %v1782, 7
      %v1801 = vrot.slane %v1783, 7
      %v1802 = vrot.slane %v1784, 7
      %v1803 = vrot.slane %v1785, 7
      %v1804 = vrot.slane %v1786, 7
      %v1805 = vrot.slane %v1787, 7
      %v1806 = vrot.slane %v1788, 7
      %v1807 = vrot.slane %v1789, 7
      %v1808 = vrot.slane %v1790, 7
      %v1809 = vsel %vm797, %v1805, %v1807
      %v1810 = vsel %vm797, %v1806, %v1808
      %v1811 = vsel %vm797, %v1803, %v1805
      %v1812 = vsel %vm797, %v1804, %v1806
      %v1813 = vsel %vm797, %v1801, %v1803
      %v1814 = vsel %vm797, %v1802, %v1804
      %v1815 = vsel %vm797, %v1799, %v1801
      %v1816 = vsel %vm797, %v1800, %v1802
      %v1817 = vsel %vm797, %v1797, %v1799
      %v1818 = vsel %vm797, %v1798, %v1800
      %v1819 = vsel %vm797, %v1795, %v1797
      %v1820 = vsel %vm797, %v1796, %v1798
      %v1821 = vsel %vm797, %v1793, %v1795
      %v1822 = vsel %vm797, %v1794, %v1796
      %v1823 = vsel %vm797, %v1807, %v1793
      %v1824 = vsel %vm797, %v1808, %v1794
      %v1825 = vsel %vm822, %v1823, 0.0
      %v1826 = vsel %vm822, %v1824, 0.0
      %v1827 = vsel %vm823, %v1821, 0.0
      %v1828 = vsel %vm823, %v1822, 0.0
      %v1829 = vsel %vm824, %v1819, 0.0
      %v1830 = vsel %vm824, %v1820, 0.0
      %v1831 = vsel %vm825, %v1817, 0.0
      %v1832 = vsel %vm825, %v1818, 0.0
      %v1833 = vsel %vm826, %v1815, 0.0
      %v1834 = vsel %vm826, %v1816, 0.0
      %v1835 = vsel %vm827, %v1813, 0.0
      %v1836 = vsel %vm827, %v1814, 0.0
      %v1837 = vsel %vm828, %v1811, 0.0
      %v1838 = vsel %vm828, %v1812, 0.0
      %v1839 = vsel %vm829, %v1809, 0.0
      %v1840 = vsel %vm829, %v1810, 0.0
      %v1841 = vrot.slane %v1775, 1
      %v1842 = vrot.slane %v1776, 1
      %v1843 = vrot.slane %v1777, 1
      %v1844 = vrot.slane %v1778, 1
      %v1845 = vrot.slane %v1779, 1
      %v1846 = vrot.slane %v1780, 1
      %v1847 = vrot.slane %v1781, 1
      %v1848 = vrot.slane %v1782, 1
      %v1849 = vrot.slane %v1783, 1
      %v1850 = vrot.slane %v1784, 1
      %v1851 = vrot.slane %v1785, 1
      %v1852 = vrot.slane %v1786, 1
      %v1853 = vrot.slane %v1787, 1
      %v1854 = vrot.slane %v1788, 1
      %v1855 = vrot.slane %v1789, 1
      %v1856 = vrot.slane %v1790, 1
      %v1857 = vsel %vm862, %v1853, %v1855
      %v1858 = vsel %vm862, %v1854, %v1856
      %v1859 = vsel %vm862, %v1851, %v1853
      %v1860 = vsel %vm862, %v1852, %v1854
      %v1861 = vsel %vm862, %v1849, %v1851
      %v1862 = vsel %vm862, %v1850, %v1852
      %v1863 = vsel %vm862, %v1847, %v1849
      %v1864 = vsel %vm862, %v1848, %v1850
      %v1865 = vsel %vm862, %v1845, %v1847
      %v1866 = vsel %vm862, %v1846, %v1848
      %v1867 = vsel %vm862, %v1843, %v1845
      %v1868 = vsel %vm862, %v1844, %v1846
      %v1869 = vsel %vm862, %v1841, %v1843
      %v1870 = vsel %vm862, %v1842, %v1844
      %v1871 = vsel %vm862, %v1855, %v1841
      %v1872 = vsel %vm862, %v1856, %v1842
      %v1873 = vsel %vm887, %v1869, 0.0
      %v1874 = vsel %vm887, %v1870, 0.0
      %v1875 = vsel %vm888, %v1867, 0.0
      %v1876 = vsel %vm888, %v1868, 0.0
      %v1877 = vsel %vm889, %v1865, 0.0
      %v1878 = vsel %vm889, %v1866, 0.0
      %v1879 = vsel %vm890, %v1863, 0.0
      %v1880 = vsel %vm890, %v1864, 0.0
      %v1881 = vsel %vm891, %v1861, 0.0
      %v1882 = vsel %vm891, %v1862, 0.0
      %v1883 = vsel %vm892, %v1859, 0.0
      %v1884 = vsel %vm892, %v1860, 0.0
      %v1885 = vsel %vm893, %v1857, 0.0
      %v1886 = vsel %vm893, %v1858, 0.0
      %v1887 = vsel %vm894, %v1871, 0.0
      %v1888 = vsel %vm894, %v1872, 0.0
      %v1889 = vpack.c.bf16 %v1827, %v1825
      %v1890 = vpack.c.bf16 %v1828, %v1826
      %v1891 = vpack.c.bf16 %v1831, %v1829
      %v1892 = vpack.c.bf16 %v1832, %v1830
      %v1893 = vpack.c.bf16 %v1835, %v1833
      %v1894 = vpack.c.bf16 %v1836, %v1834
      %v1895 = vpack.c.bf16 %v1839, %v1837
      %v1896 = vpack.c.bf16 %v1840, %v1838
      %v1897 = vld [vmem:[%s4] sm:$0xff]
      %v1898 = vld [vmem:[%s4 + $0x8] sm:$0xff]
      %v1899 = vld [vmem:[%s4 + $0x10] sm:$0xff]
      %v1900 = vld [vmem:[%s4 + $0x18] sm:$0xff]
      %v1901 = vld [vmem:[%s4 + $0x20] sm:$0xff]
      %v1902 = vld [vmem:[%s4 + $0x28] sm:$0xff]
      %v1903 = vld [vmem:[%s4 + $0x30] sm:$0xff]
      %v1904 = vld [vmem:[%s4 + $0x38] sm:$0xff]
      %v1905 = vld [vmem:[%s4 + $0x40] sm:$0xff]
      %v1906 = vld [vmem:[%s4 + $0x48] sm:$0xff]
      %v1907 = vld [vmem:[%s4 + $0x50] sm:$0xff]
      %v1908 = vld [vmem:[%s4 + $0x58] sm:$0xff]
      %v1909 = vld [vmem:[%s4 + $0x60] sm:$0xff]
      %v1910 = vld [vmem:[%s4 + $0x68] sm:$0xff]
      %v1911 = vld [vmem:[%s4 + $0x70] sm:$0xff]
      %v1912 = vld [vmem:[%s4 + $0x78] sm:$0xff]
      %v1913 = vld [vmem:[%s4 + $0x80] sm:$0xff]
      %v1914 = vld [vmem:[%s4 + $0x88] sm:$0xff]
      %v1915 = vld [vmem:[%s4 + $0x90] sm:$0xff]
      %v1916 = vld [vmem:[%s4 + $0x98] sm:$0xff]
      %v1917 = vld [vmem:[%s4 + $0xa0] sm:$0xff]
      %v1918 = vld [vmem:[%s4 + $0xa8] sm:$0xff]
      %v1919 = vld [vmem:[%s4 + $0xb0] sm:$0xff]
      %v1920 = vld [vmem:[%s4 + $0xb8] sm:$0xff]
      %v1921 = vld [vmem:[%s4 + $0xc0] sm:$0xff]
      %v1922 = vld [vmem:[%s4 + $0xc8] sm:$0xff]
      %v1923 = vld [vmem:[%s4 + $0xd0] sm:$0xff]
      %v1924 = vld [vmem:[%s4 + $0xd8] sm:$0xff]
      %v1925 = vld [vmem:[%s4 + $0xe0] sm:$0xff]
      %v1926 = vld [vmem:[%s4 + $0xe8] sm:$0xff]
      %v1927 = vld [vmem:[%s4 + $0xf0] sm:$0xff]
      %v1928 = vld [vmem:[%s4 + $0xf8] sm:$0xff]
      %v1929 = vpack.c.bf16 %v1777, %v1775
      %v1930 = vpack.c.bf16 %v1778, %v1776
      %v1931 = vpack.c.bf16 %v1781, %v1779
      %v1932 = vpack.c.bf16 %v1782, %v1780
      %v1933 = vpack.c.bf16 %v1785, %v1783
      %v1934 = vpack.c.bf16 %v1786, %v1784
      %v1935 = vpack.c.bf16 %v1789, %v1787
      %v1936 = vpack.c.bf16 %v1790, %v1788
      %s1937 = scalar_lea.vmem %s4, 256
      %v1938 = vld [vmem:[%s1937] sm:$0xff]
      %v1939 = vld [vmem:[%s1937 + $0x8] sm:$0xff]
      %v1940 = vld [vmem:[%s1937 + $0x10] sm:$0xff]
      %v1941 = vld [vmem:[%s1937 + $0x18] sm:$0xff]
      %v1942 = vld [vmem:[%s1937 + $0x20] sm:$0xff]
      %v1943 = vld [vmem:[%s1937 + $0x28] sm:$0xff]
      %v1944 = vld [vmem:[%s1937 + $0x30] sm:$0xff]
      %v1945 = vld [vmem:[%s1937 + $0x38] sm:$0xff]
      %v1946 = vld [vmem:[%s1937 + $0x40] sm:$0xff]
      %v1947 = vld [vmem:[%s1937 + $0x48] sm:$0xff]
      %v1948 = vld [vmem:[%s1937 + $0x50] sm:$0xff]
      %v1949 = vld [vmem:[%s1937 + $0x58] sm:$0xff]
      %v1950 = vld [vmem:[%s1937 + $0x60] sm:$0xff]
      %v1951 = vld [vmem:[%s1937 + $0x68] sm:$0xff]
      %v1952 = vld [vmem:[%s1937 + $0x70] sm:$0xff]
      %v1953 = vld [vmem:[%s1937 + $0x78] sm:$0xff]
      %v1954 = vld [vmem:[%s1937 + $0x80] sm:$0xff]
      %v1955 = vld [vmem:[%s1937 + $0x88] sm:$0xff]
      %v1956 = vld [vmem:[%s1937 + $0x90] sm:$0xff]
      %v1957 = vld [vmem:[%s1937 + $0x98] sm:$0xff]
      %v1958 = vld [vmem:[%s1937 + $0xa0] sm:$0xff]
      %v1959 = vld [vmem:[%s1937 + $0xa8] sm:$0xff]
      %v1960 = vld [vmem:[%s1937 + $0xb0] sm:$0xff]
      %v1961 = vld [vmem:[%s1937 + $0xb8] sm:$0xff]
      %v1962 = vld [vmem:[%s1937 + $0xc0] sm:$0xff]
      %v1963 = vld [vmem:[%s1937 + $0xc8] sm:$0xff]
      %v1964 = vld [vmem:[%s1937 + $0xd0] sm:$0xff]
      %v1965 = vld [vmem:[%s1937 + $0xd8] sm:$0xff]
      %v1966 = vld [vmem:[%s1937 + $0xe0] sm:$0xff]
      %v1967 = vld [vmem:[%s1937 + $0xe8] sm:$0xff]
      %v1968 = vld [vmem:[%s1937 + $0xf0] sm:$0xff]
      %v1969 = vld [vmem:[%s1937 + $0xf8] sm:$0xff]
      %v2002 = vunpack.c.l.b16 %v1938
      %v2003 = vunpack.c.h.b16 %v1938
      %v2004 = vunpack.c.l.b16 %v1939
      %v2005 = vunpack.c.h.b16 %v1939
      %v2006 = vunpack.c.l.b16 %v1940
      %v2007 = vunpack.c.h.b16 %v1940
      %v2008 = vunpack.c.l.b16 %v1941
      %v2009 = vunpack.c.h.b16 %v1941
      %v2010 = vunpack.c.l.b16 %v1942
      %v2011 = vunpack.c.h.b16 %v1942
      %v2012 = vunpack.c.l.b16 %v1943
      %v2013 = vunpack.c.h.b16 %v1943
      %v2014 = vunpack.c.l.b16 %v1944
      %v2015 = vunpack.c.h.b16 %v1944
      %v2016 = vunpack.c.l.b16 %v1945
      %v2017 = vunpack.c.h.b16 %v1945
      %v2018 = vunpack.c.l.b16 %v1946
      %v2019 = vunpack.c.h.b16 %v1946
      %v2020 = vunpack.c.l.b16 %v1947
      %v2021 = vunpack.c.h.b16 %v1947
      %v2022 = vunpack.c.l.b16 %v1948
      %v2023 = vunpack.c.h.b16 %v1948
      %v2024 = vunpack.c.l.b16 %v1949
      %v2025 = vunpack.c.h.b16 %v1949
      %v2026 = vunpack.c.l.b16 %v1950
      %v2027 = vunpack.c.h.b16 %v1950
      %v2028 = vunpack.c.l.b16 %v1951
      %v2029 = vunpack.c.h.b16 %v1951
      %v2030 = vunpack.c.l.b16 %v1952
      %v2031 = vunpack.c.h.b16 %v1952
      %v2032 = vunpack.c.l.b16 %v1953
      %v2033 = vunpack.c.h.b16 %v1953
      %v2034 = vunpack.c.l.b16 %v1954
      %v2035 = vunpack.c.h.b16 %v1954
      %v2036 = vunpack.c.l.b16 %v1955
      %v2037 = vunpack.c.h.b16 %v1955
      %v2038 = vunpack.c.l.b16 %v1956
      %v2039 = vunpack.c.h.b16 %v1956
      %v2040 = vunpack.c.l.b16 %v1957
      %v2041 = vunpack.c.h.b16 %v1957
      %v2042 = vunpack.c.l.b16 %v1958
      %v2043 = vunpack.c.h.b16 %v1958
      %v2044 = vunpack.c.l.b16 %v1959
      %v2045 = vunpack.c.h.b16 %v1959
      %v2046 = vunpack.c.l.b16 %v1960
      %v2047 = vunpack.c.h.b16 %v1960
      %v2048 = vunpack.c.l.b16 %v1961
      %v2049 = vunpack.c.h.b16 %v1961
      %v2050 = vunpack.c.l.b16 %v1962
      %v2051 = vunpack.c.h.b16 %v1962
      %v2052 = vunpack.c.l.b16 %v1963
      %v2053 = vunpack.c.h.b16 %v1963
      %v2054 = vunpack.c.l.b16 %v1964
      %v2055 = vunpack.c.h.b16 %v1964
      %v2056 = vunpack.c.l.b16 %v1965
      %v2057 = vunpack.c.h.b16 %v1965
      %v2058 = vunpack.c.l.b16 %v1966
      %v2059 = vunpack.c.h.b16 %v1966
      %v2060 = vunpack.c.l.b16 %v1967
      %v2061 = vunpack.c.h.b16 %v1967
      %v2062 = vunpack.c.l.b16 %v1968
      %v2063 = vunpack.c.h.b16 %v1968
      %v2064 = vunpack.c.l.b16 %v1969
      %v2065 = vunpack.c.h.b16 %v1969
      %v2066 = vpack.c.b16 %v2004, %v2002
      %v2067 = vpack.c.b16 %v2005, %v2003
      %v2068 = vpack.c.b16 %v2008, %v2006
      %v2069 = vpack.c.b16 %v2009, %v2007
      %v2070 = vpack.c.b16 %v2012, %v2010
      %v2071 = vpack.c.b16 %v2013, %v2011
      %v2072 = vpack.c.b16 %v2016, %v2014
      %v2073 = vpack.c.b16 %v2017, %v2015
      %v2074 = vpack.c.b16 %v2020, %v2018
      %v2075 = vpack.c.b16 %v2021, %v2019
      %v2076 = vpack.c.b16 %v2024, %v2022
      %v2077 = vpack.c.b16 %v2025, %v2023
      %v2078 = vpack.c.b16 %v2028, %v2026
      %v2079 = vpack.c.b16 %v2029, %v2027
      %v2080 = vpack.c.b16 %v2032, %v2030
      %v2081 = vpack.c.b16 %v2033, %v2031
      %v2082 = vpack.c.b16 %v2036, %v2034
      %v2083 = vpack.c.b16 %v2037, %v2035
      %v2084 = vpack.c.b16 %v2040, %v2038
      %v2085 = vpack.c.b16 %v2041, %v2039
      %v2086 = vpack.c.b16 %v2044, %v2042
      %v2087 = vpack.c.b16 %v2045, %v2043
      %v2088 = vpack.c.b16 %v2048, %v2046
      %v2089 = vpack.c.b16 %v2049, %v2047
      %v2090 = vpack.c.b16 %v2052, %v2050
      %v2091 = vpack.c.b16 %v2053, %v2051
      %v2092 = vpack.c.b16 %v2056, %v2054
      %v2093 = vpack.c.b16 %v2057, %v2055
      %v2094 = vpack.c.b16 %v2060, %v2058
      %v2095 = vpack.c.b16 %v2061, %v2059
      %v2096 = vpack.c.b16 %v2064, %v2062
      %v2097 = vpack.c.b16 %v2065, %v2063
      %2130 = vmatprep.subr.bf16.mxu0 %v2067
      %2131 = vmatpush1.bf16.msra.mxu0 %v2066
      %2132 = vmatprep.subr.bf16.mxu0 %v2069
      %2133 = vmatpush1.bf16.msra.mxu0 %v2068
      %2134 = vmatprep.subr.bf16.mxu0 %v2071
      %2135 = vmatpush1.bf16.msra.mxu0 %v2070
      %2136 = vmatprep.subr.bf16.mxu0 %v2073
      %2137 = vmatpush1.bf16.msra.mxu0 %v2072
      %2138 = vmatprep.subr.bf16.mxu0 %v2075
      %2139 = vmatpush1.bf16.msra.mxu0 %v2074
      %2140 = vmatprep.subr.bf16.mxu0 %v2077
      %2141 = vmatpush1.bf16.msra.mxu0 %v2076
      %2142 = vmatprep.subr.bf16.mxu0 %v2079
      %2143 = vmatpush1.bf16.msra.mxu0 %v2078
      %2144 = vmatprep.subr.bf16.mxu0 %v2081
      %2145 = vmatpush1.bf16.msra.mxu0 %v2080
      %2146 = vmatprep.subr.bf16.mxu0 %v2083
      %2147 = vmatpush1.bf16.msra.mxu0 %v2082
      %2148 = vmatprep.subr.bf16.mxu0 %v2085
      %2149 = vmatpush1.bf16.msra.mxu0 %v2084
      %2150 = vmatprep.subr.bf16.mxu0 %v2087
      %2151 = vmatpush1.bf16.msra.mxu0 %v2086
      %2152 = vmatprep.subr.bf16.mxu0 %v2089
      %2153 = vmatpush1.bf16.msra.mxu0 %v2088
      %2154 = vmatprep.subr.bf16.mxu0 %v2091
      %2155 = vmatpush1.bf16.msra.mxu0 %v2090
      %2156 = vmatprep.subr.bf16.mxu0 %v2093
      %2157 = vmatpush1.bf16.msra.mxu0 %v2092
      %2158 = vmatprep.subr.bf16.mxu0 %v2095
      %2159 = vmatpush1.bf16.msra.mxu0 %v2094
      %2160 = vmatprep.subr.bf16.mxu0 %v2097
      %2161 = vmatpush1.bf16.msra.mxu0 %v2096
      %2162 = vmatprep.mubr.bf16.mxu0 %v1930
      %2163 = vmatmul.mubr.bf16.gmra.mrb[0].mxu0 %v1929
      %v2164 = vpop.f32.mrb[0].mxu0
      %v2165 = vadd.f32 0.0, %v2164
      %v2166 = vpop.f32.mrb[0].mxu0
      %v2167 = vadd.f32 0.0, %v2166
      %v2168 = vpop.f32.mrb[0].mxu0
      %v2169 = vadd.f32 0.0, %v2168
      %v2170 = vpop.f32.mrb[0].mxu0
      %v2171 = vadd.f32 0.0, %v2170
      %2172 = vmatprep.mubr.bf16.mxu0 %v1932
      %2173 = vmatmul.mubr.bf16.gmra.mrb[0].mxu0 %v1931
      %v2174 = vpop.f32.mrb[0].mxu0
      %v2175 = vadd.f32 0.0, %v2174
      %v2176 = vpop.f32.mrb[0].mxu0
      %v2177 = vadd.f32 0.0, %v2176
      %v2178 = vpop.f32.mrb[0].mxu0
      %v2179 = vadd.f32 0.0, %v2178
      %v2180 = vpop.f32.mrb[0].mxu0
      %v2181 = vadd.f32 0.0, %v2180
      %2182 = vmatprep.mubr.bf16.mxu0 %v1934
      %2183 = vmatmul.mubr.bf16.gmra.mrb[0].mxu0 %v1933
      %v2184 = vpop.f32.mrb[0].mxu0
      %v2185 = vadd.f32 0.0, %v2184
      %v2186 = vpop.f32.mrb[0].mxu0
      %v2187 = vadd.f32 0.0, %v2186
      %v2188 = vpop.f32.mrb[0].mxu0
      %v2189 = vadd.f32 0.0, %v2188
      %v2190 = vpop.f32.mrb[0].mxu0
      %v2191 = vadd.f32 0.0, %v2190
      %2192 = vmatprep.mubr.bf16.mxu0 %v1936
      %2193 = vmatmul.mubr.bf16.gmra.mrb[0].mxu0 %v1935
      %v2194 = vpop.f32.mrb[0].mxu0
      %v2195 = vadd.f32 0.0, %v2194
      %v2196 = vpop.f32.mrb[0].mxu0
      %v2197 = vadd.f32 0.0, %v2196
      %v2198 = vpop.f32.mrb[0].mxu0
      %v2199 = vadd.f32 0.0, %v2198
      %v2200 = vpop.f32.mrb[0].mxu0
      %v2201 = vadd.f32 0.0, %v2200
      %2202 = vdwg.mxu0
      %v2235 = vunpack.c.l.b16 %v1897
      %v2236 = vunpack.c.h.b16 %v1897
      %v2237 = vunpack.c.l.b16 %v1898
      %v2238 = vunpack.c.h.b16 %v1898
      %v2239 = vunpack.c.l.b16 %v1899
      %v2240 = vunpack.c.h.b16 %v1899
      %v2241 = vunpack.c.l.b16 %v1900
      %v2242 = vunpack.c.h.b16 %v1900
      %v2243 = vunpack.c.l.b16 %v1901
      %v2244 = vunpack.c.h.b16 %v1901
      %v2245 = vunpack.c.l.b16 %v1902
      %v2246 = vunpack.c.h.b16 %v1902
      %v2247 = vunpack.c.l.b16 %v1903
      %v2248 = vunpack.c.h.b16 %v1903
      %v2249 = vunpack.c.l.b16 %v1904
      %v2250 = vunpack.c.h.b16 %v1904
      %v2251 = vunpack.c.l.b16 %v1905
      %v2252 = vunpack.c.h.b16 %v1905
      %v2253 = vunpack.c.l.b16 %v1906
      %v2254 = vunpack.c.h.b16 %v1906
      %v2255 = vunpack.c.l.b16 %v1907
      %v2256 = vunpack.c.h.b16 %v1907
      %v2257 = vunpack.c.l.b16 %v1908
      %v2258 = vunpack.c.h.b16 %v1908
      %v2259 = vunpack.c.l.b16 %v1909
      %v2260 = vunpack.c.h.b16 %v1909
      %v2261 = vunpack.c.l.b16 %v1910
      %v2262 = vunpack.c.h.b16 %v1910
      %v2263 = vunpack.c.l.b16 %v1911
      %v2264 = vunpack.c.h.b16 %v1911
      %v2265 = vunpack.c.l.b16 %v1912
      %v2266 = vunpack.c.h.b16 %v1912
      %v2267 = vunpack.c.l.b16 %v1913
      %v2268 = vunpack.c.h.b16 %v1913
      %v2269 = vunpack.c.l.b16 %v1914
      %v2270 = vunpack.c.h.b16 %v1914
      %v2271 = vunpack.c.l.b16 %v1915
      %v2272 = vunpack.c.h.b16 %v1915
      %v2273 = vunpack.c.l.b16 %v1916
      %v2274 = vunpack.c.h.b16 %v1916
      %v2275 = vunpack.c.l.b16 %v1917
      %v2276 = vunpack.c.h.b16 %v1917
      %v2277 = vunpack.c.l.b16 %v1918
      %v2278 = vunpack.c.h.b16 %v1918
      %v2279 = vunpack.c.l.b16 %v1919
      %v2280 = vunpack.c.h.b16 %v1919
      %v2281 = vunpack.c.l.b16 %v1920
      %v2282 = vunpack.c.h.b16 %v1920
      %v2283 = vunpack.c.l.b16 %v1921
      %v2284 = vunpack.c.h.b16 %v1921
      %v2285 = vunpack.c.l.b16 %v1922
      %v2286 = vunpack.c.h.b16 %v1922
      %v2287 = vunpack.c.l.b16 %v1923
      %v2288 = vunpack.c.h.b16 %v1923
      %v2289 = vunpack.c.l.b16 %v1924
      %v2290 = vunpack.c.h.b16 %v1924
      %v2291 = vunpack.c.l.b16 %v1925
      %v2292 = vunpack.c.h.b16 %v1925
      %v2293 = vunpack.c.l.b16 %v1926
      %v2294 = vunpack.c.h.b16 %v1926
      %v2295 = vunpack.c.l.b16 %v1927
      %v2296 = vunpack.c.h.b16 %v1927
      %v2297 = vunpack.c.l.b16 %v1928
      %v2298 = vunpack.c.h.b16 %v1928
      %v2299 = vpack.c.b16 %v2237, %v2235
      %v2300 = vpack.c.b16 %v2238, %v2236
      %v2301 = vpack.c.b16 %v2241, %v2239
      %v2302 = vpack.c.b16 %v2242, %v2240
      %v2303 = vpack.c.b16 %v2245, %v2243
      %v2304 = vpack.c.b16 %v2246, %v2244
      %v2305 = vpack.c.b16 %v2249, %v2247
      %v2306 = vpack.c.b16 %v2250, %v2248
      %v2307 = vpack.c.b16 %v2253, %v2251
      %v2308 = vpack.c.b16 %v2254, %v2252
      %v2309 = vpack.c.b16 %v2257, %v2255
      %v2310 = vpack.c.b16 %v2258, %v2256
      %v2311 = vpack.c.b16 %v2261, %v2259
      %v2312 = vpack.c.b16 %v2262, %v2260
      %v2313 = vpack.c.b16 %v2265, %v2263
      %v2314 = vpack.c.b16 %v2266, %v2264
      %v2315 = vpack.c.b16 %v2269, %v2267
      %v2316 = vpack.c.b16 %v2270, %v2268
      %v2317 = vpack.c.b16 %v2273, %v2271
      %v2318 = vpack.c.b16 %v2274, %v2272
      %v2319 = vpack.c.b16 %v2277, %v2275
      %v2320 = vpack.c.b16 %v2278, %v2276
      %v2321 = vpack.c.b16 %v2281, %v2279
      %v2322 = vpack.c.b16 %v2282, %v2280
      %v2323 = vpack.c.b16 %v2285, %v2283
      %v2324 = vpack.c.b16 %v2286, %v2284
      %v2325 = vpack.c.b16 %v2289, %v2287
      %v2326 = vpack.c.b16 %v2290, %v2288
      %v2327 = vpack.c.b16 %v2293, %v2291
      %v2328 = vpack.c.b16 %v2294, %v2292
      %v2329 = vpack.c.b16 %v2297, %v2295
      %v2330 = vpack.c.b16 %v2298, %v2296
      %2363 = vmatprep.subr.bf16.mxu0 %v2300
      %2364 = vmatpush1.bf16.msra.mxu0 %v2299
      %2365 = vmatprep.subr.bf16.mxu0 %v2302
      %2366 = vmatpush1.bf16.msra.mxu0 %v2301
      %2367 = vmatprep.subr.bf16.mxu0 %v2304
      %2368 = vmatpush1.bf16.msra.mxu0 %v2303
      %2369 = vmatprep.subr.bf16.mxu0 %v2306
      %2370 = vmatpush1.bf16.msra.mxu0 %v2305
      %2371 = vmatprep.subr.bf16.mxu0 %v2308
      %2372 = vmatpush1.bf16.msra.mxu0 %v2307
      %2373 = vmatprep.subr.bf16.mxu0 %v2310
      %2374 = vmatpush1.bf16.msra.mxu0 %v2309
      %2375 = vmatprep.subr.bf16.mxu0 %v2312
      %2376 = vmatpush1.bf16.msra.mxu0 %v2311
      %2377 = vmatprep.subr.bf16.mxu0 %v2314
      %2378 = vmatpush1.bf16.msra.mxu0 %v2313
      %2379 = vmatprep.subr.bf16.mxu0 %v2316
      %2380 = vmatpush1.bf16.msra.mxu0 %v2315
      %2381 = vmatprep.subr.bf16.mxu0 %v2318
      %2382 = vmatpush1.bf16.msra.mxu0 %v2317
      %2383 = vmatprep.subr.bf16.mxu0 %v2320
      %2384 = vmatpush1.bf16.msra.mxu0 %v2319
      %2385 = vmatprep.subr.bf16.mxu0 %v2322
      %2386 = vmatpush1.bf16.msra.mxu0 %v2321
      %2387 = vmatprep.subr.bf16.mxu0 %v2324
      %2388 = vmatpush1.bf16.msra.mxu0 %v2323
      %2389 = vmatprep.subr.bf16.mxu0 %v2326
      %2390 = vmatpush1.bf16.msra.mxu0 %v2325
      %2391 = vmatprep.subr.bf16.mxu0 %v2328
      %2392 = vmatpush1.bf16.msra.mxu0 %v2327
      %2393 = vmatprep.subr.bf16.mxu0 %v2330
      %2394 = vmatpush1.bf16.msra.mxu0 %v2329
      %2395 = vmatprep.mubr.bf16.mxu0 %v1890
      %2396 = vmatmul.mubr.bf16.gmra.mrb[0].mxu0 %v1889
      %v2397 = vpop.f32.mrb[0].mxu0
      %v2398 = vadd.f32 %v2165, %v2397
      %v2399 = vpop.f32.mrb[0].mxu0
      %v2400 = vadd.f32 %v2167, %v2399
      %v2401 = vpop.f32.mrb[0].mxu0
      %v2402 = vadd.f32 %v2169, %v2401
      %v2403 = vpop.f32.mrb[0].mxu0
      %v2404 = vadd.f32 %v2171, %v2403
      %2405 = vmatprep.mubr.bf16.mxu0 %v1892
      %2406 = vmatmul.mubr.bf16.gmra.mrb[0].mxu0 %v1891
      %v2407 = vpop.f32.mrb[0].mxu0
      %v2408 = vadd.f32 %v2175, %v2407
      %v2409 = vpop.f32.mrb[0].mxu0
      %v2410 = vadd.f32 %v2177, %v2409
      %v2411 = vpop.f32.mrb[0].mxu0
      %v2412 = vadd.f32 %v2179, %v2411
      %v2413 = vpop.f32.mrb[0].mxu0
      %v2414 = vadd.f32 %v2181, %v2413
      %2415 = vmatprep.mubr.bf16.mxu0 %v1894
      %2416 = vmatmul.mubr.bf16.gmra.mrb[0].mxu0 %v1893
      %v2417 = vpop.f32.mrb[0].mxu0
      %v2418 = vadd.f32 %v2185, %v2417
      %v2419 = vpop.f32.mrb[0].mxu0
      %v2420 = vadd.f32 %v2187, %v2419
      %v2421 = vpop.f32.mrb[0].mxu0
      %v2422 = vadd.f32 %v2189, %v2421
      %v2423 = vpop.f32.mrb[0].mxu0
      %v2424 = vadd.f32 %v2191, %v2423
      %2425 = vmatprep.mubr.bf16.mxu0 %v1896
      %2426 = vmatmul.mubr.bf16.gmra.mrb[0].mxu0 %v1895
      %v2427 = vpop.f32.mrb[0].mxu0
      %v2428 = vadd.f32 %v2195, %v2427
      %v2429 = vpop.f32.mrb[0].mxu0
      %v2430 = vadd.f32 %v2197, %v2429
      %v2431 = vpop.f32.mrb[0].mxu0
      %v2432 = vadd.f32 %v2199, %v2431
      %v2433 = vpop.f32.mrb[0].mxu0
      %v2434 = vadd.f32 %v2201, %v2433
      %2435 = vdwg.mxu0
      %v2436 = vpack.c.bf16 %v1875, %v1873
      %v2437 = vpack.c.bf16 %v1876, %v1874
      %v2438 = vpack.c.bf16 %v1879, %v1877
      %v2439 = vpack.c.bf16 %v1880, %v1878
      %v2440 = vpack.c.bf16 %v1883, %v1881
      %v2441 = vpack.c.bf16 %v1884, %v1882
      %v2442 = vpack.c.bf16 %v1887, %v1885
      %v2443 = vpack.c.bf16 %v1888, %v1886
      %s2444 = scalar_lea.vmem %s4, 512
      %v2445 = vld [vmem:[%s2444] sm:$0xff]
      %v2446 = vld [vmem:[%s2444 + $0x8] sm:$0xff]
      %v2447 = vld [vmem:[%s2444 + $0x10] sm:$0xff]
      %v2448 = vld [vmem:[%s2444 + $0x18] sm:$0xff]
      %v2449 = vld [vmem:[%s2444 + $0x20] sm:$0xff]
      %v2450 = vld [vmem:[%s2444 + $0x28] sm:$0xff]
      %v2451 = vld [vmem:[%s2444 + $0x30] sm:$0xff]
      %v2452 = vld [vmem:[%s2444 + $0x38] sm:$0xff]
      %v2453 = vld [vmem:[%s2444 + $0x40] sm:$0xff]
      %v2454 = vld [vmem:[%s2444 + $0x48] sm:$0xff]
      %v2455 = vld [vmem:[%s2444 + $0x50] sm:$0xff]
      %v2456 = vld [vmem:[%s2444 + $0x58] sm:$0xff]
      %v2457 = vld [vmem:[%s2444 + $0x60] sm:$0xff]
      %v2458 = vld [vmem:[%s2444 + $0x68] sm:$0xff]
      %v2459 = vld [vmem:[%s2444 + $0x70] sm:$0xff]
      %v2460 = vld [vmem:[%s2444 + $0x78] sm:$0xff]
      %v2461 = vld [vmem:[%s2444 + $0x80] sm:$0xff]
      %v2462 = vld [vmem:[%s2444 + $0x88] sm:$0xff]
      %v2463 = vld [vmem:[%s2444 + $0x90] sm:$0xff]
      %v2464 = vld [vmem:[%s2444 + $0x98] sm:$0xff]
      %v2465 = vld [vmem:[%s2444 + $0xa0] sm:$0xff]
      %v2466 = vld [vmem:[%s2444 + $0xa8] sm:$0xff]
      %v2467 = vld [vmem:[%s2444 + $0xb0] sm:$0xff]
      %v2468 = vld [vmem:[%s2444 + $0xb8] sm:$0xff]
      %v2469 = vld [vmem:[%s2444 + $0xc0] sm:$0xff]
      %v2470 = vld [vmem:[%s2444 + $0xc8] sm:$0xff]
      %v2471 = vld [vmem:[%s2444 + $0xd0] sm:$0xff]
      %v2472 = vld [vmem:[%s2444 + $0xd8] sm:$0xff]
      %v2473 = vld [vmem:[%s2444 + $0xe0] sm:$0xff]
      %v2474 = vld [vmem:[%s2444 + $0xe8] sm:$0xff]
      %v2475 = vld [vmem:[%s2444 + $0xf0] sm:$0xff]
      %v2476 = vld [vmem:[%s2444 + $0xf8] sm:$0xff]
      %v2509 = vunpack.c.l.b16 %v2445
      %v2510 = vunpack.c.h.b16 %v2445
      %v2511 = vunpack.c.l.b16 %v2446
      %v2512 = vunpack.c.h.b16 %v2446
      %v2513 = vunpack.c.l.b16 %v2447
      %v2514 = vunpack.c.h.b16 %v2447
      %v2515 = vunpack.c.l.b16 %v2448
      %v2516 = vunpack.c.h.b16 %v2448
      %v2517 = vunpack.c.l.b16 %v2449
      %v2518 = vunpack.c.h.b16 %v2449
      %v2519 = vunpack.c.l.b16 %v2450
      %v2520 = vunpack.c.h.b16 %v2450
      %v2521 = vunpack.c.l.b16 %v2451
      %v2522 = vunpack.c.h.b16 %v2451
      %v2523 = vunpack.c.l.b16 %v2452
      %v2524 = vunpack.c.h.b16 %v2452
      %v2525 = vunpack.c.l.b16 %v2453
      %v2526 = vunpack.c.h.b16 %v2453
      %v2527 = vunpack.c.l.b16 %v2454
      %v2528 = vunpack.c.h.b16 %v2454
      %v2529 = vunpack.c.l.b16 %v2455
      %v2530 = vunpack.c.h.b16 %v2455
      %v2531 = vunpack.c.l.b16 %v2456
      %v2532 = vunpack.c.h.b16 %v2456
      %v2533 = vunpack.c.l.b16 %v2457
      %v2534 = vunpack.c.h.b16 %v2457
      %v2535 = vunpack.c.l.b16 %v2458
      %v2536 = vunpack.c.h.b16 %v2458
      %v2537 = vunpack.c.l.b16 %v2459
      %v2538 = vunpack.c.h.b16 %v2459
      %v2539 = vunpack.c.l.b16 %v2460
      %v2540 = vunpack.c.h.b16 %v2460
      %v2541 = vunpack.c.l.b16 %v2461
      %v2542 = vunpack.c.h.b16 %v2461
      %v2543 = vunpack.c.l.b16 %v2462
      %v2544 = vunpack.c.h.b16 %v2462
      %v2545 = vunpack.c.l.b16 %v2463
      %v2546 = vunpack.c.h.b16 %v2463
      %v2547 = vunpack.c.l.b16 %v2464
      %v2548 = vunpack.c.h.b16 %v2464
      %v2549 = vunpack.c.l.b16 %v2465
      %v2550 = vunpack.c.h.b16 %v2465
      %v2551 = vunpack.c.l.b16 %v2466
      %v2552 = vunpack.c.h.b16 %v2466
      %v2553 = vunpack.c.l.b16 %v2467
      %v2554 = vunpack.c.h.b16 %v2467
      %v2555 = vunpack.c.l.b16 %v2468
      %v2556 = vunpack.c.h.b16 %v2468
      %v2557 = vunpack.c.l.b16 %v2469
      %v2558 = vunpack.c.h.b16 %v2469
      %v2559 = vunpack.c.l.b16 %v2470
      %v2560 = vunpack.c.h.b16 %v2470
      %v2561 = vunpack.c.l.b16 %v2471
      %v2562 = vunpack.c.h.b16 %v2471
      %v2563 = vunpack.c.l.b16 %v2472
      %v2564 = vunpack.c.h.b16 %v2472
      %v2565 = vunpack.c.l.b16 %v2473
      %v2566 = vunpack.c.h.b16 %v2473
      %v2567 = vunpack.c.l.b16 %v2474
      %v2568 = vunpack.c.h.b16 %v2474
      %v2569 = vunpack.c.l.b16 %v2475
      %v2570 = vunpack.c.h.b16 %v2475
      %v2571 = vunpack.c.l.b16 %v2476
      %v2572 = vunpack.c.h.b16 %v2476
      %v2573 = vpack.c.b16 %v2511, %v2509
      %v2574 = vpack.c.b16 %v2512, %v2510
      %v2575 = vpack.c.b16 %v2515, %v2513
      %v2576 = vpack.c.b16 %v2516, %v2514
      %v2577 = vpack.c.b16 %v2519, %v2517
      %v2578 = vpack.c.b16 %v2520, %v2518
      %v2579 = vpack.c.b16 %v2523, %v2521
      %v2580 = vpack.c.b16 %v2524, %v2522
      %v2581 = vpack.c.b16 %v2527, %v2525
      %v2582 = vpack.c.b16 %v2528, %v2526
      %v2583 = vpack.c.b16 %v2531, %v2529
      %v2584 = vpack.c.b16 %v2532, %v2530
      %v2585 = vpack.c.b16 %v2535, %v2533
      %v2586 = vpack.c.b16 %v2536, %v2534
      %v2587 = vpack.c.b16 %v2539, %v2537
      %v2588 = vpack.c.b16 %v2540, %v2538
      %v2589 = vpack.c.b16 %v2543, %v2541
      %v2590 = vpack.c.b16 %v2544, %v2542
      %v2591 = vpack.c.b16 %v2547, %v2545
      %v2592 = vpack.c.b16 %v2548, %v2546
      %v2593 = vpack.c.b16 %v2551, %v2549
      %v2594 = vpack.c.b16 %v2552, %v2550
      %v2595 = vpack.c.b16 %v2555, %v2553
      %v2596 = vpack.c.b16 %v2556, %v2554
      %v2597 = vpack.c.b16 %v2559, %v2557
      %v2598 = vpack.c.b16 %v2560, %v2558
      %v2599 = vpack.c.b16 %v2563, %v2561
      %v2600 = vpack.c.b16 %v2564, %v2562
      %v2601 = vpack.c.b16 %v2567, %v2565
      %v2602 = vpack.c.b16 %v2568, %v2566
      %v2603 = vpack.c.b16 %v2571, %v2569
      %v2604 = vpack.c.b16 %v2572, %v2570
      %2637 = vmatprep.subr.bf16.mxu0 %v2574
      %2638 = vmatpush1.bf16.msra.mxu0 %v2573
      %2639 = vmatprep.subr.bf16.mxu0 %v2576
      %2640 = vmatpush1.bf16.msra.mxu0 %v2575
      %2641 = vmatprep.subr.bf16.mxu0 %v2578
      %2642 = vmatpush1.bf16.msra.mxu0 %v2577
      %2643 = vmatprep.subr.bf16.mxu0 %v2580
      %2644 = vmatpush1.bf16.msra.mxu0 %v2579
      %2645 = vmatprep.subr.bf16.mxu0 %v2582
      %2646 = vmatpush1.bf16.msra.mxu0 %v2581
      %2647 = vmatprep.subr.bf16.mxu0 %v2584
      %2648 = vmatpush1.bf16.msra.mxu0 %v2583
      %2649 = vmatprep.subr.bf16.mxu0 %v2586
      %2650 = vmatpush1.bf16.msra.mxu0 %v2585
      %2651 = vmatprep.subr.bf16.mxu0 %v2588
      %2652 = vmatpush1.bf16.msra.mxu0 %v2587
      %2653 = vmatprep.subr.bf16.mxu0 %v2590
      %2654 = vmatpush1.bf16.msra.mxu0 %v2589
      %2655 = vmatprep.subr.bf16.mxu0 %v2592
      %2656 = vmatpush1.bf16.msra.mxu0 %v2591
      %2657 = vmatprep.subr.bf16.mxu0 %v2594
      %2658 = vmatpush1.bf16.msra.mxu0 %v2593
      %2659 = vmatprep.subr.bf16.mxu0 %v2596
      %2660 = vmatpush1.bf16.msra.mxu0 %v2595
      %2661 = vmatprep.subr.bf16.mxu0 %v2598
      %2662 = vmatpush1.bf16.msra.mxu0 %v2597
      %2663 = vmatprep.subr.bf16.mxu0 %v2600
      %2664 = vmatpush1.bf16.msra.mxu0 %v2599
      %2665 = vmatprep.subr.bf16.mxu0 %v2602
      %2666 = vmatpush1.bf16.msra.mxu0 %v2601
      %2667 = vmatprep.subr.bf16.mxu0 %v2604
      %2668 = vmatpush1.bf16.msra.mxu0 %v2603
      %2669 = vmatprep.mubr.bf16.mxu0 %v2437
      %2670 = vmatmul.mubr.bf16.gmra.mrb[0].mxu0 %v2436
      %v2671 = vpop.f32.mrb[0].mxu0
      %v2672 = vadd.f32 0.0, %v2671
      %v2673 = vpop.f32.mrb[0].mxu0
      %v2674 = vadd.f32 0.0, %v2673
      %v2675 = vpop.f32.mrb[0].mxu0
      %v2676 = vadd.f32 0.0, %v2675
      %v2677 = vpop.f32.mrb[0].mxu0
      %v2678 = vadd.f32 0.0, %v2677
      %2679 = vmatprep.mubr.bf16.mxu0 %v2439
      %2680 = vmatmul.mubr.bf16.gmra.mrb[0].mxu0 %v2438
      %v2681 = vpop.f32.mrb[0].mxu0
      %v2682 = vadd.f32 0.0, %v2681
      %v2683 = vpop.f32.mrb[0].mxu0
      %v2684 = vadd.f32 0.0, %v2683
      %v2685 = vpop.f32.mrb[0].mxu0
      %v2686 = vadd.f32 0.0, %v2685
      %v2687 = vpop.f32.mrb[0].mxu0
      %v2688 = vadd.f32 0.0, %v2687
      %2689 = vmatprep.mubr.bf16.mxu0 %v2441
      %2690 = vmatmul.mubr.bf16.gmra.mrb[0].mxu0 %v2440
      %v2691 = vpop.f32.mrb[0].mxu0
      %v2692 = vadd.f32 0.0, %v2691
      %v2693 = vpop.f32.mrb[0].mxu0
      %v2694 = vadd.f32 0.0, %v2693
      %v2695 = vpop.f32.mrb[0].mxu0
      %v2696 = vadd.f32 0.0, %v2695
      %v2697 = vpop.f32.mrb[0].mxu0
      %v2698 = vadd.f32 0.0, %v2697
      %2699 = vmatprep.mubr.bf16.mxu0 %v2443
      %2700 = vmatmul.mubr.bf16.gmra.mrb[0].mxu0 %v2442
      %v2701 = vpop.f32.mrb[0].mxu0
      %v2702 = vadd.f32 0.0, %v2701
      %v2703 = vpop.f32.mrb[0].mxu0
      %v2704 = vadd.f32 0.0, %v2703
      %v2705 = vpop.f32.mrb[0].mxu0
      %v2706 = vadd.f32 0.0, %v2705
      %v2707 = vpop.f32.mrb[0].mxu0
      %v2708 = vadd.f32 0.0, %v2707
      %2709 = vdwg.mxu0
      %v2710 = vadd.f32 %v2398, %v2672
      %v2711 = vadd.f32 %v2400, %v2674
      %v2712 = vadd.f32 %v2402, %v2676
      %v2713 = vadd.f32 %v2404, %v2678
      %v2714 = vadd.f32 %v2408, %v2682
      %v2715 = vadd.f32 %v2410, %v2684
      %v2716 = vadd.f32 %v2412, %v2686
      %v2717 = vadd.f32 %v2414, %v2688
      %v2718 = vadd.f32 %v2418, %v2692
      %v2719 = vadd.f32 %v2420, %v2694
      %v2720 = vadd.f32 %v2422, %v2696
      %v2721 = vadd.f32 %v2424, %v2698
      %v2722 = vadd.f32 %v2428, %v2702
      %v2723 = vadd.f32 %v2430, %v2704
      %v2724 = vadd.f32 %v2432, %v2706
      %v2725 = vadd.f32 %v2434, %v2708
      %v2727 = vlaneseq
      %v2728 = vshrl.u32 %v2727, 7
      %v2729 = vsub.s32 0, %v2728
      %v2730 = vrot.slane %v1792, %v2729
      %v2731 = vlaneseq
      %v2732 = vshrl.u32 %v2731, 7
      %v2733 = vsub.s32 1, %v2732
      %v2734 = vrot.slane %v1792, %v2733
      %v2737 = vadd.f32 %v2710, %v2730
      %v2738 = vadd.f32 %v2711, %v2734
      %v2739 = vadd.f32 %v2712, %v2730
      %v2740 = vadd.f32 %v2713, %v2734
      %v2741 = vadd.f32 %v2714, %v2730
      %v2742 = vadd.f32 %v2715, %v2734
      %v2743 = vadd.f32 %v2716, %v2730
      %v2744 = vadd.f32 %v2717, %v2734
      %v2745 = vadd.f32 %v2718, %v2730
      %v2746 = vadd.f32 %v2719, %v2734
      %v2747 = vadd.f32 %v2720, %v2730
      %v2748 = vadd.f32 %v2721, %v2734
      %v2749 = vadd.f32 %v2722, %v2730
      %v2750 = vadd.f32 %v2723, %v2734
      %v2751 = vadd.f32 %v2724, %v2730
      %v2752 = vadd.f32 %v2725, %v2734
      %v2753 = vmax.f32 %v2737, 0.0
      %v2754 = vmax.f32 %v2738, 0.0
      %v2755 = vmax.f32 %v2739, 0.0
      %v2756 = vmax.f32 %v2740, 0.0
      %v2757 = vmax.f32 %v2741, 0.0
      %v2758 = vmax.f32 %v2742, 0.0
      %v2759 = vmax.f32 %v2743, 0.0
      %v2760 = vmax.f32 %v2744, 0.0
      %v2761 = vmax.f32 %v2745, 0.0
      %v2762 = vmax.f32 %v2746, 0.0
      %v2763 = vmax.f32 %v2747, 0.0
      %v2764 = vmax.f32 %v2748, 0.0
      %v2765 = vmax.f32 %v2749, 0.0
      %v2766 = vmax.f32 %v2750, 0.0
      %v2767 = vmax.f32 %v2751, 0.0
      %v2768 = vmax.f32 %v2752, 0.0
      %v2769 = vld [vmem:[%s8] sm:$0xf]
      %vm2770 = vcmask 523264
      %v2772 = vsel %vm2770, %v2769, 0
      %2774 = vmatprep.subr.mxu0 %v2754
      %2775 = vmatpush1.msra.mxu0 %v2753
      %2776 = vmatprep.subr.mxu0 %v2756
      %2777 = vmatpush1.msra.mxu0 %v2755
      %2778 = vmatprep.subr.mxu0 %v2758
      %2779 = vmatpush1.msra.mxu0 %v2757
      %2780 = vmatprep.subr.mxu0 %v2760
      %2781 = vmatpush1.msra.mxu0 %v2759
      %2782 = vmatprep.subr.mxu0 %v2762
      %2783 = vmatpush1.msra.mxu0 %v2761
      %2784 = vmatprep.subr.mxu0 %v2764
      %2785 = vmatpush1.msra.mxu0 %v2763
      %2786 = vmatprep.subr.mxu0 %v2766
      %2787 = vmatpush1.msra.mxu0 %v2765
      %2788 = vmatprep.subr.mxu0 %v2768
      %2789 = vmatpush1.msra.mxu0 %v2767
      %2790 = vmatprep.subr.mxu0 0.0
      %2791 = vmatpush1.msra.mxu0 0.0
      %2792 = vmatprep.subr.mxu0 0.0
      %2793 = vmatpush1.msra.mxu0 0.0
      %2794 = vmatprep.subr.mxu0 0.0
      %2795 = vmatpush1.msra.mxu0 0.0
      %2796 = vmatprep.subr.mxu0 0.0
      %2797 = vmatpush1.msra.mxu0 0.0
      %2798 = vmatprep.subr.mxu0 0.0
      %2799 = vmatpush1.msra.mxu0 0.0
      %2800 = vmatprep.subr.mxu0 0.0
      %2801 = vmatpush1.msra.mxu0 0.0
      %2802 = vmatprep.subr.mxu0 0.0
      %2803 = vmatpush1.msra.mxu0 0.0
      %2804 = vmatprep.subr.mxu0 0.0
      %2805 = vmatpush1.msra.mxu0 0.0
      %2806 = vmatprep.subr.mxu0 0.0
      %2807 = vmatpush1.msra.mxu0 0.0
      %2808 = vmatprep.subr.mxu0 0.0
      %2809 = vmatpush1.msra.mxu0 0.0
      %2810 = vmatprep.subr.mxu0 0.0
      %2811 = vmatpush1.msra.mxu0 0.0
      %2812 = vmatprep.subr.mxu0 0.0
      %2813 = vmatpush1.msra.mxu0 0.0
      %2814 = vmatprep.subr.mxu0 0.0
      %2815 = vmatpush1.msra.mxu0 0.0
      %2816 = vmatprep.subr.mxu0 0.0
      %2817 = vmatpush1.msra.mxu0 0.0
      %2818 = vmatprep.subr.mxu0 0.0
      %2819 = vmatpush1.msra.mxu0 0.0
      %2820 = vmatprep.subr.mxu0 0.0
      %2821 = vmatpush1.msra.mxu0 0.0
      %2822 = vmatprep.subr.mxu0 0.0
      %2823 = vmatpush1.msra.mxu0 0.0
      %2824 = vmatprep.subr.mxu0 0.0
      %2825 = vmatpush1.msra.mxu0 0.0
      %2826 = vmatprep.subr.mxu0 0.0
      %2827 = vmatpush1.msra.mxu0 0.0
      %2828 = vmatprep.subr.mxu0 0.0
      %2829 = vmatpush1.msra.mxu0 0.0
      %2830 = vmatprep.subr.mxu0 0.0
      %2831 = vmatpush1.msra.mxu0 0.0
      %2832 = vmatprep.subr.mxu0 0.0
      %2833 = vmatpush1.msra.mxu0 0.0
      %2834 = vmatprep.subr.mxu0 0.0
      %2835 = vmatpush1.msra.mxu0 0.0
      %2836 = vmatprep.subr.mxu0 0.0
      %2837 = vmatpush1.msra.mxu0 0.0
      %2838 = vmatprep.mubr.f32.mxu0 0.0
      %2839 = vmatmul.mubr.f32.gmra.mrb[0].mxu0 %v2772
      %v2840 = vpop.f32.mrb[0].mxu0
      %v2841 = vadd.f32 0.0, %v2840
      %v2842 = vpop.f32.mrb[0].mxu0
      %v2843 = vadd.f32 0.0, %v2842
      %2844 = vdwg.mxu0
      %v2845 = vld [vmem:[%s6] sm:$0xff]
      %v2846 = vld [vmem:[%s6 + $0x8] sm:$0xff]
      %v2847 = vld [vmem:[%s6 + $0x10] sm:$0xff]
      %v2848 = vld [vmem:[%s6 + $0x18] sm:$0xff]
      %v2849 = vld [vmem:[%s6 + $0x20] sm:$0xff]
      %v2850 = vld [vmem:[%s6 + $0x28] sm:$0xff]
      %v2851 = vld [vmem:[%s6 + $0x30] sm:$0xff]
      %v2852 = vld [vmem:[%s6 + $0x38] sm:$0xff]
      %v2853 = vld [vmem:[%s6 + $0x40] sm:$0xff]
      %v2854 = vld [vmem:[%s6 + $0x48] sm:$0xff]
      %v2855 = vld [vmem:[%s6 + $0x50] sm:$0xff]
      %v2856 = vld [vmem:[%s6 + $0x58] sm:$0xff]
      %v2857 = vld [vmem:[%s6 + $0x60] sm:$0xff]
      %v2858 = vld [vmem:[%s6 + $0x68] sm:$0xff]
      %v2859 = vld [vmem:[%s6 + $0x70] sm:$0xff]
      %v2860 = vld [vmem:[%s6 + $0x78] sm:$0xff]
      %v2861 = vld [vmem:[%s6 + $0x80] sm:$0xff]
      %v2862 = vld [vmem:[%s6 + $0x88] sm:$0xff]
      %v2863 = vld [vmem:[%s6 + $0x90] sm:$0xff]
      %v2864 = vld [vmem:[%s6 + $0x98] sm:$0xff]
      %v2865 = vld [vmem:[%s6 + $0xa0] sm:$0xff]
      %v2866 = vld [vmem:[%s6 + $0xa8] sm:$0xff]
      %v2867 = vld [vmem:[%s6 + $0xb0] sm:$0xff]
      %v2868 = vld [vmem:[%s6 + $0xb8] sm:$0xff]
      %v2869 = vld [vmem:[%s6 + $0xc0] sm:$0xff]
      %v2870 = vld [vmem:[%s6 + $0xc8] sm:$0xff]
      %v2871 = vld [vmem:[%s6 + $0xd0] sm:$0xff]
      %v2872 = vld [vmem:[%s6 + $0xd8] sm:$0xff]
      %v2873 = vld [vmem:[%s6 + $0xe0] sm:$0xff]
      %v2874 = vld [vmem:[%s6 + $0xe8] sm:$0xff]
      %v2875 = vld [vmem:[%s6 + $0xf0] sm:$0xff]
      %v2876 = vld [vmem:[%s6 + $0xf8] sm:$0xff]
      %v2877 = vld [vmem:[%s5 + $0x4] ss:$0 sm:$0xff]
      %2878 = vmatprep.subr.mxu0 0.0
      %2879 = vmatpush1.msra.mxu0 %v2845
      %2880 = vmatprep.subr.mxu0 0.0
      %2881 = vmatpush1.msra.mxu0 %v2846
      %2882 = vmatprep.subr.mxu0 0.0
      %2883 = vmatpush1.msra.mxu0 %v2847
      %2884 = vmatprep.subr.mxu0 0.0
      %2885 = vmatpush1.msra.mxu0 %v2848
      %2886 = vmatprep.subr.mxu0 0.0
      %2887 = vmatpush1.msra.mxu0 %v2849
      %2888 = vmatprep.subr.mxu0 0.0
      %2889 = vmatpush1.msra.mxu0 %v2850
      %2890 = vmatprep.subr.mxu0 0.0
      %2891 = vmatpush1.msra.mxu0 %v2851
      %2892 = vmatprep.subr.mxu0 0.0
      %2893 = vmatpush1.msra.mxu0 %v2852
      %2894 = vmatprep.subr.mxu0 0.0
      %2895 = vmatpush1.msra.mxu0 %v2853
      %2896 = vmatprep.subr.mxu0 0.0
      %2897 = vmatpush1.msra.mxu0 %v2854
      %2898 = vmatprep.subr.mxu0 0.0
      %2899 = vmatpush1.msra.mxu0 %v2855
      %2900 = vmatprep.subr.mxu0 0.0
      %2901 = vmatpush1.msra.mxu0 %v2856
      %2902 = vmatprep.subr.mxu0 0.0
      %2903 = vmatpush1.msra.mxu0 %v2857
      %2904 = vmatprep.subr.mxu0 0.0
      %2905 = vmatpush1.msra.mxu0 %v2858
      %2906 = vmatprep.subr.mxu0 0.0
      %2907 = vmatpush1.msra.mxu0 %v2859
      %2908 = vmatprep.subr.mxu0 0.0
      %2909 = vmatpush1.msra.mxu0 %v2860
      %2910 = vmatprep.subr.mxu0 0.0
      %2911 = vmatpush1.msra.mxu0 %v2861
      %2912 = vmatprep.subr.mxu0 0.0
      %2913 = vmatpush1.msra.mxu0 %v2862
      %2914 = vmatprep.subr.mxu0 0.0
      %2915 = vmatpush1.msra.mxu0 %v2863
      %2916 = vmatprep.subr.mxu0 0.0
      %2917 = vmatpush1.msra.mxu0 %v2864
      %2918 = vmatprep.subr.mxu0 0.0
      %2919 = vmatpush1.msra.mxu0 %v2865
      %2920 = vmatprep.subr.mxu0 0.0
      %2921 = vmatpush1.msra.mxu0 %v2866
      %2922 = vmatprep.subr.mxu0 0.0
      %2923 = vmatpush1.msra.mxu0 %v2867
      %2924 = vmatprep.subr.mxu0 0.0
      %2925 = vmatpush1.msra.mxu0 %v2868
      %2926 = vmatprep.subr.mxu0 0.0
      %2927 = vmatpush1.msra.mxu0 %v2869
      %2928 = vmatprep.subr.mxu0 0.0
      %2929 = vmatpush1.msra.mxu0 %v2870
      %2930 = vmatprep.subr.mxu0 0.0
      %2931 = vmatpush1.msra.mxu0 %v2871
      %2932 = vmatprep.subr.mxu0 0.0
      %2933 = vmatpush1.msra.mxu0 %v2872
      %2934 = vmatprep.subr.mxu0 0.0
      %2935 = vmatpush1.msra.mxu0 %v2873
      %2936 = vmatprep.subr.mxu0 0.0
      %2937 = vmatpush1.msra.mxu0 %v2874
      %2938 = vmatprep.subr.mxu0 0.0
      %2939 = vmatpush1.msra.mxu0 %v2875
      %2940 = vmatprep.subr.mxu0 0.0
      %2941 = vmatpush1.msra.mxu0 %v2876
      %2942 = vmatprep.mubr.f32.mxu0 %v2843
      %2943 = vmatmul.mubr.f32.gmra.mrb[0].mxu0 %v2841
      %v2944 = vpop.f32.mrb[0].mxu0
      %v2945 = vadd.f32 %v2877, %v2944
      %v2946 = vpop.f32.mrb[0].mxu0
      %2947 = vdwg.mxu0
      %v2948 = vmax.f32 %v2945, 0.0
      %v2949 = vld [vmem:[%s7] sm:$0xf]
      %s2950 = scalar_lea.vmem %s5, 3
      %v2951 = vld [vmem:[%s2950] ss:$8 sm:$0x3]
      %v2953 = vlaneseq
      %v2954 = vshrl.u32 %v2953, 7
      %v2955 = vsub.s32 0, %v2954
      %v2956 = vrot.slane %v2951, %v2955
      %v2957 = vlaneseq
      %v2958 = vshrl.u32 %v2957, 7
      %v2959 = vsub.s32 1, %v2958
      %v2960 = vrot.slane %v2951, %v2959
      %v2965 = vunpack.c.l.s4 1983009808
      %v2966 = vunpack.c.0.s8 %v2965
      %v2967 = vlaneseq
      %v2968 = vshrl.u32 %v2967, 7
      %v2969 = vsub.s32 %v2966, %v2968
      %v2970 = vrot.slane %v2949, %v2969
      %v2971 = vcombine.high %v2970, %v2970
      %vm2972 = vcmask 15360
      %v2974 = vsel %vm2972, %v2948, 0
      %vm2976 = vcmask 1041408
      %v2977 = vsel %vm2976, %v2970, 0
      %v2979 = vsel %vm2976, %v2971, 0
      %2981 = vmatprep.subr.mxu0 %v2979
      %2982 = vmatpush1.msra.mxu0 %v2977
      %2983 = vmatprep.subr.mxu0 0.0
      %2984 = vmatpush1.msra.mxu0 0.0
      %2985 = vmatprep.subr.mxu0 0.0
      %2986 = vmatpush1.msra.mxu0 0.0
      %2987 = vmatprep.subr.mxu0 0.0
      %2988 = vmatpush1.msra.mxu0 0.0
      %2989 = vmatprep.subr.mxu0 0.0
      %2990 = vmatpush1.msra.mxu0 0.0
      %2991 = vmatprep.subr.mxu0 0.0
      %2992 = vmatpush1.msra.mxu0 0.0
      %2993 = vmatprep.subr.mxu0 0.0
      %2994 = vmatpush1.msra.mxu0 0.0
      %2995 = vmatprep.subr.mxu0 0.0
      %2996 = vmatpush1.msra.mxu0 0.0
      %2997 = vmatprep.subr.mxu0 0.0
      %2998 = vmatpush1.msra.mxu0 0.0
      %2999 = vmatprep.subr.mxu0 0.0
      %3000 = vmatpush1.msra.mxu0 0.0
      %3001 = vmatprep.subr.mxu0 0.0
      %3002 = vmatpush1.msra.mxu0 0.0
      %3003 = vmatprep.subr.mxu0 0.0
      %3004 = vmatpush1.msra.mxu0 0.0
      %3005 = vmatprep.subr.mxu0 0.0
      %3006 = vmatpush1.msra.mxu0 0.0
      %3007 = vmatprep.subr.mxu0 0.0
      %3008 = vmatpush1.msra.mxu0 0.0
      %3009 = vmatprep.subr.mxu0 0.0
      %3010 = vmatpush1.msra.mxu0 0.0
      %3011 = vmatprep.subr.mxu0 0.0
      %3012 = vmatpush1.msra.mxu0 0.0
      %3013 = vmatprep.subr.mxu0 0.0
      %3014 = vmatpush1.msra.mxu0 0.0
      %3015 = vmatprep.subr.mxu0 0.0
      %3016 = vmatpush1.msra.mxu0 0.0
      %3017 = vmatprep.subr.mxu0 0.0
      %3018 = vmatpush1.msra.mxu0 0.0
      %3019 = vmatprep.subr.mxu0 0.0
      %3020 = vmatpush1.msra.mxu0 0.0
      %3021 = vmatprep.subr.mxu0 0.0
      %3022 = vmatpush1.msra.mxu0 0.0
      %3023 = vmatprep.subr.mxu0 0.0
      %3024 = vmatpush1.msra.mxu0 0.0
      %3025 = vmatprep.subr.mxu0 0.0
      %3026 = vmatpush1.msra.mxu0 0.0
      %3027 = vmatprep.subr.mxu0 0.0
      %3028 = vmatpush1.msra.mxu0 0.0
      %3029 = vmatprep.subr.mxu0 0.0
      %3030 = vmatpush1.msra.mxu0 0.0
      %3031 = vmatprep.subr.mxu0 0.0
      %3032 = vmatpush1.msra.mxu0 0.0
      %3033 = vmatprep.subr.mxu0 0.0
      %3034 = vmatpush1.msra.mxu0 0.0
      %3035 = vmatprep.subr.mxu0 0.0
      %3036 = vmatpush1.msra.mxu0 0.0
      %3037 = vmatprep.subr.mxu0 0.0
      %3038 = vmatpush1.msra.mxu0 0.0
      %3039 = vmatprep.subr.mxu0 0.0
      %3040 = vmatpush1.msra.mxu0 0.0
      %3041 = vmatprep.subr.mxu0 0.0
      %3042 = vmatpush1.msra.mxu0 0.0
      %3043 = vmatprep.subr.mxu0 0.0
      %3044 = vmatpush1.msra.mxu0 0.0
      %3045 = vmatprep.mubr.f32.mxu0 0.0
      %3046 = vmatmul.mubr.f32.gmra.mrb[0].mxu0 %v2974
      %v3047 = vpop.f32.mrb[0].mxu0
      %v3048 = vadd.f32 %v2956, %v3047
      %v3049 = vpop.f32.mrb[0].mxu0
      %v3050 = vadd.f32 %v2960, %v3049
      %3051 = vdwg.mxu0
      %v3052 = vxor.u32 %v3048, 2147483648
      %v3053 = vxor.u32 %v3050, 2147483648
      %v3054 = vmul.f32 %v3052, 1.442695
      %v3055 = vpow.pop %v3054
      %v3056 = vmul.f32 %v3053, 1.442695
      %v3057 = vpow.pop %v3056
      %v3058 = vadd.f32 %v3055, 1.0
      %v3059 = vadd.f32 %v3057, 1.0
      %v3060 = vrcp.pop %v3058
      %v3061 = vmul.f32 1.0, %v3060
      %v3062 = vrcp.pop %v3059
      %v3063 = vmul.f32 1.0, %v3062
      %v3064 = vld [vmem:[%s9] sm:$0xff]
      %v3065 = vld [vmem:[%s9 + $0x8] sm:$0xff]
      %v3066 = vld [vmem:[%s9 + $0x10] sm:$0xff]
      %v3067 = vld [vmem:[%s9 + $0x18] sm:$0xff]
      %v3068 = vld [vmem:[%s9 + $0x20] sm:$0xff]
      %v3069 = vld [vmem:[%s9 + $0x28] sm:$0xff]
      %v3070 = vld [vmem:[%s9 + $0x30] sm:$0xff]
      %v3071 = vld [vmem:[%s9 + $0x38] sm:$0xff]
      %vm3072 = vcmask 31744
      %v3074 = vsel %vm3072, %v3064, 0
      %v3077 = vsel %vm3072, %v3065, 0
      %v3080 = vsel %vm3072, %v3066, 0
      %v3083 = vsel %vm3072, %v3067, 0
      %v3086 = vsel %vm3072, %v3068, 0
      %v3089 = vsel %vm3072, %v3069, 0
      %v3092 = vsel %vm3072, %v3070, 0
      %v3095 = vsel %vm3072, %v3071, 0
      %vm3097 = vcmask 1043456
      %v3099 = vsel %vm3097, %v3061, 0
      %v3102 = vsel %vm3097, %v3063, 0
      %3104 = vmatprep.subr.mxu0 %v3102
      %3105 = vmatpush1.msra.mxu0 %v3099
      %3106 = vmatprep.subr.mxu0 0.0
      %3107 = vmatpush1.msra.mxu0 0.0
      %3108 = vmatprep.subr.mxu0 0.0
      %3109 = vmatpush1.msra.mxu0 0.0
      %3110 = vmatprep.subr.mxu0 0.0
      %3111 = vmatpush1.msra.mxu0 0.0
      %3112 = vmatprep.subr.mxu0 0.0
      %3113 = vmatpush1.msra.mxu0 0.0
      %3114 = vmatprep.subr.mxu0 0.0
      %3115 = vmatpush1.msra.mxu0 0.0
      %3116 = vmatprep.subr.mxu0 0.0
      %3117 = vmatpush1.msra.mxu0 0.0
      %3118 = vmatprep.subr.mxu0 0.0
      %3119 = vmatpush1.msra.mxu0 0.0
      %3120 = vmatprep.subr.mxu0 0.0
      %3121 = vmatpush1.msra.mxu0 0.0
      %3122 = vmatprep.subr.mxu0 0.0
      %3123 = vmatpush1.msra.mxu0 0.0
      %3124 = vmatprep.subr.mxu0 0.0
      %3125 = vmatpush1.msra.mxu0 0.0
      %3126 = vmatprep.subr.mxu0 0.0
      %3127 = vmatpush1.msra.mxu0 0.0
      %3128 = vmatprep.subr.mxu0 0.0
      %3129 = vmatpush1.msra.mxu0 0.0
      %3130 = vmatprep.subr.mxu0 0.0
      %3131 = vmatpush1.msra.mxu0 0.0
      %3132 = vmatprep.subr.mxu0 0.0
      %3133 = vmatpush1.msra.mxu0 0.0
      %3134 = vmatprep.subr.mxu0 0.0
      %3135 = vmatpush1.msra.mxu0 0.0
      %3136 = vmatprep.subr.mxu0 0.0
      %3137 = vmatpush1.msra.mxu0 0.0
      %3138 = vmatprep.subr.mxu0 0.0
      %3139 = vmatpush1.msra.mxu0 0.0
      %3140 = vmatprep.subr.mxu0 0.0
      %3141 = vmatpush1.msra.mxu0 0.0
      %3142 = vmatprep.subr.mxu0 0.0
      %3143 = vmatpush1.msra.mxu0 0.0
      %3144 = vmatprep.subr.mxu0 0.0
      %3145 = vmatpush1.msra.mxu0 0.0
      %3146 = vmatprep.subr.mxu0 0.0
      %3147 = vmatpush1.msra.mxu0 0.0
      %3148 = vmatprep.subr.mxu0 0.0
      %3149 = vmatpush1.msra.mxu0 0.0
      %3150 = vmatprep.subr.mxu0 0.0
      %3151 = vmatpush1.msra.mxu0 0.0
      %3152 = vmatprep.subr.mxu0 0.0
      %3153 = vmatpush1.msra.mxu0 0.0
      %3154 = vmatprep.subr.mxu0 0.0
      %3155 = vmatpush1.msra.mxu0 0.0
      %3156 = vmatprep.subr.mxu0 0.0
      %3157 = vmatpush1.msra.mxu0 0.0
      %3158 = vmatprep.subr.mxu0 0.0
      %3159 = vmatpush1.msra.mxu0 0.0
      %3160 = vmatprep.subr.mxu0 0.0
      %3161 = vmatpush1.msra.mxu0 0.0
      %3162 = vmatprep.subr.mxu0 0.0
      %3163 = vmatpush1.msra.mxu0 0.0
      %3164 = vmatprep.subr.mxu0 0.0
      %3165 = vmatpush1.msra.mxu0 0.0
      %3166 = vmatprep.subr.mxu0 0.0
      %3167 = vmatpush1.msra.mxu0 0.0
      %3168 = vmatprep.mubr.f32.mxu0 0.0
      %3169 = vmatmul.mubr.f32.gmra.mrb[0].mxu0 %v3074
      %v3170 = vpop.f32.mrb[0].mxu0
      %v3171 = vadd.f32 0.0, %v3170
      %v3172 = vpop.f32.mrb[0].mxu0
      %v3173 = vadd.f32 0.0, %v3172
      %3174 = vmatprep.mubr.f32.mxu0 0.0
      %3175 = vmatmul.mubr.f32.gmra.mrb[0].mxu0 %v3077
      %v3176 = vpop.f32.mrb[0].mxu0
      %v3177 = vadd.f32 0.0, %v3176
      %v3178 = vpop.f32.mrb[0].mxu0
      %v3179 = vadd.f32 0.0, %v3178
      %3180 = vmatprep.mubr.f32.mxu0 0.0
      %3181 = vmatmul.mubr.f32.gmra.mrb[0].mxu0 %v3080
      %v3182 = vpop.f32.mrb[0].mxu0
      %v3183 = vadd.f32 0.0, %v3182
      %v3184 = vpop.f32.mrb[0].mxu0
      %v3185 = vadd.f32 0.0, %v3184
      %3186 = vmatprep.mubr.f32.mxu0 0.0
      %3187 = vmatmul.mubr.f32.gmra.mrb[0].mxu0 %v3083
      %v3188 = vpop.f32.mrb[0].mxu0
      %v3189 = vadd.f32 0.0, %v3188
      %v3190 = vpop.f32.mrb[0].mxu0
      %v3191 = vadd.f32 0.0, %v3190
      %3192 = vmatprep.mubr.f32.mxu0 0.0
      %3193 = vmatmul.mubr.f32.gmra.mrb[0].mxu0 %v3086
      %v3194 = vpop.f32.mrb[0].mxu0
      %v3195 = vadd.f32 0.0, %v3194
      %v3196 = vpop.f32.mrb[0].mxu0
      %v3197 = vadd.f32 0.0, %v3196
      %3198 = vmatprep.mubr.f32.mxu0 0.0
      %3199 = vmatmul.mubr.f32.gmra.mrb[0].mxu0 %v3089
      %v3200 = vpop.f32.mrb[0].mxu0
      %v3201 = vadd.f32 0.0, %v3200
      %v3202 = vpop.f32.mrb[0].mxu0
      %v3203 = vadd.f32 0.0, %v3202
      %3204 = vmatprep.mubr.f32.mxu0 0.0
      %3205 = vmatmul.mubr.f32.gmra.mrb[0].mxu0 %v3092
      %v3206 = vpop.f32.mrb[0].mxu0
      %v3207 = vadd.f32 0.0, %v3206
      %v3208 = vpop.f32.mrb[0].mxu0
      %v3209 = vadd.f32 0.0, %v3208
      %3210 = vmatprep.mubr.f32.mxu0 0.0
      %3211 = vmatmul.mubr.f32.gmra.mrb[0].mxu0 %v3095
      %v3212 = vpop.f32.mrb[0].mxu0
      %v3213 = vadd.f32 0.0, %v3212
      %v3214 = vpop.f32.mrb[0].mxu0
      %v3215 = vadd.f32 0.0, %v3214
      %3216 = vdwg.mxu0
      %v3217 = vmul.f32 %v2753, %v3171
      %v3218 = vmul.f32 %v2754, %v3173
      %v3219 = vmul.f32 %v2755, %v3177
      %v3220 = vmul.f32 %v2756, %v3179
      %v3221 = vmul.f32 %v2757, %v3183
      %v3222 = vmul.f32 %v2758, %v3185
      %v3223 = vmul.f32 %v2759, %v3189
      %v3224 = vmul.f32 %v2760, %v3191
      %v3225 = vmul.f32 %v2761, %v3195
      %v3226 = vmul.f32 %v2762, %v3197
      %v3227 = vmul.f32 %v2763, %v3201
      %v3228 = vmul.f32 %v2764, %v3203
      %v3229 = vmul.f32 %v2765, %v3207
      %v3230 = vmul.f32 %v2766, %v3209
      %v3231 = vmul.f32 %v2767, %v3213
      %v3232 = vmul.f32 %v2768, %v3215
      %3233 = vst [vmem:[%s385] sm:$0xff] %v3217
      %3234 = vst [vmem:[%s385 + $0x8] sm:$0xff] %v3218
      %3235 = vst [vmem:[%s385 + $0x10] sm:$0xff] %v3219
      %3236 = vst [vmem:[%s385 + $0x18] sm:$0xff] %v3220
      %3237 = vst [vmem:[%s385 + $0x20] sm:$0xff] %v3221
      %3238 = vst [vmem:[%s385 + $0x28] sm:$0xff] %v3222
      %3239 = vst [vmem:[%s385 + $0x30] sm:$0xff] %v3223
      %3240 = vst [vmem:[%s385 + $0x38] sm:$0xff] %v3224
      %3241 = vst [vmem:[%s385 + $0x40] sm:$0xff] %v3225
      %3242 = vst [vmem:[%s385 + $0x48] sm:$0xff] %v3226
      %3243 = vst [vmem:[%s385 + $0x50] sm:$0xff] %v3227
      %3244 = vst [vmem:[%s385 + $0x58] sm:$0xff] %v3228
      %3245 = vst [vmem:[%s385 + $0x60] sm:$0xff] %v3229
      %3246 = vst [vmem:[%s385 + $0x68] sm:$0xff] %v3230
      %3247 = vst [vmem:[%s385 + $0x70] sm:$0xff] %v3231
      %3248 = vst [vmem:[%s385 + $0x78] sm:$0xff] %v3232
      %s3249 = smul.u32 8, %s21
      %p3250 = scmp.lt.s32.totalorder %s3249, 15
      %s3251 = scalar_select %p3250, %s3249, 15
      %s3252 = smul.addr %s3251, 2
      %s3253 = smul.addr %s3252, 8
      %s3254 = scalar_lea.vmem %s10, %s3253
      // Predicated region
      $region61: #{_lambda_.1} parent=59 // pred_check
        %p3255 = pneg %p259
      $region62: #{_lambda_.1} parent=59 // pred_check_branch
        %3257 = sbr.rel (%p3255) target = $region64
      $region63: #{_lambda_.1} parent=59 // pred_region
        %s3258 = smul.u32 8, %s21
      $region64: #{_lambda_.1} parent=59 // pred_fallthru
        _
    $region60: #{_lambda_.1} parent=5 // pred_fallthru
      _
    %p3259 = scmp.le.s32.totalorder 2, %s16
    // Predicated region
    $region65: #{_lambda_.1} parent=5 // pred_check
      %p3260 = pneg %p3259
    $region66: #{_lambda_.1} parent=5 // pred_check_branch
      %3262 = sbr.rel (%p3260) target = $region68
    $region67: #{_lambda_.1} parent=5 // pred_region
      %s3263 = ssub.s32 %s16, 2
      // Predicated region
      $region69: #{_lambda_.1} parent=67 // pred_check
        %p3264 = pneg %p265
      $region70: #{_lambda_.1} parent=67 // pred_check_branch
        %3266 = sbr.rel (%p3264) target = $region72
      $region71: #{_lambda_.1} parent=67 // pred_region
        %s3267 = smul.u32 8, %s22
        %p3268 = scmp.lt.s32.totalorder %s3267, 15
        %s3269 = scalar_select %p3268, %s3267, 15
        %s3270 = smul.addr %s3269, 2
        %s3271 = smul.addr %s3270, 8
        %s3272 = scalar_lea.vmem %s10, %s3271
      $region72: #{_lambda_.1} parent=67 // pred_fallthru
        _
    $region68: #{_lambda_.1} parent=5 // pred_fallthru
      _
  $region6: #{_lambda_.1} parent=0 // loop_footer
    %s20 = sadd.s32 1, %s16
  $region7: #{_lambda_.1} parent=0 // loop_footer_branch
    %15 = sbr.rel target = $region3
  $region8: #{_lambda_.1} parent=0 // loop_exit
    _

</llo_original>
